<compile_context>
chip_gen: v7x
topology: tpu7x:2x2x1
jax: 0.10.0
libtpu: 0.0.40
codegen_flags: <defaults>
</compile_context>

<pallas_src>
import functools

import jax
import jax.numpy as jnp
from jax.experimental import pallas as pl
from jax.experimental.pallas import tpu as pltpu


def _bottleneck_kernel(xc_ref, xa_ref, xb_ref,
                       w1_ref, w2_ref, w3_ref,
                       b1_ref, b2_ref, b3_ref,
                       out_ref,
                       pad_ref, col_ref,
                       *, TH, W, Cin, P, Cout, D):
    """One (batch, row-tile) step of the fused bottleneck.

    xc_ref : (1, TH, W, Cin)  row tile of the input (compute dtype)
    xa_ref : (1, D,  W, Cin)  D rows just above the tile (index clamped at image top)
    xb_ref : (1, D,  W, Cin)  D rows just below the tile (index clamped at image bottom)
    w*_ref : BN-scale-folded conv weights: (Cin, P), (9*P, P), (P, Cout)
    b*_ref : BN biases (1, P), (1, P), (1, Cout) in f32
    pad_ref: (TH+2D, W+2D, P) zero-padded h1 tile (compute dtype)
    col_ref: (TH*W, 9*P)      im2col buffer for the 3x3 conv (compute dtype)
    """
    i = pl.program_id(1)
    nt = pl.num_programs(1)

    w1 = w1_ref[...]
    b1 = b1_ref[...]

    def conv1(x_rows, rows):
        h = jnp.dot(x_rows.reshape(rows * W, Cin), w1,
                    preferred_element_type=jnp.float32)
        return jnp.maximum(h + b1, 0.0).reshape(rows, W, P)

    # --- conv1 (1x1) + bn1 + relu (centre rows + D-row halos) --------------------
    xc = xc_ref[0]                                     # (TH, W, Cin)
    h1c = conv1(xc, TH)
    # conv2's zero padding applies to h1 (post conv1/bn/relu), not to x, so the halo
    # rows are recomputed here and masked to exact zero at the image top / bottom.
    h1a = conv1(xa_ref[0], D) * jnp.where(i > 0, 1.0, 0.0)
    h1b = conv1(xb_ref[0], D) * jnp.where(i < nt - 1, 1.0, 0.0)

    # --- conv2 (3x3, dilation=D, padding=D) via im2col + one big-K matmul --------
    # Only the W-border strips need re-zeroing each step; every other element of
    # pad_ref is overwritten below (also safe if the row axis is sharded across cores).
    pad_ref[:, 0:D, :] = jnp.zeros((TH + 2 * D, D, P), pad_ref.dtype)
    pad_ref[:, W + D:, :] = jnp.zeros((TH + 2 * D, D, P), pad_ref.dtype)
    pad_ref[0:D, D:D + W, :] = h1a.astype(pad_ref.dtype)
    pad_ref[D:D + TH, D:D + W, :] = h1c.astype(pad_ref.dtype)
    pad_ref[D + TH:, D:D + W, :] = h1b.astype(pad_ref.dtype)

    for ky in range(3):
        for kx in range(3):
            k = ky * 3 + kx
            tap = pad_ref[ky * D:ky * D + TH, kx * D:kx * D + W, :]   # (TH, W, P)
            col_ref[:, k * P:(k + 1) * P] = tap.reshape(TH * W, P)

    h2 = jnp.dot(col_ref[...], w2_ref[...], preferred_element_type=jnp.float32)
    h2 = jnp.maximum(h2 + b2_ref[...], 0.0)            # (TH*W, P)

    # --- conv3 (1x1) + bn3 + residual add + relu ----------------------------------
    h3 = jnp.dot(h2.astype(w3_ref.dtype), w3_ref[...],
                 preferred_element_type=jnp.float32)   # (TH*W, Cout)
    h3 = h3 + b3_ref[...]
    res = xc.reshape(TH * W, Cin).astype(jnp.float32)  # downsample=None -> residual = x
    out = jnp.maximum(h3 + res, 0.0)
    out_ref[...] = out.reshape(1, TH, W, Cout).astype(out_ref.dtype)


def _pick_block_h(H, D, target_rows=8):
    """Largest row tile that divides H, is a multiple of D and is <= max(target, D)."""
    best = None
    for th in range(1, H + 1):
        if H % th == 0 and th % D == 0 and th <= max(target_rows, D):
            best = th
    return best if best is not None else H


def bottleneck_pallas(x, w1, w2, w3, s1, b1, s2, b2, s3, b3, *,
                      dilation=1, block_h=None, compute_dtype=jnp.bfloat16):
    """Fused Bottleneck forward (stride=1, downsample=None path).

    x  : (N, H, W, Cin) f32 NHWC
    w1 : (Cin, P)    w2 : (3, 3, P, P) HWIO    w3 : (P, Cout == Cin)
    s*, b* : per-channel folded (frozen) BatchNorm scale / bias, shape (C,).
    """
    N, H, W, Cin = x.shape
    P = w1.shape[1]
    Cout = w3.shape[1]
    assert Cout == Cin, "downsample=None path requires inplanes == planes * 4"
    assert w2.shape == (3, 3, P, P)
    assert dilation in (1, 2, 4), "module uses padding == dilation only for 1/2/4"
    D = dilation
    assert H % D == 0

    TH = _pick_block_h(H, D) if block_h is None else block_h
    assert H % TH == 0 and TH % D == 0
    HT = H // TH
    hblk = TH // D            # halo row-block stride measured in D-row blocks

    # Fold the BN scale into the conv weights (per output channel); biases stay f32.
    w1f = (w1 * s1[None, :]).astype(compute_dtype)                         # (Cin, P)
    w2f = (w2 * s2[None, None, None, :]).reshape(9 * P, P).astype(compute_dtype)
    w3f = (w3 * s3[None, :]).astype(compute_dtype)                         # (P, Cout)
    b1f = b1.reshape(1, P).astype(jnp.float32)
    b2f = b2.reshape(1, P).astype(jnp.float32)
    b3f = b3.reshape(1, Cout).astype(jnp.float32)
    xc = x.astype(compute_dtype)
    # TODO(synk): for stages with narrow bottleneck widths, pad P / Cin to multiples
    # of 128 here for lane-dense tiles (the demo already uses Cin = Cout = 128).

    kernel = functools.partial(_bottleneck_kernel,
                               TH=TH, W=W, Cin=Cin, P=P, Cout=Cout, D=D)

    itemsize = jnp.finfo(compute_dtype).bits // 8
    cost = pl.CostEstimate(
        flops=2 * N * H * W * (Cin * P + 9 * P * P + P * Cout),
        transcendentals=0,
        bytes_accessed=int(N * H * W * Cin * itemsize + N * H * W * Cout * 4
                           + int(w1f.size + w2f.size + w3f.size) * itemsize
                           + int(b1f.size + b2f.size + b3f.size) * 4))

    def build(weight_mode):
        wkw = {} if weight_mode is None else {"pipeline_mode": weight_mode}

        def const_spec(shape):
            nd = len(shape)
            return pl.BlockSpec(shape, lambda n, i, _nd=nd: (0,) * _nd, **wkw)

        in_specs = [
            # centre rows of the input tile
            pl.BlockSpec((1, TH, W, Cin), lambda n, i: (n, i, 0, 0)),
            # D-row halo above / below (block index clamped at the image edges; the
            # out-of-image case is masked to zero inside the kernel)
            pl.BlockSpec((1, D, W, Cin),
                         lambda n, i: (n, jnp.maximum(i * hblk - 1, 0), 0, 0)),
            pl.BlockSpec((1, D, W, Cin),
                         lambda n, i: (n, jnp.minimum(i * hblk + hblk, H // D - 1), 0, 0)),
            const_spec(w1f.shape), const_spec(w2f.shape), const_spec(w3f.shape),
            const_spec(b1f.shape), const_spec(b2f.shape), const_spec(b3f.shape),
        ]
        return pl.pallas_call(
            kernel,
            out_shape=jax.ShapeDtypeStruct((N, H, W, Cout), jnp.float32),
            grid=(N, HT),
            in_specs=in_specs,
            out_specs=pl.BlockSpec((1, TH, W, Cout), lambda n, i: (n, i, 0, 0)),
            scratch_shapes=[
                pltpu.VMEM((TH + 2 * D, W + 2 * D, P), compute_dtype),   # padded h1
                pltpu.VMEM((TH * W, 9 * P), compute_dtype),              # im2col buffer
            ],
            compiler_params=pltpu.CompilerParams(
                dimension_semantics=("parallel", "parallel")),
            cost_estimate=cost,
        )

    args = (xc, xc, xc, w1f, w2f, w3f, b1f, b2f, b3f)
    try:
        # Grid-invariant operands: single-buffer to save VMEM (matters on v7x 64 MiB).
        return build(pl.Buffered(1))(*args)
    except Exception:
        # pipeline_mode / Buffered(1) unsupported on this jax version -> default buffering.
        return build(None)(*args)


# ----------------------------- pure-JAX reference -----------------------------
def bottleneck_ref(x, w1, w2, w3, s1, b1, s2, b2, s3, b3, *, dilation=1):
    dn = ("NHWC", "HWIO", "NHWC")
    prec = jax.lax.Precision.HIGHEST
    h1 = jax.lax.conv_general_dilated(x, w1[None, None], (1, 1), "VALID",
                                      dimension_numbers=dn, precision=prec)
    h1 = jnp.maximum(h1 * s1 + b1, 0.0)
    h2 = jax.lax.conv_general_dilated(h1, w2, (1, 1),
                                      [(dilation, dilation), (dilation, dilation)],
                                      rhs_dilation=(dilation, dilation),
                                      dimension_numbers=dn, precision=prec)
    h2 = jnp.maximum(h2 * s2 + b2, 0.0)
    h3 = jax.lax.conv_general_dilated(h2, w3[None, None], (1, 1), "VALID",
                                      dimension_numbers=dn, precision=prec)
    h3 = h3 * s3 + b3
    return jnp.maximum(h3 + x, 0.0)


def _fold_bn(gamma, beta, mean, var, eps=1e-5):
    scale = gamma / jnp.sqrt(var + eps)
    return scale, beta - mean * scale


if __name__ == "__main__":
    # Small but lane-friendly demo shapes: inplanes = 4 * planes = 128 so the input /
    # output channel (lane) dim is a full 128 lanes; H = W = 16, batch 2, row tile 8.
    N, H, W = 2, 16, 16
    planes = 32
    inplanes = planes * 4            # 128

    key = jax.random.PRNGKey(0)
    keys = jax.random.split(key, 8)

    x = jax.random.normal(keys[0], (N, H, W, inplanes), jnp.float32)
    w1 = jax.random.normal(keys[1], (inplanes, planes), jnp.float32) * 0.05   # 1x1
    w2 = jax.random.normal(keys[2], (3, 3, planes, planes), jnp.float32) * 0.05
    w3 = jax.random.normal(keys[3], (planes, inplanes), jnp.float32) * 0.05   # 1x1

    # Frozen BatchNorm params (affine=True, requires_grad=False) -> fold to scale/bias.
    def bn_params(k, c):
        k1, k2, k3, k4 = jax.random.split(k, 4)
        gamma = jax.random.uniform(k1, (c,), jnp.float32, 0.5, 1.5)
        beta = jax.random.normal(k2, (c,), jnp.float32) * 0.1
        mean = jax.random.normal(k3, (c,), jnp.float32) * 0.1
        var = jax.random.uniform(k4, (c,), jnp.float32, 0.5, 1.5)
        return _fold_bn(gamma, beta, mean, var)

    s1, b1 = bn_params(keys[4], planes)
    s2, b2 = bn_params(keys[5], planes)
    s3, b3 = bn_params(keys[6], inplanes)

    # f32 runs validate the tiling / halo / im2col structure tightly across all
    # supported dilations; the bf16 run is the performance configuration
    # (tolerance covers bf16 inputs & intermediates).
    configs = [
        (1, jnp.float32, 1e-3, 1e-3),
        (2, jnp.float32, 1e-3, 1e-3),     # dilated 3x3 path (padding = dilation)
        (4, jnp.float32, 1e-3, 1e-3),     # dilated 3x3 path (padding = dilation)
        (1, jnp.bfloat16, 2e-2, 5e-2),
    ]
    for dil, cdt, rtol, atol in configs:
        out = jax.block_until_ready(
            bottleneck_pallas(x, w1, w2, w3, s1, b1, s2, b2, s3, b3,
                              dilation=dil, compute_dtype=cdt))
        ref = bottleneck_ref(x, w1, w2, w3, s1, b1, s2, b2, s3, b3, dilation=dil)
        assert out.shape == ref.shape
        max_err = float(jnp.max(jnp.abs(out - ref)))
        assert jnp.allclose(out, ref, rtol=rtol, atol=atol), (dil, str(cdt), max_err)

    print("KERNEL_OK")
</pallas_src>

<mosaic_0001>
module attributes {stable_mosaic.version = 11 : i64} {
  func.func @_bottleneck_kernel(%arg0: i32, %arg1: i32, %arg2: memref<1x8x16x128xf32, #tpu.memory_space<vmem>>, %arg3: memref<1x1x16x128xf32, #tpu.memory_space<vmem>>, %arg4: memref<1x1x16x128xf32, #tpu.memory_space<vmem>>, %arg5: memref<128x32xf32, #tpu.memory_space<vmem>>, %arg6: memref<288x32xf32, #tpu.memory_space<vmem>>, %arg7: memref<32x128xf32, #tpu.memory_space<vmem>>, %arg8: memref<1x32xf32, #tpu.memory_space<vmem>>, %arg9: memref<1x32xf32, #tpu.memory_space<vmem>>, %arg10: memref<1x128xf32, #tpu.memory_space<vmem>>, %arg11: memref<1x8x16x128xf32, #tpu.memory_space<vmem>>, %arg12: memref<10x18x32xf32, #tpu.memory_space<vmem>>, %arg13: memref<128x288xf32, #tpu.memory_space<vmem>>) attributes {dimension_semantics = [#tpu.dimension_semantics<parallel>, #tpu.dimension_semantics<parallel>], iteration_bounds = array<i64: 2, 2>, scalar_prefetch = 0 : i64, scratch_operands = 2 : i64, tpu.core_type = #tpu.core_type<tc>, window_params = [{transform_indices = @transform_0, window_bounds = array<i64: 1, 8, 16, 128>}, {transform_indices = @transform_1, window_bounds = array<i64: 1, 1, 16, 128>}, {transform_indices = @transform_2, window_bounds = array<i64: 1, 1, 16, 128>}, {pipeline_mode = #tpu.pipeline_mode<synchronous>, transform_indices = @transform_3, window_bounds = array<i64: 128, 32>}, {pipeline_mode = #tpu.pipeline_mode<synchronous>, transform_indices = @transform_4, window_bounds = array<i64: 288, 32>}, {pipeline_mode = #tpu.pipeline_mode<synchronous>, transform_indices = @transform_5, window_bounds = array<i64: 32, 128>}, {pipeline_mode = #tpu.pipeline_mode<synchronous>, transform_indices = @transform_6, window_bounds = array<i64: 1, 32>}, {pipeline_mode = #tpu.pipeline_mode<synchronous>, transform_indices = @transform_7, window_bounds = array<i64: 1, 32>}, {pipeline_mode = #tpu.pipeline_mode<synchronous>, transform_indices = @transform_8, window_bounds = array<i64: 1, 128>}, {transform_indices = @transform_9, window_bounds = array<i64: 1, 8, 16, 128>}]} {
    %c0 = arith.constant 0 : index
    %c0_0 = arith.constant 0 : index
    %0 = vector.load %arg5[%c0, %c0_0] : memref<128x32xf32, #tpu.memory_space<vmem>>, vector<128x32xf32>
    %c0_1 = arith.constant 0 : index
    %c0_2 = arith.constant 0 : index
    %1 = vector.load %arg8[%c0_1, %c0_2] : memref<1x32xf32, #tpu.memory_space<vmem>>, vector<1x32xf32>
    %c0_3 = arith.constant 0 : index
    %c0_4 = arith.constant 0 : index
    %c0_5 = arith.constant 0 : index
    %c0_6 = arith.constant 0 : index
    %2 = vector.load %arg2[%c0_3, %c0_4, %c0_5, %c0_6] : memref<1x8x16x128xf32, #tpu.memory_space<vmem>>, vector<1x8x16x128xf32>
    %3 = vector.shape_cast %2 : vector<1x8x16x128xf32> to vector<8x16x128xf32>
    %4 = vector.shape_cast %3 : vector<8x16x128xf32> to vector<128x128xf32>
    %cst = arith.constant dense<0.000000e+00> : vector<128x32xf32>
    %5 = tpu.matmul %4, %0, %cst {dimension_numbers = #tpu.dot_dimension_numbers<[1], [0], [0], [1], [0, 0, 1, 1], [], []>} : vector<128x128xf32>, vector<128x32xf32>, vector<128x32xf32> -> vector<128x32xf32>
    %6 = vector.broadcast %1 : vector<1x32xf32> to vector<128x32xf32>
    %7 = arith.addf %5, %6 : vector<128x32xf32>
    %cst_7 = arith.constant 0.000000e+00 : f32
    %8 = vector.broadcast %cst_7 : f32 to vector<128x32xf32>
    %9 = arith.maximumf %7, %8 : vector<128x32xf32>
    %10 = vector.shape_cast %9 : vector<128x32xf32> to vector<8x16x32xf32>
    %c0_8 = arith.constant 0 : index
    %c0_9 = arith.constant 0 : index
    %c0_10 = arith.constant 0 : index
    %c0_11 = arith.constant 0 : index
    %11 = vector.load %arg3[%c0_8, %c0_9, %c0_10, %c0_11] : memref<1x1x16x128xf32, #tpu.memory_space<vmem>>, vector<1x1x16x128xf32>
    %12 = vector.shape_cast %11 : vector<1x1x16x128xf32> to vector<1x16x128xf32>
    %13 = vector.shape_cast %12 : vector<1x16x128xf32> to vector<16x128xf32>
    %cst_12 = arith.constant dense<0.000000e+00> : vector<16x32xf32>
    %14 = tpu.matmul %13, %0, %cst_12 {dimension_numbers = #tpu.dot_dimension_numbers<[1], [0], [0], [1], [0, 0, 1, 1], [], []>} : vector<16x128xf32>, vector<128x32xf32>, vector<16x32xf32> -> vector<16x32xf32>
    %15 = vector.broadcast %1 : vector<1x32xf32> to vector<16x32xf32>
    %16 = arith.addf %14, %15 : vector<16x32xf32>
    %cst_13 = arith.constant 0.000000e+00 : f32
    %17 = vector.broadcast %cst_13 : f32 to vector<16x32xf32>
    %18 = arith.maximumf %16, %17 : vector<16x32xf32>
    %19 = vector.shape_cast %18 : vector<16x32xf32> to vector<1x16x32xf32>
    %c0_i32 = arith.constant 0 : i32
    %20 = arith.cmpi sgt, %arg1, %c0_i32 : i32
    %cst_14 = arith.constant 1.000000e+00 : f32
    %cst_15 = arith.constant 0.000000e+00 : f32
    %21 = arith.select %20, %cst_14, %cst_15 : f32
    %22 = vector.broadcast %21 : f32 to vector<1x16x32xf32>
    %23 = arith.mulf %19, %22 : vector<1x16x32xf32>
    %c0_16 = arith.constant 0 : index
    %c0_17 = arith.constant 0 : index
    %c0_18 = arith.constant 0 : index
    %c0_19 = arith.constant 0 : index
    %24 = vector.load %arg4[%c0_16, %c0_17, %c0_18, %c0_19] : memref<1x1x16x128xf32, #tpu.memory_space<vmem>>, vector<1x1x16x128xf32>
    %25 = vector.shape_cast %24 : vector<1x1x16x128xf32> to vector<1x16x128xf32>
    %26 = vector.shape_cast %25 : vector<1x16x128xf32> to vector<16x128xf32>
    %cst_20 = arith.constant dense<0.000000e+00> : vector<16x32xf32>
    %27 = tpu.matmul %26, %0, %cst_20 {dimension_numbers = #tpu.dot_dimension_numbers<[1], [0], [0], [1], [0, 0, 1, 1], [], []>} : vector<16x128xf32>, vector<128x32xf32>, vector<16x32xf32> -> vector<16x32xf32>
    %28 = vector.broadcast %1 : vector<1x32xf32> to vector<16x32xf32>
    %29 = arith.addf %27, %28 : vector<16x32xf32>
    %cst_21 = arith.constant 0.000000e+00 : f32
    %30 = vector.broadcast %cst_21 : f32 to vector<16x32xf32>
    %31 = arith.maximumf %29, %30 : vector<16x32xf32>
    %32 = vector.shape_cast %31 : vector<16x32xf32> to vector<1x16x32xf32>
    %c1_i32 = arith.constant 1 : i32
    %33 = arith.cmpi slt, %arg1, %c1_i32 : i32
    %cst_22 = arith.constant 1.000000e+00 : f32
    %cst_23 = arith.constant 0.000000e+00 : f32
    %34 = arith.select %33, %cst_22, %cst_23 : f32
    %35 = vector.broadcast %34 : f32 to vector<1x16x32xf32>
    %36 = arith.mulf %32, %35 : vector<1x16x32xf32>
    %cst_24 = arith.constant 0.000000e+00 : f32
    %37 = vector.broadcast %cst_24 : f32 to vector<10x1x32xf32>
    %c0_25 = arith.constant 0 : index
    %c0_26 = arith.constant 0 : index
    %c0_27 = arith.constant 0 : index
    %38 = vector.load %arg12[%c0_25, %c0_26, %c0_27] : memref<10x18x32xf32, #tpu.memory_space<vmem>>, vector<10x1x32xf32>
    tpu.vector_store %arg12[%c0_25, %c0_26, %c0_27], %37 {strides = array<i32>} : memref<10x18x32xf32, #tpu.memory_space<vmem>>, vector<10x1x32xf32>,
    %cst_28 = arith.constant 0.000000e+00 : f32
    %39 = vector.broadcast %cst_28 : f32 to vector<10x1x32xf32>
    %c0_29 = arith.constant 0 : index
    %c17 = arith.constant 17 : index
    %c0_30 = arith.constant 0 : index
    %40 = vector.load %arg12[%c0_29, %c17, %c0_30] : memref<10x18x32xf32, #tpu.memory_space<vmem>>, vector<10x1x32xf32>
    tpu.vector_store %arg12[%c0_29, %c17, %c0_30], %39 {strides = array<i32>} : memref<10x18x32xf32, #tpu.memory_space<vmem>>, vector<10x1x32xf32>,
    %c0_31 = arith.constant 0 : index
    %c1 = arith.constant 1 : index
    %c0_32 = arith.constant 0 : index
    %41 = vector.load %arg12[%c0_31, %c1, %c0_32] : memref<10x18x32xf32, #tpu.memory_space<vmem>>, vector<1x16x32xf32>
    tpu.vector_store %arg12[%c0_31, %c1, %c0_32], %23 {strides = array<i32>} : memref<10x18x32xf32, #tpu.memory_space<vmem>>, vector<1x16x32xf32>,
    %c1_33 = arith.constant 1 : index
    %c1_34 = arith.constant 1 : index
    %c0_35 = arith.constant 0 : index
    %42 = vector.load %arg12[%c1_33, %c1_34, %c0_35] : memref<10x18x32xf32, #tpu.memory_space<vmem>>, vector<8x16x32xf32>
    tpu.vector_store %arg12[%c1_33, %c1_34, %c0_35], %10 {strides = array<i32>} : memref<10x18x32xf32, #tpu.memory_space<vmem>>, vector<8x16x32xf32>,
    %c9 = arith.constant 9 : index
    %c1_36 = arith.constant 1 : index
    %c0_37 = arith.constant 0 : index
    %43 = vector.load %arg12[%c9, %c1_36, %c0_37] : memref<10x18x32xf32, #tpu.memory_space<vmem>>, vector<1x16x32xf32>
    tpu.vector_store %arg12[%c9, %c1_36, %c0_37], %36 {strides = array<i32>} : memref<10x18x32xf32, #tpu.memory_space<vmem>>, vector<1x16x32xf32>,
    %c0_38 = arith.constant 0 : index
    %c0_39 = arith.constant 0 : index
    %c0_40 = arith.constant 0 : index
    %44 = vector.load %arg12[%c0_38, %c0_39, %c0_40] : memref<10x18x32xf32, #tpu.memory_space<vmem>>, vector<8x16x32xf32>
    %45 = vector.shape_cast %44 : vector<8x16x32xf32> to vector<128x32xf32>
    %c0_41 = arith.constant 0 : index
    %c0_42 = arith.constant 0 : index
    %46 = vector.load %arg13[%c0_41, %c0_42] : memref<128x288xf32, #tpu.memory_space<vmem>>, vector<128x32xf32>
    tpu.vector_store %arg13[%c0_41, %c0_42], %45 {strides = array<i32>} : memref<128x288xf32, #tpu.memory_space<vmem>>, vector<128x32xf32>,
    %c0_43 = arith.constant 0 : index
    %c1_44 = arith.constant 1 : index
    %c0_45 = arith.constant 0 : index
    %47 = vector.load %arg12[%c0_43, %c1_44, %c0_45] : memref<10x18x32xf32, #tpu.memory_space<vmem>>, vector<8x16x32xf32>
    %48 = vector.shape_cast %47 : vector<8x16x32xf32> to vector<128x32xf32>
    %c0_46 = arith.constant 0 : index
    %c32 = arith.constant 32 : index
    %49 = vector.load %arg13[%c0_46, %c32] : memref<128x288xf32, #tpu.memory_space<vmem>>, vector<128x32xf32>
    tpu.vector_store %arg13[%c0_46, %c32], %48 {strides = array<i32>} : memref<128x288xf32, #tpu.memory_space<vmem>>, vector<128x32xf32>,
    %c0_47 = arith.constant 0 : index
    %c2 = arith.constant 2 : index
    %c0_48 = arith.constant 0 : index
    %50 = vector.load %arg12[%c0_47, %c2, %c0_48] : memref<10x18x32xf32, #tpu.memory_space<vmem>>, vector<8x16x32xf32>
    %51 = vector.shape_cast %50 : vector<8x16x32xf32> to vector<128x32xf32>
    %c0_49 = arith.constant 0 : index
    %c64 = arith.constant 64 : index
    %52 = vector.load %arg13[%c0_49, %c64] : memref<128x288xf32, #tpu.memory_space<vmem>>, vector<128x32xf32>
    tpu.vector_store %arg13[%c0_49, %c64], %51 {strides = array<i32>} : memref<128x288xf32, #tpu.memory_space<vmem>>, vector<128x32xf32>,
    %c1_50 = arith.constant 1 : index
    %c0_51 = arith.constant 0 : index
    %c0_52 = arith.constant 0 : index
    %53 = vector.load %arg12[%c1_50, %c0_51, %c0_52] : memref<10x18x32xf32, #tpu.memory_space<vmem>>, vector<8x16x32xf32>
    %54 = vector.shape_cast %53 : vector<8x16x32xf32> to vector<128x32xf32>
    %c0_53 = arith.constant 0 : index
    %c96 = arith.constant 96 : index
    %55 = vector.load %arg13[%c0_53, %c96] : memref<128x288xf32, #tpu.memory_space<vmem>>, vector<128x32xf32>
    tpu.vector_store %arg13[%c0_53, %c96], %54 {strides = array<i32>} : memref<128x288xf32, #tpu.memory_space<vmem>>, vector<128x32xf32>,
    %c1_54 = arith.constant 1 : index
    %c1_55 = arith.constant 1 : index
    %c0_56 = arith.constant 0 : index
    %56 = vector.load %arg12[%c1_54, %c1_55, %c0_56] : memref<10x18x32xf32, #tpu.memory_space<vmem>>, vector<8x16x32xf32>
    %57 = vector.shape_cast %56 : vector<8x16x32xf32> to vector<128x32xf32>
    %c0_57 = arith.constant 0 : index
    %c128 = arith.constant 128 : index
    %58 = vector.load %arg13[%c0_57, %c128] : memref<128x288xf32, #tpu.memory_space<vmem>>, vector<128x32xf32>
    tpu.vector_store %arg13[%c0_57, %c128], %57 {strides = array<i32>} : memref<128x288xf32, #tpu.memory_space<vmem>>, vector<128x32xf32>,
    %c1_58 = arith.constant 1 : index
    %c2_59 = arith.constant 2 : index
    %c0_60 = arith.constant 0 : index
    %59 = vector.load %arg12[%c1_58, %c2_59, %c0_60] : memref<10x18x32xf32, #tpu.memory_space<vmem>>, vector<8x16x32xf32>
    %60 = vector.shape_cast %59 : vector<8x16x32xf32> to vector<128x32xf32>
    %c0_61 = arith.constant 0 : index
    %c160 = arith.constant 160 : index
    %61 = vector.load %arg13[%c0_61, %c160] : memref<128x288xf32, #tpu.memory_space<vmem>>, vector<128x32xf32>
    tpu.vector_store %arg13[%c0_61, %c160], %60 {strides = array<i32>} : memref<128x288xf32, #tpu.memory_space<vmem>>, vector<128x32xf32>,
    %c2_62 = arith.constant 2 : index
    %c0_63 = arith.constant 0 : index
    %c0_64 = arith.constant 0 : index
    %62 = vector.load %arg12[%c2_62, %c0_63, %c0_64] : memref<10x18x32xf32, #tpu.memory_space<vmem>>, vector<8x16x32xf32>
    %63 = vector.shape_cast %62 : vector<8x16x32xf32> to vector<128x32xf32>
    %c0_65 = arith.constant 0 : index
    %c192 = arith.constant 192 : index
    %64 = vector.load %arg13[%c0_65, %c192] : memref<128x288xf32, #tpu.memory_space<vmem>>, vector<128x32xf32>
    tpu.vector_store %arg13[%c0_65, %c192], %63 {strides = array<i32>} : memref<128x288xf32, #tpu.memory_space<vmem>>, vector<128x32xf32>,
    %c2_66 = arith.constant 2 : index
    %c1_67 = arith.constant 1 : index
    %c0_68 = arith.constant 0 : index
    %65 = vector.load %arg12[%c2_66, %c1_67, %c0_68] : memref<10x18x32xf32, #tpu.memory_space<vmem>>, vector<8x16x32xf32>
    %66 = vector.shape_cast %65 : vector<8x16x32xf32> to vector<128x32xf32>
    %c0_69 = arith.constant 0 : index
    %c224 = arith.constant 224 : index
    %67 = vector.load %arg13[%c0_69, %c224] : memref<128x288xf32, #tpu.memory_space<vmem>>, vector<128x32xf32>
    tpu.vector_store %arg13[%c0_69, %c224], %66 {strides = array<i32>} : memref<128x288xf32, #tpu.memory_space<vmem>>, vector<128x32xf32>,
    %c2_70 = arith.constant 2 : index
    %c2_71 = arith.constant 2 : index
    %c0_72 = arith.constant 0 : index
    %68 = vector.load %arg12[%c2_70, %c2_71, %c0_72] : memref<10x18x32xf32, #tpu.memory_space<vmem>>, vector<8x16x32xf32>
    %69 = vector.shape_cast %68 : vector<8x16x32xf32> to vector<128x32xf32>
    %c0_73 = arith.constant 0 : index
    %c256 = arith.constant 256 : index
    %70 = vector.load %arg13[%c0_73, %c256] : memref<128x288xf32, #tpu.memory_space<vmem>>, vector<128x32xf32>
    tpu.vector_store %arg13[%c0_73, %c256], %69 {strides = array<i32>} : memref<128x288xf32, #tpu.memory_space<vmem>>, vector<128x32xf32>,
    %c0_74 = arith.constant 0 : index
    %c0_75 = arith.constant 0 : index
    %71 = vector.load %arg13[%c0_74, %c0_75] : memref<128x288xf32, #tpu.memory_space<vmem>>, vector<128x288xf32>
    %c0_76 = arith.constant 0 : index
    %c0_77 = arith.constant 0 : index
    %72 = vector.load %arg6[%c0_76, %c0_77] : memref<288x32xf32, #tpu.memory_space<vmem>>, vector<288x32xf32>
    %cst_78 = arith.constant dense<0.000000e+00> : vector<128x32xf32>
    %73 = tpu.matmul %71, %72, %cst_78 {dimension_numbers = #tpu.dot_dimension_numbers<[1], [0], [0], [1], [0, 0, 1, 1], [], []>} : vector<128x288xf32>, vector<288x32xf32>, vector<128x32xf32> -> vector<128x32xf32>
    %c0_79 = arith.constant 0 : index
    %c0_80 = arith.constant 0 : index
    %74 = vector.load %arg9[%c0_79, %c0_80] : memref<1x32xf32, #tpu.memory_space<vmem>>, vector<1x32xf32>
    %75 = vector.broadcast %74 : vector<1x32xf32> to vector<128x32xf32>
    %76 = arith.addf %73, %75 : vector<128x32xf32>
    %cst_81 = arith.constant 0.000000e+00 : f32
    %77 = vector.broadcast %cst_81 : f32 to vector<128x32xf32>
    %78 = arith.maximumf %76, %77 : vector<128x32xf32>
    %c0_82 = arith.constant 0 : index
    %c0_83 = arith.constant 0 : index
    %79 = vector.load %arg7[%c0_82, %c0_83] : memref<32x128xf32, #tpu.memory_space<vmem>>, vector<32x128xf32>
    %cst_84 = arith.constant dense<0.000000e+00> : vector<128x128xf32>
    %80 = tpu.matmul %78, %79, %cst_84 {dimension_numbers = #tpu.dot_dimension_numbers<[1], [0], [0], [1], [0, 0, 1, 1], [], []>} : vector<128x32xf32>, vector<32x128xf32>, vector<128x128xf32> -> vector<128x128xf32>
    %c0_85 = arith.constant 0 : index
    %c0_86 = arith.constant 0 : index
    %81 = vector.load %arg10[%c0_85, %c0_86] : memref<1x128xf32, #tpu.memory_space<vmem>>, vector<1x128xf32>
    %82 = vector.broadcast %81 : vector<1x128xf32> to vector<128x128xf32>
    %83 = arith.addf %80, %82 : vector<128x128xf32>
    %84 = vector.shape_cast %3 : vector<8x16x128xf32> to vector<128x128xf32>
    %85 = arith.addf %83, %84 : vector<128x128xf32>
    %cst_87 = arith.constant 0.000000e+00 : f32
    %86 = vector.broadcast %cst_87 : f32 to vector<128x128xf32>
    %87 = arith.maximumf %85, %86 : vector<128x128xf32>
    %88 = vector.shape_cast %87 : vector<128x128xf32> to vector<1x8x16x128xf32>
    %c0_88 = arith.constant 0 : index
    %c0_89 = arith.constant 0 : index
    %c0_90 = arith.constant 0 : index
    %c0_91 = arith.constant 0 : index
    %89 = vector.load %arg11[%c0_88, %c0_89, %c0_90, %c0_91] : memref<1x8x16x128xf32, #tpu.memory_space<vmem>>, vector<1x8x16x128xf32>
    tpu.vector_store %arg11[%c0_88, %c0_89, %c0_90, %c0_91], %88 {strides = array<i32>} : memref<1x8x16x128xf32, #tpu.memory_space<vmem>>, vector<1x8x16x128xf32>,
    return
  }
  func.func @transform_0(%arg0: i32, %arg1: i32) -> (i32, i32, i32, i32) {
    %c0_i32 = arith.constant 0 : i32
    %c0_i32_0 = arith.constant 0 : i32
    %c0_i32_1 = arith.constant 0 : i32
    return %arg0, %arg1, %c0_i32, %c0_i32_0 : i32, i32, i32, i32
  }
  func.func @transform_1(%arg0: i32, %arg1: i32) -> (i32, i32, i32, i32) {
    %c8_i32 = arith.constant 8 : i32
    %0 = arith.muli %arg1, %c8_i32 : i32
    %c1_i32 = arith.constant 1 : i32
    %1 = arith.subi %0, %c1_i32 : i32
    %c0_i32 = arith.constant 0 : i32
    %2 = arith.maxsi %1, %c0_i32 : i32
    %c0_i32_0 = arith.constant 0 : i32
    %c0_i32_1 = arith.constant 0 : i32
    %c0_i32_2 = arith.constant 0 : i32
    return %arg0, %2, %c0_i32_0, %c0_i32_1 : i32, i32, i32, i32
  }
  func.func @transform_2(%arg0: i32, %arg1: i32) -> (i32, i32, i32, i32) {
    %c8_i32 = arith.constant 8 : i32
    %0 = arith.muli %arg1, %c8_i32 : i32
    %c8_i32_0 = arith.constant 8 : i32
    %1 = arith.addi %0, %c8_i32_0 : i32
    %c15_i32 = arith.constant 15 : i32
    %2 = arith.minsi %1, %c15_i32 : i32
    %c0_i32 = arith.constant 0 : i32
    %c0_i32_1 = arith.constant 0 : i32
    %c0_i32_2 = arith.constant 0 : i32
    return %arg0, %2, %c0_i32, %c0_i32_1 : i32, i32, i32, i32
  }
  func.func @transform_3(%arg0: i32, %arg1: i32) -> (i32, i32) {
    %c0_i32 = arith.constant 0 : i32
    %c0_i32_0 = arith.constant 0 : i32
    %c0_i32_1 = arith.constant 0 : i32
    return %c0_i32, %c0_i32_0 : i32, i32
  }
  func.func @transform_4(%arg0: i32, %arg1: i32) -> (i32, i32) {
    %c0_i32 = arith.constant 0 : i32
    %c0_i32_0 = arith.constant 0 : i32
    %c0_i32_1 = arith.constant 0 : i32
    return %c0_i32, %c0_i32_0 : i32, i32
  }
  func.func @transform_5(%arg0: i32, %arg1: i32) -> (i32, i32) {
    %c0_i32 = arith.constant 0 : i32
    %c0_i32_0 = arith.constant 0 : i32
    %c0_i32_1 = arith.constant 0 : i32
    return %c0_i32, %c0_i32_0 : i32, i32
  }
  func.func @transform_6(%arg0: i32, %arg1: i32) -> (i32, i32) {
    %c0_i32 = arith.constant 0 : i32
    %c0_i32_0 = arith.constant 0 : i32
    %c0_i32_1 = arith.constant 0 : i32
    return %c0_i32, %c0_i32_0 : i32, i32
  }
  func.func @transform_7(%arg0: i32, %arg1: i32) -> (i32, i32) {
    %c0_i32 = arith.constant 0 : i32
    %c0_i32_0 = arith.constant 0 : i32
    %c0_i32_1 = arith.constant 0 : i32
    return %c0_i32, %c0_i32_0 : i32, i32
  }
  func.func @transform_8(%arg0: i32, %arg1: i32) -> (i32, i32) {
    %c0_i32 = arith.constant 0 : i32
    %c0_i32_0 = arith.constant 0 : i32
    %c0_i32_1 = arith.constant 0 : i32
    return %c0_i32, %c0_i32_0 : i32, i32
  }
  func.func @transform_9(%arg0: i32, %arg1: i32) -> (i32, i32, i32, i32) {
    %c0_i32 = arith.constant 0 : i32
    %c0_i32_0 = arith.constant 0 : i32
    %c0_i32_1 = arith.constant 0 : i32
    return %arg0, %arg1, %c0_i32, %c0_i32_0 : i32, i32, i32, i32
  }
}

module attributes {stable_mosaic.version = 11 : i64} {
  func.func @_bottleneck_kernel(%arg0: i32, %arg1: i32, %arg2: memref<1x8x16x128xf32, #tpu.memory_space<vmem>>, %arg3: memref<1x1x16x128xf32, #tpu.memory_space<vmem>>, %arg4: memref<1x1x16x128xf32, #tpu.memory_space<vmem>>, %arg5: memref<128x32xf32, #tpu.memory_space<vmem>>, %arg6: memref<288x32xf32, #tpu.memory_space<vmem>>, %arg7: memref<32x128xf32, #tpu.memory_space<vmem>>, %arg8: memref<1x32xf32, #tpu.memory_space<vmem>>, %arg9: memref<1x32xf32, #tpu.memory_space<vmem>>, %arg10: memref<1x128xf32, #tpu.memory_space<vmem>>, %arg11: memref<1x8x16x128xf32, #tpu.memory_space<vmem>>, %arg12: memref<10x18x32xf32, #tpu.memory_space<vmem>>, %arg13: memref<128x288xf32, #tpu.memory_space<vmem>>) attributes {dimension_semantics = [#tpu.dimension_semantics<parallel>, #tpu.dimension_semantics<parallel>], iteration_bounds = array<i64: 2, 2>, scalar_prefetch = 0 : i64, scratch_operands = 2 : i64, tpu.core_type = #tpu.core_type<tc>, window_params = [{transform_indices = @transform_0, window_bounds = array<i64: 1, 8, 16, 128>}, {transform_indices = @transform_1, window_bounds = array<i64: 1, 1, 16, 128>}, {transform_indices = @transform_2, window_bounds = array<i64: 1, 1, 16, 128>}, {pipeline_mode = #tpu.pipeline_mode<synchronous>, transform_indices = @transform_3, window_bounds = array<i64: 128, 32>}, {pipeline_mode = #tpu.pipeline_mode<synchronous>, transform_indices = @transform_4, window_bounds = array<i64: 288, 32>}, {pipeline_mode = #tpu.pipeline_mode<synchronous>, transform_indices = @transform_5, window_bounds = array<i64: 32, 128>}, {pipeline_mode = #tpu.pipeline_mode<synchronous>, transform_indices = @transform_6, window_bounds = array<i64: 1, 32>}, {pipeline_mode = #tpu.pipeline_mode<synchronous>, transform_indices = @transform_7, window_bounds = array<i64: 1, 32>}, {pipeline_mode = #tpu.pipeline_mode<synchronous>, transform_indices = @transform_8, window_bounds = array<i64: 1, 128>}, {transform_indices = @transform_9, window_bounds = array<i64: 1, 8, 16, 128>}]} {
    %c0 = arith.constant 0 : index
    %c0_0 = arith.constant 0 : index
    %0 = vector.load %arg5[%c0, %c0_0] : memref<128x32xf32, #tpu.memory_space<vmem>>, vector<128x32xf32>
    %c0_1 = arith.constant 0 : index
    %c0_2 = arith.constant 0 : index
    %1 = vector.load %arg8[%c0_1, %c0_2] : memref<1x32xf32, #tpu.memory_space<vmem>>, vector<1x32xf32>
    %c0_3 = arith.constant 0 : index
    %c0_4 = arith.constant 0 : index
    %c0_5 = arith.constant 0 : index
    %c0_6 = arith.constant 0 : index
    %2 = vector.load %arg2[%c0_3, %c0_4, %c0_5, %c0_6] : memref<1x8x16x128xf32, #tpu.memory_space<vmem>>, vector<1x8x16x128xf32>
    %3 = vector.shape_cast %2 : vector<1x8x16x128xf32> to vector<8x16x128xf32>
    %4 = vector.shape_cast %3 : vector<8x16x128xf32> to vector<128x128xf32>
    %cst = arith.constant dense<0.000000e+00> : vector<128x32xf32>
    %5 = tpu.matmul %4, %0, %cst {dimension_numbers = #tpu.dot_dimension_numbers<[1], [0], [0], [1], [0, 0, 1, 1], [], []>} : vector<128x128xf32>, vector<128x32xf32>, vector<128x32xf32> -> vector<128x32xf32>
    %6 = vector.broadcast %1 : vector<1x32xf32> to vector<128x32xf32>
    %7 = arith.addf %5, %6 : vector<128x32xf32>
    %cst_7 = arith.constant 0.000000e+00 : f32
    %8 = vector.broadcast %cst_7 : f32 to vector<128x32xf32>
    %9 = arith.maximumf %7, %8 : vector<128x32xf32>
    %10 = vector.shape_cast %9 : vector<128x32xf32> to vector<8x16x32xf32>
    %c0_8 = arith.constant 0 : index
    %c0_9 = arith.constant 0 : index
    %c0_10 = arith.constant 0 : index
    %c0_11 = arith.constant 0 : index
    %11 = vector.load %arg3[%c0_8, %c0_9, %c0_10, %c0_11] : memref<1x1x16x128xf32, #tpu.memory_space<vmem>>, vector<1x1x16x128xf32>
    %12 = vector.shape_cast %11 : vector<1x1x16x128xf32> to vector<1x16x128xf32>
    %13 = vector.shape_cast %12 : vector<1x16x128xf32> to vector<16x128xf32>
    %cst_12 = arith.constant dense<0.000000e+00> : vector<16x32xf32>
    %14 = tpu.matmul %13, %0, %cst_12 {dimension_numbers = #tpu.dot_dimension_numbers<[1], [0], [0], [1], [0, 0, 1, 1], [], []>} : vector<16x128xf32>, vector<128x32xf32>, vector<16x32xf32> -> vector<16x32xf32>
    %15 = vector.broadcast %1 : vector<1x32xf32> to vector<16x32xf32>
    %16 = arith.addf %14, %15 : vector<16x32xf32>
    %cst_13 = arith.constant 0.000000e+00 : f32
    %17 = vector.broadcast %cst_13 : f32 to vector<16x32xf32>
    %18 = arith.maximumf %16, %17 : vector<16x32xf32>
    %19 = vector.shape_cast %18 : vector<16x32xf32> to vector<1x16x32xf32>
    %c0_i32 = arith.constant 0 : i32
    %20 = arith.cmpi sgt, %arg1, %c0_i32 : i32
    %cst_14 = arith.constant 1.000000e+00 : f32
    %cst_15 = arith.constant 0.000000e+00 : f32
    %21 = arith.select %20, %cst_14, %cst_15 : f32
    %22 = vector.broadcast %21 : f32 to vector<1x16x32xf32>
    %23 = arith.mulf %19, %22 : vector<1x16x32xf32>
    %c0_16 = arith.constant 0 : index
    %c0_17 = arith.constant 0 : index
    %c0_18 = arith.constant 0 : index
    %c0_19 = arith.constant 0 : index
    %24 = vector.load %arg4[%c0_16, %c0_17, %c0_18, %c0_19] : memref<1x1x16x128xf32, #tpu.memory_space<vmem>>, vector<1x1x16x128xf32>
    %25 = vector.shape_cast %24 : vector<1x1x16x128xf32> to vector<1x16x128xf32>
    %26 = vector.shape_cast %25 : vector<1x16x128xf32> to vector<16x128xf32>
    %cst_20 = arith.constant dense<0.000000e+00> : vector<16x32xf32>
    %27 = tpu.matmul %26, %0, %cst_20 {dimension_numbers = #tpu.dot_dimension_numbers<[1], [0], [0], [1], [0, 0, 1, 1], [], []>} : vector<16x128xf32>, vector<128x32xf32>, vector<16x32xf32> -> vector<16x32xf32>
    %28 = vector.broadcast %1 : vector<1x32xf32> to vector<16x32xf32>
    %29 = arith.addf %27, %28 : vector<16x32xf32>
    %cst_21 = arith.constant 0.000000e+00 : f32
    %30 = vector.broadcast %cst_21 : f32 to vector<16x32xf32>
    %31 = arith.maximumf %29, %30 : vector<16x32xf32>
    %32 = vector.shape_cast %31 : vector<16x32xf32> to vector<1x16x32xf32>
    %c1_i32 = arith.constant 1 : i32
    %33 = arith.cmpi slt, %arg1, %c1_i32 : i32
    %cst_22 = arith.constant 1.000000e+00 : f32
    %cst_23 = arith.constant 0.000000e+00 : f32
    %34 = arith.select %33, %cst_22, %cst_23 : f32
    %35 = vector.broadcast %34 : f32 to vector<1x16x32xf32>
    %36 = arith.mulf %32, %35 : vector<1x16x32xf32>
    %cst_24 = arith.constant 0.000000e+00 : f32
    %37 = vector.broadcast %cst_24 : f32 to vector<10x1x32xf32>
    %c0_25 = arith.constant 0 : index
    %c0_26 = arith.constant 0 : index
    %c0_27 = arith.constant 0 : index
    %38 = vector.load %arg12[%c0_25, %c0_26, %c0_27] : memref<10x18x32xf32, #tpu.memory_space<vmem>>, vector<10x1x32xf32>
    tpu.vector_store %arg12[%c0_25, %c0_26, %c0_27], %37 {strides = array<i32>} : memref<10x18x32xf32, #tpu.memory_space<vmem>>, vector<10x1x32xf32>,
    %cst_28 = arith.constant 0.000000e+00 : f32
    %39 = vector.broadcast %cst_28 : f32 to vector<10x1x32xf32>
    %c0_29 = arith.constant 0 : index
    %c17 = arith.constant 17 : index
    %c0_30 = arith.constant 0 : index
    %40 = vector.load %arg12[%c0_29, %c17, %c0_30] : memref<10x18x32xf32, #tpu.memory_space<vmem>>, vector<10x1x32xf32>
    tpu.vector_store %arg12[%c0_29, %c17, %c0_30], %39 {strides = array<i32>} : memref<10x18x32xf32, #tpu.memory_space<vmem>>, vector<10x1x32xf32>,
    %c0_31 = arith.constant 0 : index
    %c1 = arith.constant 1 : index
    %c0_32 = arith.constant 0 : index
    %41 = vector.load %arg12[%c0_31, %c1, %c0_32] : memref<10x18x32xf32, #tpu.memory_space<vmem>>, vector<1x16x32xf32>
    tpu.vector_store %arg12[%c0_31, %c1, %c0_32], %23 {strides = array<i32>} : memref<10x18x32xf32, #tpu.memory_space<vmem>>, vector<1x16x32xf32>,
    %c1_33 = arith.constant 1 : index
    %c1_34 = arith.constant 1 : index
    %c0_35 = arith.constant 0 : index
    %42 = vector.load %arg12[%c1_33, %c1_34, %c0_35] : memref<10x18x32xf32, #tpu.memory_space<vmem>>, vector<8x16x32xf32>
    tpu.vector_store %arg12[%c1_33, %c1_34, %c0_35], %10 {strides = array<i32>} : memref<10x18x32xf32, #tpu.memory_space<vmem>>, vector<8x16x32xf32>,
    %c9 = arith.constant 9 : index
    %c1_36 = arith.constant 1 : index
    %c0_37 = arith.constant 0 : index
    %43 = vector.load %arg12[%c9, %c1_36, %c0_37] : memref<10x18x32xf32, #tpu.memory_space<vmem>>, vector<1x16x32xf32>
    tpu.vector_store %arg12[%c9, %c1_36, %c0_37], %36 {strides = array<i32>} : memref<10x18x32xf32, #tpu.memory_space<vmem>>, vector<1x16x32xf32>,
    %c0_38 = arith.constant 0 : index
    %c0_39 = arith.constant 0 : index
    %c0_40 = arith.constant 0 : index
    %44 = vector.load %arg12[%c0_38, %c0_39, %c0_40] : memref<10x18x32xf32, #tpu.memory_space<vmem>>, vector<8x16x32xf32>
    %45 = vector.shape_cast %44 : vector<8x16x32xf32> to vector<128x32xf32>
    %c0_41 = arith.constant 0 : index
    %c0_42 = arith.constant 0 : index
    %46 = vector.load %arg13[%c0_41, %c0_42] : memref<128x288xf32, #tpu.memory_space<vmem>>, vector<128x32xf32>
    tpu.vector_store %arg13[%c0_41, %c0_42], %45 {strides = array<i32>} : memref<128x288xf32, #tpu.memory_space<vmem>>, vector<128x32xf32>,
    %c0_43 = arith.constant 0 : index
    %c1_44 = arith.constant 1 : index
    %c0_45 = arith.constant 0 : index
    %47 = vector.load %arg12[%c0_43, %c1_44, %c0_45] : memref<10x18x32xf32, #tpu.memory_space<vmem>>, vector<8x16x32xf32>
    %48 = vector.shape_cast %47 : vector<8x16x32xf32> to vector<128x32xf32>
    %c0_46 = arith.constant 0 : index
    %c32 = arith.constant 32 : index
    %49 = vector.load %arg13[%c0_46, %c32] : memref<128x288xf32, #tpu.memory_space<vmem>>, vector<128x32xf32>
    tpu.vector_store %arg13[%c0_46, %c32], %48 {strides = array<i32>} : memref<128x288xf32, #tpu.memory_space<vmem>>, vector<128x32xf32>,
    %c0_47 = arith.constant 0 : index
    %c2 = arith.constant 2 : index
    %c0_48 = arith.constant 0 : index
    %50 = vector.load %arg12[%c0_47, %c2, %c0_48] : memref<10x18x32xf32, #tpu.memory_space<vmem>>, vector<8x16x32xf32>
    %51 = vector.shape_cast %50 : vector<8x16x32xf32> to vector<128x32xf32>
    %c0_49 = arith.constant 0 : index
    %c64 = arith.constant 64 : index
    %52 = vector.load %arg13[%c0_49, %c64] : memref<128x288xf32, #tpu.memory_space<vmem>>, vector<128x32xf32>
    tpu.vector_store %arg13[%c0_49, %c64], %51 {strides = array<i32>} : memref<128x288xf32, #tpu.memory_space<vmem>>, vector<128x32xf32>,
    %c1_50 = arith.constant 1 : index
    %c0_51 = arith.constant 0 : index
    %c0_52 = arith.constant 0 : index
    %53 = vector.load %arg12[%c1_50, %c0_51, %c0_52] : memref<10x18x32xf32, #tpu.memory_space<vmem>>, vector<8x16x32xf32>
    %54 = vector.shape_cast %53 : vector<8x16x32xf32> to vector<128x32xf32>
    %c0_53 = arith.constant 0 : index
    %c96 = arith.constant 96 : index
    %55 = vector.load %arg13[%c0_53, %c96] : memref<128x288xf32, #tpu.memory_space<vmem>>, vector<128x32xf32>
    tpu.vector_store %arg13[%c0_53, %c96], %54 {strides = array<i32>} : memref<128x288xf32, #tpu.memory_space<vmem>>, vector<128x32xf32>,
    %c1_54 = arith.constant 1 : index
    %c1_55 = arith.constant 1 : index
    %c0_56 = arith.constant 0 : index
    %56 = vector.load %arg12[%c1_54, %c1_55, %c0_56] : memref<10x18x32xf32, #tpu.memory_space<vmem>>, vector<8x16x32xf32>
    %57 = vector.shape_cast %56 : vector<8x16x32xf32> to vector<128x32xf32>
    %c0_57 = arith.constant 0 : index
    %c128 = arith.constant 128 : index
    %58 = vector.load %arg13[%c0_57, %c128] : memref<128x288xf32, #tpu.memory_space<vmem>>, vector<128x32xf32>
    tpu.vector_store %arg13[%c0_57, %c128], %57 {strides = array<i32>} : memref<128x288xf32, #tpu.memory_space<vmem>>, vector<128x32xf32>,
    %c1_58 = arith.constant 1 : index
    %c2_59 = arith.constant 2 : index
    %c0_60 = arith.constant 0 : index
    %59 = vector.load %arg12[%c1_58, %c2_59, %c0_60] : memref<10x18x32xf32, #tpu.memory_space<vmem>>, vector<8x16x32xf32>
    %60 = vector.shape_cast %59 : vector<8x16x32xf32> to vector<128x32xf32>
    %c0_61 = arith.constant 0 : index
    %c160 = arith.constant 160 : index
    %61 = vector.load %arg13[%c0_61, %c160] : memref<128x288xf32, #tpu.memory_space<vmem>>, vector<128x32xf32>
    tpu.vector_store %arg13[%c0_61, %c160], %60 {strides = array<i32>} : memref<128x288xf32, #tpu.memory_space<vmem>>, vector<128x32xf32>,
    %c2_62 = arith.constant 2 : index
    %c0_63 = arith.constant 0 : index
    %c0_64 = arith.constant 0 : index
    %62 = vector.load %arg12[%c2_62, %c0_63, %c0_64] : memref<10x18x32xf32, #tpu.memory_space<vmem>>, vector<8x16x32xf32>
    %63 = vector.shape_cast %62 : vector<8x16x32xf32> to vector<128x32xf32>
    %c0_65 = arith.constant 0 : index
    %c192 = arith.constant 192 : index
    %64 = vector.load %arg13[%c0_65, %c192] : memref<128x288xf32, #tpu.memory_space<vmem>>, vector<128x32xf32>
    tpu.vector_store %arg13[%c0_65, %c192], %63 {strides = array<i32>} : memref<128x288xf32, #tpu.memory_space<vmem>>, vector<128x32xf32>,
    %c2_66 = arith.constant 2 : index
    %c1_67 = arith.constant 1 : index
    %c0_68 = arith.constant 0 : index
    %65 = vector.load %arg12[%c2_66, %c1_67, %c0_68] : memref<10x18x32xf32, #tpu.memory_space<vmem>>, vector<8x16x32xf32>
    %66 = vector.shape_cast %65 : vector<8x16x32xf32> to vector<128x32xf32>
    %c0_69 = arith.constant 0 : index
    %c224 = arith.constant 224 : index
    %67 = vector.load %arg13[%c0_69, %c224] : memref<128x288xf32, #tpu.memory_space<vmem>>, vector<128x32xf32>
    tpu.vector_store %arg13[%c0_69, %c224], %66 {strides = array<i32>} : memref<128x288xf32, #tpu.memory_space<vmem>>, vector<128x32xf32>,
    %c2_70 = arith.constant 2 : index
    %c2_71 = arith.constant 2 : index
    %c0_72 = arith.constant 0 : index
    %68 = vector.load %arg12[%c2_70, %c2_71, %c0_72] : memref<10x18x32xf32, #tpu.memory_space<vmem>>, vector<8x16x32xf32>
    %69 = vector.shape_cast %68 : vector<8x16x32xf32> to vector<128x32xf32>
    %c0_73 = arith.constant 0 : index
    %c256 = arith.constant 256 : index
    %70 = vector.load %arg13[%c0_73, %c256] : memref<128x288xf32, #tpu.memory_space<vmem>>, vector<128x32xf32>
    tpu.vector_store %arg13[%c0_73, %c256], %69 {strides = array<i32>} : memref<128x288xf32, #tpu.memory_space<vmem>>, vector<128x32xf32>,
    %c0_74 = arith.constant 0 : index
    %c0_75 = arith.constant 0 : index
    %71 = vector.load %arg13[%c0_74, %c0_75] : memref<128x288xf32, #tpu.memory_space<vmem>>, vector<128x288xf32>
    %c0_76 = arith.constant 0 : index
    %c0_77 = arith.constant 0 : index
    %72 = vector.load %arg6[%c0_76, %c0_77] : memref<288x32xf32, #tpu.memory_space<vmem>>, vector<288x32xf32>
    %cst_78 = arith.constant dense<0.000000e+00> : vector<128x32xf32>
    %73 = tpu.matmul %71, %72, %cst_78 {dimension_numbers = #tpu.dot_dimension_numbers<[1], [0], [0], [1], [0, 0, 1, 1], [], []>} : vector<128x288xf32>, vector<288x32xf32>, vector<128x32xf32> -> vector<128x32xf32>
    %c0_79 = arith.constant 0 : index
    %c0_80 = arith.constant 0 : index
    %74 = vector.load %arg9[%c0_79, %c0_80] : memref<1x32xf32, #tpu.memory_space<vmem>>, vector<1x32xf32>
    %75 = vector.broadcast %74 : vector<1x32xf32> to vector<128x32xf32>
    %76 = arith.addf %73, %75 : vector<128x32xf32>
    %cst_81 = arith.constant 0.000000e+00 : f32
    %77 = vector.broadcast %cst_81 : f32 to vector<128x32xf32>
    %78 = arith.maximumf %76, %77 : vector<128x32xf32>
    %c0_82 = arith.constant 0 : index
    %c0_83 = arith.constant 0 : index
    %79 = vector.load %arg7[%c0_82, %c0_83] : memref<32x128xf32, #tpu.memory_space<vmem>>, vector<32x128xf32>
    %cst_84 = arith.constant dense<0.000000e+00> : vector<128x128xf32>
    %80 = tpu.matmul %78, %79, %cst_84 {dimension_numbers = #tpu.dot_dimension_numbers<[1], [0], [0], [1], [0, 0, 1, 1], [], []>} : vector<128x32xf32>, vector<32x128xf32>, vector<128x128xf32> -> vector<128x128xf32>
    %c0_85 = arith.constant 0 : index
    %c0_86 = arith.constant 0 : index
    %81 = vector.load %arg10[%c0_85, %c0_86] : memref<1x128xf32, #tpu.memory_space<vmem>>, vector<1x128xf32>
    %82 = vector.broadcast %81 : vector<1x128xf32> to vector<128x128xf32>
    %83 = arith.addf %80, %82 : vector<128x128xf32>
    %84 = vector.shape_cast %3 : vector<8x16x128xf32> to vector<128x128xf32>
    %85 = arith.addf %83, %84 : vector<128x128xf32>
    %cst_87 = arith.constant 0.000000e+00 : f32
    %86 = vector.broadcast %cst_87 : f32 to vector<128x128xf32>
    %87 = arith.maximumf %85, %86 : vector<128x128xf32>
    %88 = vector.shape_cast %87 : vector<128x128xf32> to vector<1x8x16x128xf32>
    %c0_88 = arith.constant 0 : index
    %c0_89 = arith.constant 0 : index
    %c0_90 = arith.constant 0 : index
    %c0_91 = arith.constant 0 : index
    %89 = vector.load %arg11[%c0_88, %c0_89, %c0_90, %c0_91] : memref<1x8x16x128xf32, #tpu.memory_space<vmem>>, vector<1x8x16x128xf32>
    tpu.vector_store %arg11[%c0_88, %c0_89, %c0_90, %c0_91], %88 {strides = array<i32>} : memref<1x8x16x128xf32, #tpu.memory_space<vmem>>, vector<1x8x16x128xf32>,
    return
  }
  func.func @transform_0(%arg0: i32, %arg1: i32) -> (i32, i32, i32, i32) {
    %c0_i32 = arith.constant 0 : i32
    %c0_i32_0 = arith.constant 0 : i32
    %c0_i32_1 = arith.constant 0 : i32
    return %arg0, %arg1, %c0_i32, %c0_i32_0 : i32, i32, i32, i32
  }
  func.func @transform_1(%arg0: i32, %arg1: i32) -> (i32, i32, i32, i32) {
    %c8_i32 = arith.constant 8 : i32
    %0 = arith.muli %arg1, %c8_i32 : i32
    %c1_i32 = arith.constant 1 : i32
    %1 = arith.subi %0, %c1_i32 : i32
    %c0_i32 = arith.constant 0 : i32
    %2 = arith.maxsi %1, %c0_i32 : i32
    %c0_i32_0 = arith.constant 0 : i32
    %c0_i32_1 = arith.constant 0 : i32
    %c0_i32_2 = arith.constant 0 : i32
    return %arg0, %2, %c0_i32_0, %c0_i32_1 : i32, i32, i32, i32
  }
  func.func @transform_2(%arg0: i32, %arg1: i32) -> (i32, i32, i32, i32) {
    %c8_i32 = arith.constant 8 : i32
    %0 = arith.muli %arg1, %c8_i32 : i32
    %c8_i32_0 = arith.constant 8 : i32
    %1 = arith.addi %0, %c8_i32_0 : i32
    %c15_i32 = arith.constant 15 : i32
    %2 = arith.minsi %1, %c15_i32 : i32
    %c0_i32 = arith.constant 0 : i32
    %c0_i32_1 = arith.constant 0 : i32
    %c0_i32_2 = arith.constant 0 : i32
    return %arg0, %2, %c0_i32, %c0_i32_1 : i32, i32, i32, i32
  }
  func.func @transform_3(%arg0: i32, %arg1: i32) -> (i32, i32) {
    %c0_i32 = arith.constant 0 : i32
    %c0_i32_0 = arith.constant 0 : i32
    %c0_i32_1 = arith.constant 0 : i32
    return %c0_i32, %c0_i32_0 : i32, i32
  }
  func.func @transform_4(%arg0: i32, %arg1: i32) -> (i32, i32) {
    %c0_i32 = arith.constant 0 : i32
    %c0_i32_0 = arith.constant 0 : i32
    %c0_i32_1 = arith.constant 0 : i32
    return %c0_i32, %c0_i32_0 : i32, i32
  }
  func.func @transform_5(%arg0: i32, %arg1: i32) -> (i32, i32) {
    %c0_i32 = arith.constant 0 : i32
    %c0_i32_0 = arith.constant 0 : i32
    %c0_i32_1 = arith.constant 0 : i32
    return %c0_i32, %c0_i32_0 : i32, i32
  }
  func.func @transform_6(%arg0: i32, %arg1: i32) -> (i32, i32) {
    %c0_i32 = arith.constant 0 : i32
    %c0_i32_0 = arith.constant 0 : i32
    %c0_i32_1 = arith.constant 0 : i32
    return %c0_i32, %c0_i32_0 : i32, i32
  }
  func.func @transform_7(%arg0: i32, %arg1: i32) -> (i32, i32) {
    %c0_i32 = arith.constant 0 : i32
    %c0_i32_0 = arith.constant 0 : i32
    %c0_i32_1 = arith.constant 0 : i32
    return %c0_i32, %c0_i32_0 : i32, i32
  }
  func.func @transform_8(%arg0: i32, %arg1: i32) -> (i32, i32) {
    %c0_i32 = arith.constant 0 : i32
    %c0_i32_0 = arith.constant 0 : i32
    %c0_i32_1 = arith.constant 0 : i32
    return %c0_i32, %c0_i32_0 : i32, i32
  }
  func.func @transform_9(%arg0: i32, %arg1: i32) -> (i32, i32, i32, i32) {
    %c0_i32 = arith.constant 0 : i32
    %c0_i32_0 = arith.constant 0 : i32
    %c0_i32_1 = arith.constant 0 : i32
    return %arg0, %arg1, %c0_i32, %c0_i32_0 : i32, i32, i32, i32
  }
}

</mosaic_0001>

<llo_original>
// kernel: tpu_custom_call.1
$region0: #{tpu_custom_call.1}
  #allocation0 [shape = 'u32[]', space=smem, size = 0x4, offset = 0x4, fixed_abs, tag = 'smem constant byte address 0x4 - core index']
  #allocation1 [shape = 'u32[144,128]{1,0:T(1,128)}', space=vmem, size = 0x12000, scoped, tag = 'internal scratch']
  #allocation2 [shape = 'f32[10,18,32]{2,1,0:T(8,128)}', space=vmem, size = 0x1e000, scoped, tag = 'scratch operand']
  #allocation3 [shape = 'f32[128,288]{1,0:T(8,128)}', space=vmem, size = 0x30000, scoped, tag = 'scratch operand']
  %s0 = inlined_call_operand.vmem [shape: f32[2,16,16,128], index: 0, kind: input, shape index: {}]
  %s1 = inlined_call_operand.hbm [shape: f32[2,16,16,128], index: 1, kind: input, shape index: {}]
  %s2 = inlined_call_operand.hbm [shape: f32[2,16,16,128], index: 2, kind: input, shape index: {}]
  %s3 = inlined_call_operand.vmem [shape: f32[128,32], index: 3, kind: input, shape index: {}]
  %s4 = inlined_call_operand.vmem [shape: f32[288,32], index: 4, kind: input, shape index: {}]
  %s5 = inlined_call_operand.vmem [shape: f32[32,128], index: 5, kind: input, shape index: {}]
  %s6 = inlined_call_operand.vmem [shape: f32[1,32], index: 6, kind: input, shape index: {}]
  %s7 = inlined_call_operand.vmem [shape: f32[1,32], index: 7, kind: input, shape index: {}]
  %s8 = inlined_call_operand.vmem [shape: f32[1,128], index: 8, kind: input, shape index: {}]
  %s9 = inlined_call_operand.hbm [shape: f32[2,16,16,128], index: 9, kind: output, shape index: {}]
  %s10 = sld [smem:[#allocation0]]
  $region77: #{tpu_custom_call.1} parent=0
    _
  %s12 = ssub.s32 1, %s10
  %s13 = scalar_select 0, %s12, %s10
  $region1: #{tpu_custom_call.1} parent=0
    #allocation4 [shape = 'u8[16384]{0}', space=vmem, size = 0x4000, scoped, tag = 'input window, operand 1']
    #allocation5 [shape = 's32[2]{0}', space=sflag, size = 0x8, scoped, tag = 'scoped memory for tpu_custom_call.1']
    #allocation6 [shape = 's32[2]{0}', space=sflag, size = 0x8, scoped, tag = 'scoped memory for tpu_custom_call.1']
    #allocation7 [shape = 'u8[16384]{0}', space=vmem, size = 0x4000, scoped, tag = 'input window, operand 2']
    #allocation8 [shape = 's32[2]{0}', space=sflag, size = 0x8, scoped, tag = 'scoped memory for tpu_custom_call.1']
    #allocation9 [shape = 'u8[131072]{0}', space=vmem, size = 0x20000, scoped, tag = 'output window, operand 0']
    %14 = vsyncpa [#allocation5], 0
    %s15 = scalar_lea.sflag [#allocation5], 1
    %16 = vsyncpa %s15, 0
    %17 = vsyncpa [#allocation8], 0
    %s18 = scalar_lea.sflag [#allocation8], 1
    %19 = vsyncpa %s18, 0
    %20 = vsyncpa [#allocation6], 0
    %s21 = scalar_lea.sflag [#allocation6], 1
    %22 = vsyncpa %s21, 0
    loop: start=0, step=1, limit=6
    $region2: #{tpu_custom_call.1} parent=1 // loop_pre_header
      _
    $region3: #{tpu_custom_call.1} parent=1 // loop_header
      %s24 = sphi 0, %s28
      %p25 = scmp.ge.s32.totalorder %s24, 6
      %s31 = sphi 0, %s43
      %s32 = sphi 0, %s39
      %s33 = sphi 0, %s31
      %s34 = sphi 0, %s32
      %s35 = sphi 0, %s33
      %s36 = sphi 0, %s34
      %s48 = sphi 0, %s50
      %s51 = sphi 0, %s48
      %s52 = sphi 0, %s51
      %s68 = sphi 0, %s52
      %s84 = sphi 0, %s86
      %s87 = sphi 0, %s84
      %s88 = sphi 0, %s87
      %s104 = sphi 0, %s88
      %s120 = sphi 0, %s122
      %s123 = sphi 0, %s120
      %s124 = sphi 0, %s123
      %s140 = sphi 0, %s124
      %s144 = sphi 0, %s144
      %s146 = sphi 0, %s144
      %s147 = sphi 0, %s146
      %s161 = sphi 0, %s147
      %s165 = sphi 0, %s165
      %s167 = sphi 0, %s165
      %s168 = sphi 0, %s167
      %s182 = sphi 0, %s168
      %s186 = sphi 0, %s186
      %s188 = sphi 0, %s186
      %s189 = sphi 0, %s188
      %s203 = sphi 0, %s189
      %s207 = sphi 0, %s207
      %s209 = sphi 0, %s207
      %s210 = sphi 0, %s209
      %s224 = sphi 0, %s210
      %s228 = sphi 0, %s228
      %s230 = sphi 0, %s228
      %s231 = sphi 0, %s230
      %s245 = sphi 0, %s231
      %s249 = sphi 0, %s249
      %s251 = sphi 0, %s249
      %s252 = sphi 0, %s251
      %s266 = sphi 0, %s252
      %s274 = sphi 0, %s276
      %s277 = sphi 0, %s274
      %s278 = sphi 0, %s277
      %s294 = sphi 0, %s278
    $region4: #{tpu_custom_call.1} parent=1 // loop_header_branch
      %27 = sbr.rel (%p25) target = $region8
    $region5: #{tpu_custom_call.1} parent=1 // loop_body
      %s29 = ssub.s32 %s24, 1
      %s30 = ssub.s32 %s24, 2
      %s37 = sadd.s32 1, %s32
      %p38 = scmp.ge.s32.totalorder %s37, 2
      %s39 = scalar_select %p38, 0, %s37
      %s40 = sadd.s32 1, %s31
      %s41 = scalar_select %p38, %s40, %s31
      %p42 = scmp.ge.s32.totalorder %s41, 2
      %s43 = scalar_select %p42, 0, %s41
      %s44 = ssub.s32 %s31, %s43
      %s45 = ssub.s32 %s32, %s39
      %s46 = sor.u32 %s44, %s45
      %p47 = scmp.eq.s32.totalorder %s46, 0
      %s49 = sadd.s32 %s48, 1
      %s50 = scalar_select %p47, %s48, %s49
      %p53 = pneg %p47
      %p54 = scmp.eq.s32.totalorder %s24, 3
      %p55 = por %p53, %p54
      %p56 = scmp.ne.s32.totalorder %s48, %s51
      %p57 = scmp.eq.s32.totalorder %s24, 0
      %p58 = por %p56, %p57
      %p59 = scmp.ne.s32.totalorder %s48, %s51
      %p60 = scmp.eq.s32.totalorder %s29, 3
      %p61 = por %p59, %p60
      %p62 = scmp.ne.s32.totalorder %s51, %s52
      %p63 = scmp.eq.s32.totalorder %s29, 0
      %p64 = por %p62, %p63
      %p65 = scmp.ne.s32.totalorder %s51, %s52
      %p66 = scmp.eq.s32.totalorder %s30, 3
      %p67 = por %p65, %p66
      %p69 = scmp.ne.s32.totalorder %s52, %s68
      %p70 = scmp.eq.s32.totalorder %s30, 0
      %p71 = por %p69, %p70
      %s72 = smul.u32 %s32, 8
      %s73 = ssub.s32 %s72, 1
      %p74 = scmp.gt.s32.totalorder %s73, 0
      %s75 = scalar_select %p74, %s73, 0
      %s76 = smul.u32 %s39, 8
      %s77 = ssub.s32 %s76, 1
      %p78 = scmp.gt.s32.totalorder %s77, 0
      %s79 = scalar_select %p78, %s77, 0
      %s80 = ssub.s32 %s31, %s43
      %s81 = ssub.s32 %s75, %s79
      %s82 = sor.u32 %s80, %s81
      %p83 = scmp.eq.s32.totalorder %s82, 0
      %s85 = sadd.s32 %s84, 1
      %s86 = scalar_select %p83, %s84, %s85
      %p89 = pneg %p83
      %p90 = scmp.eq.s32.totalorder %s24, 3
      %p91 = por %p89, %p90
      %p92 = scmp.ne.s32.totalorder %s84, %s87
      %p93 = scmp.eq.s32.totalorder %s24, 0
      %p94 = por %p92, %p93
      %p95 = scmp.ne.s32.totalorder %s84, %s87
      %p96 = scmp.eq.s32.totalorder %s29, 3
      %p97 = por %p95, %p96
      %p98 = scmp.ne.s32.totalorder %s87, %s88
      %p99 = scmp.eq.s32.totalorder %s29, 0
      %p100 = por %p98, %p99
      %p101 = scmp.ne.s32.totalorder %s87, %s88
      %p102 = scmp.eq.s32.totalorder %s30, 3
      %p103 = por %p101, %p102
      %p105 = scmp.ne.s32.totalorder %s88, %s104
      %p106 = scmp.eq.s32.totalorder %s30, 0
      %p107 = por %p105, %p106
      %s108 = smul.u32 %s32, 8
      %s109 = sadd.s32 %s108, 8
      %p110 = scmp.lt.s32.totalorder %s109, 15
      %s111 = scalar_select %p110, %s109, 15
      %s112 = smul.u32 %s39, 8
      %s113 = sadd.s32 %s112, 8
      %p114 = scmp.lt.s32.totalorder %s113, 15
      %s115 = scalar_select %p114, %s113, 15
      %s116 = ssub.s32 %s31, %s43
      %s117 = ssub.s32 %s111, %s115
      %s118 = sor.u32 %s116, %s117
      %p119 = scmp.eq.s32.totalorder %s118, 0
      %s121 = sadd.s32 %s120, 1
      %s122 = scalar_select %p119, %s120, %s121
      %p125 = pneg %p119
      %p126 = scmp.eq.s32.totalorder %s24, 3
      %p127 = por %p125, %p126
      %p128 = scmp.ne.s32.totalorder %s120, %s123
      %p129 = scmp.eq.s32.totalorder %s24, 0
      %p130 = por %p128, %p129
      %p131 = scmp.ne.s32.totalorder %s120, %s123
      %p132 = scmp.eq.s32.totalorder %s29, 3
      %p133 = por %p131, %p132
      %p134 = scmp.ne.s32.totalorder %s123, %s124
      %p135 = scmp.eq.s32.totalorder %s29, 0
      %p136 = por %p134, %p135
      %p137 = scmp.ne.s32.totalorder %s123, %s124
      %p138 = scmp.eq.s32.totalorder %s30, 3
      %p139 = por %p137, %p138
      %p141 = scmp.ne.s32.totalorder %s124, %s140
      %p142 = scmp.eq.s32.totalorder %s30, 0
      %p143 = por %p141, %p142
      %s145 = sadd.s32 %s144, 1
      %p148 = scmp.eq.s32.totalorder %s24, 3
      %p149 = scmp.ne.s32.totalorder %s144, %s146
      %p150 = scmp.eq.s32.totalorder %s24, 0
      %p151 = por %p149, %p150
      %p152 = scmp.ne.s32.totalorder %s144, %s146
      %p153 = scmp.eq.s32.totalorder %s29, 3
      %p154 = por %p152, %p153
      %p155 = scmp.ne.s32.totalorder %s146, %s147
      %p156 = scmp.eq.s32.totalorder %s29, 0
      %p157 = por %p155, %p156
      %p158 = scmp.ne.s32.totalorder %s146, %s147
      %p159 = scmp.eq.s32.totalorder %s30, 3
      %p160 = por %p158, %p159
      %p162 = scmp.ne.s32.totalorder %s147, %s161
      %p163 = scmp.eq.s32.totalorder %s30, 0
      %p164 = por %p162, %p163
      %s166 = sadd.s32 %s165, 1
      %p169 = scmp.eq.s32.totalorder %s24, 3
      %p170 = scmp.ne.s32.totalorder %s165, %s167
      %p171 = scmp.eq.s32.totalorder %s24, 0
      %p172 = por %p170, %p171
      %p173 = scmp.ne.s32.totalorder %s165, %s167
      %p174 = scmp.eq.s32.totalorder %s29, 3
      %p175 = por %p173, %p174
      %p176 = scmp.ne.s32.totalorder %s167, %s168
      %p177 = scmp.eq.s32.totalorder %s29, 0
      %p178 = por %p176, %p177
      %p179 = scmp.ne.s32.totalorder %s167, %s168
      %p180 = scmp.eq.s32.totalorder %s30, 3
      %p181 = por %p179, %p180
      %p183 = scmp.ne.s32.totalorder %s168, %s182
      %p184 = scmp.eq.s32.totalorder %s30, 0
      %p185 = por %p183, %p184
      %s187 = sadd.s32 %s186, 1
      %p190 = scmp.eq.s32.totalorder %s24, 3
      %p191 = scmp.ne.s32.totalorder %s186, %s188
      %p192 = scmp.eq.s32.totalorder %s24, 0
      %p193 = por %p191, %p192
      %p194 = scmp.ne.s32.totalorder %s186, %s188
      %p195 = scmp.eq.s32.totalorder %s29, 3
      %p196 = por %p194, %p195
      %p197 = scmp.ne.s32.totalorder %s188, %s189
      %p198 = scmp.eq.s32.totalorder %s29, 0
      %p199 = por %p197, %p198
      %p200 = scmp.ne.s32.totalorder %s188, %s189
      %p201 = scmp.eq.s32.totalorder %s30, 3
      %p202 = por %p200, %p201
      %p204 = scmp.ne.s32.totalorder %s189, %s203
      %p205 = scmp.eq.s32.totalorder %s30, 0
      %p206 = por %p204, %p205
      %s208 = sadd.s32 %s207, 1
      %p211 = scmp.eq.s32.totalorder %s24, 3
      %p212 = scmp.ne.s32.totalorder %s207, %s209
      %p213 = scmp.eq.s32.totalorder %s24, 0
      %p214 = por %p212, %p213
      %p215 = scmp.ne.s32.totalorder %s207, %s209
      %p216 = scmp.eq.s32.totalorder %s29, 3
      %p217 = por %p215, %p216
      %p218 = scmp.ne.s32.totalorder %s209, %s210
      %p219 = scmp.eq.s32.totalorder %s29, 0
      %p220 = por %p218, %p219
      %p221 = scmp.ne.s32.totalorder %s209, %s210
      %p222 = scmp.eq.s32.totalorder %s30, 3
      %p223 = por %p221, %p222
      %p225 = scmp.ne.s32.totalorder %s210, %s224
      %p226 = scmp.eq.s32.totalorder %s30, 0
      %p227 = por %p225, %p226
      %s229 = sadd.s32 %s228, 1
      %p232 = scmp.eq.s32.totalorder %s24, 3
      %p233 = scmp.ne.s32.totalorder %s228, %s230
      %p234 = scmp.eq.s32.totalorder %s24, 0
      %p235 = por %p233, %p234
      %p236 = scmp.ne.s32.totalorder %s228, %s230
      %p237 = scmp.eq.s32.totalorder %s29, 3
      %p238 = por %p236, %p237
      %p239 = scmp.ne.s32.totalorder %s230, %s231
      %p240 = scmp.eq.s32.totalorder %s29, 0
      %p241 = por %p239, %p240
      %p242 = scmp.ne.s32.totalorder %s230, %s231
      %p243 = scmp.eq.s32.totalorder %s30, 3
      %p244 = por %p242, %p243
      %p246 = scmp.ne.s32.totalorder %s231, %s245
      %p247 = scmp.eq.s32.totalorder %s30, 0
      %p248 = por %p246, %p247
      %s250 = sadd.s32 %s249, 1
      %p253 = scmp.eq.s32.totalorder %s24, 3
      %p254 = scmp.ne.s32.totalorder %s249, %s251
      %p255 = scmp.eq.s32.totalorder %s24, 0
      %p256 = por %p254, %p255
      %p257 = scmp.ne.s32.totalorder %s249, %s251
      %p258 = scmp.eq.s32.totalorder %s29, 3
      %p259 = por %p257, %p258
      %p260 = scmp.ne.s32.totalorder %s251, %s252
      %p261 = scmp.eq.s32.totalorder %s29, 0
      %p262 = por %p260, %p261
      %p263 = scmp.ne.s32.totalorder %s251, %s252
      %p264 = scmp.eq.s32.totalorder %s30, 3
      %p265 = por %p263, %p264
      %p267 = scmp.ne.s32.totalorder %s252, %s266
      %p268 = scmp.eq.s32.totalorder %s30, 0
      %p269 = por %p267, %p268
      %s270 = ssub.s32 %s31, %s43
      %s271 = ssub.s32 %s32, %s39
      %s272 = sor.u32 %s270, %s271
      %p273 = scmp.eq.s32.totalorder %s272, 0
      %s275 = sadd.s32 %s274, 1
      %s276 = scalar_select %p273, %s274, %s275
      %p279 = pneg %p273
      %p280 = scmp.eq.s32.totalorder %s24, 3
      %p281 = por %p279, %p280
      %p282 = scmp.ne.s32.totalorder %s274, %s277
      %p283 = scmp.eq.s32.totalorder %s24, 0
      %p284 = por %p282, %p283
      %p285 = scmp.ne.s32.totalorder %s274, %s277
      %p286 = scmp.eq.s32.totalorder %s29, 3
      %p287 = por %p285, %p286
      %p288 = scmp.ne.s32.totalorder %s277, %s278
      %p289 = scmp.eq.s32.totalorder %s29, 0
      %p290 = por %p288, %p289
      %p291 = scmp.ne.s32.totalorder %s277, %s278
      %p292 = scmp.eq.s32.totalorder %s30, 3
      %p293 = por %p291, %p292
      %p295 = scmp.ne.s32.totalorder %s278, %s294
      %p296 = scmp.eq.s32.totalorder %s30, 0
      %p297 = por %p295, %p296
      %p298 = scmp.le.s32.totalorder 1, %s24
      %p299 = scmp.lt.s32.totalorder %s24, 5
      %p300 = pnand %p298, %p299
      %p301 = pneg %p300
      // Predicated region
      $region9: #{tpu_custom_call.1} parent=5 // pred_check
        _
      $region10: #{tpu_custom_call.1} parent=5 // pred_check_branch
        %303 = sbr.rel (%p300) target = $region12
      $region11: #{tpu_custom_call.1} parent=5 // pred_region
        %s304 = ssub.s32 %s24, 1
        // Predicated region
        $region13: #{tpu_custom_call.1} parent=11 // pred_check
          %p305 = pneg %p157
        $region14: #{tpu_custom_call.1} parent=11 // pred_check_branch
          %307 = sbr.rel (%p305) target = $region16
        $region15: #{tpu_custom_call.1} parent=11 // pred_region
          _
        $region16: #{tpu_custom_call.1} parent=11 // pred_fallthru
          _
        // Predicated region
        $region17: #{tpu_custom_call.1} parent=11 // pred_check
          %p308 = pneg %p178
        $region18: #{tpu_custom_call.1} parent=11 // pred_check_branch
          %310 = sbr.rel (%p308) target = $region20
        $region19: #{tpu_custom_call.1} parent=11 // pred_region
          _
        $region20: #{tpu_custom_call.1} parent=11 // pred_fallthru
          _
        // Predicated region
        $region21: #{tpu_custom_call.1} parent=11 // pred_check
          %p311 = pneg %p199
        $region22: #{tpu_custom_call.1} parent=11 // pred_check_branch
          %313 = sbr.rel (%p311) target = $region24
        $region23: #{tpu_custom_call.1} parent=11 // pred_region
          _
        $region24: #{tpu_custom_call.1} parent=11 // pred_fallthru
          _
        // Predicated region
        $region25: #{tpu_custom_call.1} parent=11 // pred_check
          %p314 = pneg %p220
        $region26: #{tpu_custom_call.1} parent=11 // pred_check_branch
          %316 = sbr.rel (%p314) target = $region28
        $region27: #{tpu_custom_call.1} parent=11 // pred_region
          _
        $region28: #{tpu_custom_call.1} parent=11 // pred_fallthru
          _
        // Predicated region
        $region29: #{tpu_custom_call.1} parent=11 // pred_check
          %p317 = pneg %p241
        $region30: #{tpu_custom_call.1} parent=11 // pred_check_branch
          %319 = sbr.rel (%p317) target = $region32
        $region31: #{tpu_custom_call.1} parent=11 // pred_region
          _
        $region32: #{tpu_custom_call.1} parent=11 // pred_fallthru
          _
        // Predicated region
        $region33: #{tpu_custom_call.1} parent=11 // pred_check
          %p320 = pneg %p262
        $region34: #{tpu_custom_call.1} parent=11 // pred_check_branch
          %322 = sbr.rel (%p320) target = $region36
        $region35: #{tpu_custom_call.1} parent=11 // pred_region
          _
        $region36: #{tpu_custom_call.1} parent=11 // pred_fallthru
          _
      $region12: #{tpu_custom_call.1} parent=5 // pred_fallthru
        _
      %p323 = scmp.lt.s32.totalorder %s24, 4
      // Predicated region
      $region37: #{tpu_custom_call.1} parent=5 // pred_check
        %p324 = pneg %p323
      $region38: #{tpu_custom_call.1} parent=5 // pred_check_branch
        %326 = sbr.rel (%p324) target = $region40
      $region39: #{tpu_custom_call.1} parent=5 // pred_region
        // Predicated region
        $region41: #{tpu_custom_call.1} parent=39 // pred_check
          %p327 = pneg %p58
        $region42: #{tpu_custom_call.1} parent=39 // pred_check_branch
          %329 = sbr.rel (%p327) target = $region44
        $region43: #{tpu_custom_call.1} parent=39 // pred_region
          %s330 = smul.u32 8, %s32
          %p331 = scmp.lt.s32.totalorder %s31, 1
          %s332 = scalar_select %p331, %s31, 1
          %p333 = scmp.lt.s32.totalorder %s330, 15
          %s334 = scalar_select %p333, %s330, 15
          %s335 = smul.addr %s334, 2
          %s336 = smul.addr %s332, 32
          %s337 = sadd.s32 %s335, %s336
          %s338 = smul.addr %s337, 8
          %s339 = scalar_lea.vmem %s0, %s338
          %s340 = smul.u32 8, %s32
        $region44: #{tpu_custom_call.1} parent=39 // pred_fallthru
          _
        // Predicated region
        $region45: #{tpu_custom_call.1} parent=39 // pred_check
          %p341 = pneg %p94
        $region46: #{tpu_custom_call.1} parent=39 // pred_check_branch
          %343 = sbr.rel (%p341) target = $region48
        $region47: #{tpu_custom_call.1} parent=39 // pred_region
          %s344 = sand.u32 %s84, 1
          %s345 = scalar_lea.sflag [#allocation5], %s344
          %s346 = sand.u32 %s84, 1
          %s347 = smul.addr %s346, 16
          %s348 = scalar_lea.vmem [#allocation4], %s347
          %s349 = smul.u32 %s32, 8
          %s350 = ssub.s32 %s349, 1
          %p351 = scmp.gt.s32.totalorder %s350, 0
          %s352 = scalar_select %p351, %s350, 0
          %s354 = ssub.s32 256, 256
          %355 = vsyncadd %s345, %s354
          %s356 = smul.addr %s352, 2
          %s357 = smul.addr %s31, 32
          %s358 = sadd.s32 %s356, %s357
          %s359 = smul.addr %s358, 128
          %s360 = scalar_lea.hbm %s1, %s359
          %s361 = sshll.u32 %s348, 4
          %s362 = int_to_ptr.vmem [resolvable:$true] %s361
          %367 = dma.hbm_to_vmem [thread:$0]  %s360, 256, %s362, %s345, 128, 128, 8
        $region48: #{tpu_custom_call.1} parent=39 // pred_fallthru
          _
        // Predicated region
        $region49: #{tpu_custom_call.1} parent=39 // pred_check
          %p368 = pneg %p130
        $region50: #{tpu_custom_call.1} parent=39 // pred_check_branch
          %370 = sbr.rel (%p368) target = $region52
        $region51: #{tpu_custom_call.1} parent=39 // pred_region
          %s371 = sand.u32 %s120, 1
          %s372 = scalar_lea.sflag [#allocation8], %s371
          %s373 = sand.u32 %s120, 1
          %s374 = smul.addr %s373, 16
          %s375 = scalar_lea.vmem [#allocation7], %s374
          %s376 = smul.u32 %s32, 8
          %s377 = sadd.s32 %s376, 8
          %p378 = scmp.lt.s32.totalorder %s377, 15
          %s379 = scalar_select %p378, %s377, 15
          %s381 = ssub.s32 256, 256
          %382 = vsyncadd %s372, %s381
          %s383 = smul.addr %s379, 2
          %s384 = smul.addr %s31, 32
          %s385 = sadd.s32 %s383, %s384
          %s386 = smul.addr %s385, 128
          %s387 = scalar_lea.hbm %s2, %s386
          %s388 = sshll.u32 %s375, 4
          %s389 = int_to_ptr.vmem [resolvable:$true] %s388
          %394 = dma.hbm_to_vmem [thread:$0]  %s387, 256, %s389, %s372, 128, 128, 8
        $region52: #{tpu_custom_call.1} parent=39 // pred_fallthru
          _
      $region40: #{tpu_custom_call.1} parent=5 // pred_fallthru
        _
      %p395 = scmp.le.s32.totalorder 1, %s24
      %p396 = scmp.lt.s32.totalorder %s24, 5
      %p397 = pnand %p395, %p396
      %p398 = pneg %p397
      // Predicated region
      $region53: #{tpu_custom_call.1} parent=5 // pred_check
        _
      $region54: #{tpu_custom_call.1} parent=5 // pred_check_branch
        %400 = sbr.rel (%p397) target = $region56
      $region55: #{tpu_custom_call.1} parent=5 // pred_region
        %s401 = ssub.s32 %s24, 1
        %s402 = sand.u32 %s87, 1
        %s403 = scalar_lea.sflag [#allocation5], %s402
        %s404 = sand.u32 %s87, 1
        %s405 = smul.addr %s404, 16
        %s406 = scalar_lea.vmem [#allocation4], %s405
        // Predicated region
        $region57: #{tpu_custom_call.1} parent=55 // pred_check
          %p407 = pneg %p100
        $region58: #{tpu_custom_call.1} parent=55 // pred_check_branch
          %409 = sbr.rel (%p407) target = $region60
        $region59: #{tpu_custom_call.1} parent=55 // pred_region
          %410 = dma.done %s403, 256
        $region60: #{tpu_custom_call.1} parent=55 // pred_fallthru
          _
        %s411 = sand.u32 %s123, 1
        %s412 = scalar_lea.sflag [#allocation8], %s411
        %s413 = sand.u32 %s123, 1
        %s414 = smul.addr %s413, 16
        %s415 = scalar_lea.vmem [#allocation7], %s414
        // Predicated region
        $region61: #{tpu_custom_call.1} parent=55 // pred_check
          %p416 = pneg %p136
        $region62: #{tpu_custom_call.1} parent=55 // pred_check_branch
          %418 = sbr.rel (%p416) target = $region64
        $region63: #{tpu_custom_call.1} parent=55 // pred_region
          %419 = dma.done %s412, 256
        $region64: #{tpu_custom_call.1} parent=55 // pred_fallthru
          _
        %s420 = smul.u32 8, %s34
        %p421 = scmp.lt.s32.totalorder %s33, 1
        %s422 = scalar_select %p421, %s33, 1
        %p423 = scmp.lt.s32.totalorder %s420, 15
        %s424 = scalar_select %p423, %s420, 15
        %s425 = smul.addr %s424, 2
        %s426 = smul.addr %s422, 32
        %s427 = sadd.s32 %s425, %s426
        %s428 = smul.addr %s427, 8
        %s429 = scalar_lea.vmem %s0, %s428
        %p430 = pneg %p64
        %p431 = pneg %p61
        %s432 = sand.u32 %s87, 1
        %s433 = scalar_lea.sflag [#allocation5], %s432
        %s434 = sand.u32 %s87, 1
        %s435 = smul.addr %s434, 16
        %s436 = scalar_lea.vmem [#allocation4], %s435
        %p437 = pneg %p100
        %p438 = pneg %p97
        %s439 = sand.u32 %s123, 1
        %s440 = scalar_lea.sflag [#allocation8], %s439
        %s441 = sand.u32 %s123, 1
        %s442 = smul.addr %s441, 16
        %s443 = scalar_lea.vmem [#allocation7], %s442
        %p444 = pneg %p136
        %p445 = pneg %p133
        %p446 = pneg %p157
        %p447 = pneg %p154
        %p448 = pneg %p178
        %p449 = pneg %p175
        %p450 = pneg %p199
        %p451 = pneg %p196
        %p452 = pneg %p220
        %p453 = pneg %p217
        %p454 = pneg %p241
        %p455 = pneg %p238
        %p456 = pneg %p262
        %p457 = pneg %p259
        %p458 = pneg %p290
        %p459 = pneg %p287
        %s460 = sand.u32 %s277, 1
        %s461 = scalar_lea.sflag [#allocation6], %s460
        %s462 = sand.u32 %s277, 1
        %s463 = smul.addr %s462, 128
        %s464 = scalar_lea.vmem [#allocation9], %s463
        %s465 = smul.u32 8, %s34
        %p466 = scmp.lt.s32.totalorder %s33, 1
        %s467 = scalar_select %p466, %s33, 1
        %p468 = scmp.lt.s32.totalorder %s465, 15
        %s469 = scalar_select %p468, %s465, 15
        %s470 = smul.addr %s469, 2
        %s471 = smul.addr %s467, 32
        %s472 = sadd.s32 %s470, %s471
        %s473 = smul.addr %s472, 8
        %s474 = scalar_lea.vmem %s0, %s473
        %s475 = smul.u32 8, %s34
        %s476 = smul.u32 %s34, 8
        %s477 = ssub.s32 %s476, 1
        %p478 = scmp.gt.s32.totalorder %s477, 0
        %s479 = scalar_select %p478, %s477, 0
        %s480 = smul.u32 %s34, 8
        %s481 = sadd.s32 %s480, 8
        %p482 = scmp.lt.s32.totalorder %s481, 15
        %s483 = scalar_select %p482, %s481, 15
        %s484 = smul.u32 8, %s34
        %v485 = vld [vmem:[%s3] sm:$0xff]
        %v486 = vld [vmem:[%s3 + $0x8] sm:$0xff]
        %v487 = vld [vmem:[%s3 + $0x10] sm:$0xff]
        %v488 = vld [vmem:[%s3 + $0x18] sm:$0xff]
        %v489 = vld [vmem:[%s3 + $0x20] sm:$0xff]
        %v490 = vld [vmem:[%s3 + $0x28] sm:$0xff]
        %v491 = vld [vmem:[%s3 + $0x30] sm:$0xff]
        %v492 = vld [vmem:[%s3 + $0x38] sm:$0xff]
        %v493 = vld [vmem:[%s3 + $0x40] sm:$0xff]
        %v494 = vld [vmem:[%s3 + $0x48] sm:$0xff]
        %v495 = vld [vmem:[%s3 + $0x50] sm:$0xff]
        %v496 = vld [vmem:[%s3 + $0x58] sm:$0xff]
        %v497 = vld [vmem:[%s3 + $0x60] sm:$0xff]
        %v498 = vld [vmem:[%s3 + $0x68] sm:$0xff]
        %v499 = vld [vmem:[%s3 + $0x70] sm:$0xff]
        %v500 = vld [vmem:[%s3 + $0x78] sm:$0xff]
        %v501 = vld [vmem:[%s6] sm:$0x1]
        %v502 = vld [vmem:[%s474] sm:$0xff]
        %v503 = vld [vmem:[%s474 + $0x8] sm:$0xff]
        %v504 = vld [vmem:[%s474 + $0x10] sm:$0xff]
        %v505 = vld [vmem:[%s474 + $0x18] sm:$0xff]
        %v506 = vld [vmem:[%s474 + $0x20] sm:$0xff]
        %v507 = vld [vmem:[%s474 + $0x28] sm:$0xff]
        %v508 = vld [vmem:[%s474 + $0x30] sm:$0xff]
        %v509 = vld [vmem:[%s474 + $0x38] sm:$0xff]
        %v510 = vld [vmem:[%s474 + $0x40] sm:$0xff]
        %v511 = vld [vmem:[%s474 + $0x48] sm:$0xff]
        %v512 = vld [vmem:[%s474 + $0x50] sm:$0xff]
        %v513 = vld [vmem:[%s474 + $0x58] sm:$0xff]
        %v514 = vld [vmem:[%s474 + $0x60] sm:$0xff]
        %v515 = vld [vmem:[%s474 + $0x68] sm:$0xff]
        %v516 = vld [vmem:[%s474 + $0x70] sm:$0xff]
        %v517 = vld [vmem:[%s474 + $0x78] sm:$0xff]
        %v519 = vlaneseq
        %v520 = vshrl.u32 %v519, 7
        %v521 = vsub.s32 0, %v520
        %v522 = vrot.slane %v501, %v521
        %524 = vmatprep.subr.mxu0 0.0
        %525 = vmatpush1.msra.mxu0 %v485
        %526 = vmatprep.subr.mxu0 0.0
        %527 = vmatpush1.msra.mxu0 %v486
        %528 = vmatprep.subr.mxu0 0.0
        %529 = vmatpush1.msra.mxu0 %v487
        %530 = vmatprep.subr.mxu0 0.0
        %531 = vmatpush1.msra.mxu0 %v488
        %532 = vmatprep.subr.mxu0 0.0
        %533 = vmatpush1.msra.mxu0 %v489
        %534 = vmatprep.subr.mxu0 0.0
        %535 = vmatpush1.msra.mxu0 %v490
        %536 = vmatprep.subr.mxu0 0.0
        %537 = vmatpush1.msra.mxu0 %v491
        %538 = vmatprep.subr.mxu0 0.0
        %539 = vmatpush1.msra.mxu0 %v492
        %540 = vmatprep.subr.mxu0 0.0
        %541 = vmatpush1.msra.mxu0 %v493
        %542 = vmatprep.subr.mxu0 0.0
        %543 = vmatpush1.msra.mxu0 %v494
        %544 = vmatprep.subr.mxu0 0.0
        %545 = vmatpush1.msra.mxu0 %v495
        %546 = vmatprep.subr.mxu0 0.0
        %547 = vmatpush1.msra.mxu0 %v496
        %548 = vmatprep.subr.mxu0 0.0
        %549 = vmatpush1.msra.mxu0 %v497
        %550 = vmatprep.subr.mxu0 0.0
        %551 = vmatpush1.msra.mxu0 %v498
        %552 = vmatprep.subr.mxu0 0.0
        %553 = vmatpush1.msra.mxu0 %v499
        %554 = vmatprep.subr.mxu0 0.0
        %555 = vmatpush1.msra.mxu0 %v500
        %556 = vmatprep.subr.mxu0 0.0
        %557 = vmatpush1.msra.mxu0 0.0
        %558 = vmatprep.subr.mxu0 0.0
        %559 = vmatpush1.msra.mxu0 0.0
        %560 = vmatprep.subr.mxu0 0.0
        %561 = vmatpush1.msra.mxu0 0.0
        %562 = vmatprep.subr.mxu0 0.0
        %563 = vmatpush1.msra.mxu0 0.0
        %564 = vmatprep.subr.mxu0 0.0
        %565 = vmatpush1.msra.mxu0 0.0
        %566 = vmatprep.subr.mxu0 0.0
        %567 = vmatpush1.msra.mxu0 0.0
        %568 = vmatprep.subr.mxu0 0.0
        %569 = vmatpush1.msra.mxu0 0.0
        %570 = vmatprep.subr.mxu0 0.0
        %571 = vmatpush1.msra.mxu0 0.0
        %572 = vmatprep.subr.mxu0 0.0
        %573 = vmatpush1.msra.mxu0 0.0
        %574 = vmatprep.subr.mxu0 0.0
        %575 = vmatpush1.msra.mxu0 0.0
        %576 = vmatprep.subr.mxu0 0.0
        %577 = vmatpush1.msra.mxu0 0.0
        %578 = vmatprep.subr.mxu0 0.0
        %579 = vmatpush1.msra.mxu0 0.0
        %580 = vmatprep.subr.mxu0 0.0
        %581 = vmatpush1.msra.mxu0 0.0
        %582 = vmatprep.subr.mxu0 0.0
        %583 = vmatpush1.msra.mxu0 0.0
        %584 = vmatprep.subr.mxu0 0.0
        %585 = vmatpush1.msra.mxu0 0.0
        %586 = vmatprep.subr.mxu0 0.0
        %587 = vmatpush1.msra.mxu0 0.0
        %588 = vmatprep.mubr.f32.mxu0 0.0
        %589 = vmatmul.mubr.f32.gmra.mrb[0].mxu0 %v502
        %v590 = vpop.f32.mrb[0].mxu0
        %v591 = vadd.f32 %v522, %v590
        %v592 = vpop.f32.mrb[0].mxu0
        %593 = vmatprep.mubr.f32.mxu0 0.0
        %594 = vmatmul.mubr.f32.gmra.mrb[0].mxu0 %v503
        %v595 = vpop.f32.mrb[0].mxu0
        %v596 = vadd.f32 %v522, %v595
        %v597 = vpop.f32.mrb[0].mxu0
        %598 = vmatprep.mubr.f32.mxu0 0.0
        %599 = vmatmul.mubr.f32.gmra.mrb[0].mxu0 %v504
        %v600 = vpop.f32.mrb[0].mxu0
        %v601 = vadd.f32 %v522, %v600
        %v602 = vpop.f32.mrb[0].mxu0
        %603 = vmatprep.mubr.f32.mxu0 0.0
        %604 = vmatmul.mubr.f32.gmra.mrb[0].mxu0 %v505
        %v605 = vpop.f32.mrb[0].mxu0
        %v606 = vadd.f32 %v522, %v605
        %v607 = vpop.f32.mrb[0].mxu0
        %608 = vmatprep.mubr.f32.mxu0 0.0
        %609 = vmatmul.mubr.f32.gmra.mrb[0].mxu0 %v506
        %v610 = vpop.f32.mrb[0].mxu0
        %v611 = vadd.f32 %v522, %v610
        %v612 = vpop.f32.mrb[0].mxu0
        %613 = vmatprep.mubr.f32.mxu0 0.0
        %614 = vmatmul.mubr.f32.gmra.mrb[0].mxu0 %v507
        %v615 = vpop.f32.mrb[0].mxu0
        %v616 = vadd.f32 %v522, %v615
        %v617 = vpop.f32.mrb[0].mxu0
        %618 = vmatprep.mubr.f32.mxu0 0.0
        %619 = vmatmul.mubr.f32.gmra.mrb[0].mxu0 %v508
        %v620 = vpop.f32.mrb[0].mxu0
        %v621 = vadd.f32 %v522, %v620
        %v622 = vpop.f32.mrb[0].mxu0
        %623 = vmatprep.mubr.f32.mxu0 0.0
        %624 = vmatmul.mubr.f32.gmra.mrb[0].mxu0 %v509
        %v625 = vpop.f32.mrb[0].mxu0
        %v626 = vadd.f32 %v522, %v625
        %v627 = vpop.f32.mrb[0].mxu0
        %628 = vmatprep.mubr.f32.mxu0 0.0
        %629 = vmatmul.mubr.f32.gmra.mrb[0].mxu0 %v510
        %v630 = vpop.f32.mrb[0].mxu0
        %v631 = vadd.f32 %v522, %v630
        %v632 = vpop.f32.mrb[0].mxu0
        %633 = vmatprep.mubr.f32.mxu0 0.0
        %634 = vmatmul.mubr.f32.gmra.mrb[0].mxu0 %v511
        %v635 = vpop.f32.mrb[0].mxu0
        %v636 = vadd.f32 %v522, %v635
        %v637 = vpop.f32.mrb[0].mxu0
        %638 = vmatprep.mubr.f32.mxu0 0.0
        %639 = vmatmul.mubr.f32.gmra.mrb[0].mxu0 %v512
        %v640 = vpop.f32.mrb[0].mxu0
        %v641 = vadd.f32 %v522, %v640
        %v642 = vpop.f32.mrb[0].mxu0
        %643 = vmatprep.mubr.f32.mxu0 0.0
        %644 = vmatmul.mubr.f32.gmra.mrb[0].mxu0 %v513
        %v645 = vpop.f32.mrb[0].mxu0
        %v646 = vadd.f32 %v522, %v645
        %v647 = vpop.f32.mrb[0].mxu0
        %648 = vmatprep.mubr.f32.mxu0 0.0
        %649 = vmatmul.mubr.f32.gmra.mrb[0].mxu0 %v514
        %v650 = vpop.f32.mrb[0].mxu0
        %v651 = vadd.f32 %v522, %v650
        %v652 = vpop.f32.mrb[0].mxu0
        %653 = vmatprep.mubr.f32.mxu0 0.0
        %654 = vmatmul.mubr.f32.gmra.mrb[0].mxu0 %v515
        %v655 = vpop.f32.mrb[0].mxu0
        %v656 = vadd.f32 %v522, %v655
        %v657 = vpop.f32.mrb[0].mxu0
        %658 = vmatprep.mubr.f32.mxu0 0.0
        %659 = vmatmul.mubr.f32.gmra.mrb[0].mxu0 %v516
        %v660 = vpop.f32.mrb[0].mxu0
        %v661 = vadd.f32 %v522, %v660
        %v662 = vpop.f32.mrb[0].mxu0
        %663 = vmatprep.mubr.f32.mxu0 0.0
        %664 = vmatmul.mubr.f32.gmra.mrb[0].mxu0 %v517
        %v665 = vpop.f32.mrb[0].mxu0
        %v666 = vadd.f32 %v522, %v665
        %v667 = vpop.f32.mrb[0].mxu0
        %668 = vdwg.mxu0
        %v669 = vmax.f32 %v591, 0.0
        %v670 = vmax.f32 %v596, 0.0
        %v671 = vmax.f32 %v601, 0.0
        %v672 = vmax.f32 %v606, 0.0
        %v673 = vmax.f32 %v611, 0.0
        %v674 = vmax.f32 %v616, 0.0
        %v675 = vmax.f32 %v621, 0.0
        %v676 = vmax.f32 %v626, 0.0
        %v677 = vmax.f32 %v631, 0.0
        %v678 = vmax.f32 %v636, 0.0
        %v679 = vmax.f32 %v641, 0.0
        %v680 = vmax.f32 %v646, 0.0
        %v681 = vmax.f32 %v651, 0.0
        %v682 = vmax.f32 %v656, 0.0
        %v683 = vmax.f32 %v661, 0.0
        %v684 = vmax.f32 %v666, 0.0
        %v685 = vld [vmem:[%s406] sm:$0xff]
        %v686 = vld [vmem:[%s406 + $0x8] sm:$0xff]
        %687 = vmatprep.subr.mxu0 0.0
        %688 = vmatpush1.msra.mxu0 %v485
        %689 = vmatprep.subr.mxu0 0.0
        %690 = vmatpush1.msra.mxu0 %v486
        %691 = vmatprep.subr.mxu0 0.0
        %692 = vmatpush1.msra.mxu0 %v487
        %693 = vmatprep.subr.mxu0 0.0
        %694 = vmatpush1.msra.mxu0 %v488
        %695 = vmatprep.subr.mxu0 0.0
        %696 = vmatpush1.msra.mxu0 %v489
        %697 = vmatprep.subr.mxu0 0.0
        %698 = vmatpush1.msra.mxu0 %v490
        %699 = vmatprep.subr.mxu0 0.0
        %700 = vmatpush1.msra.mxu0 %v491
        %701 = vmatprep.subr.mxu0 0.0
        %702 = vmatpush1.msra.mxu0 %v492
        %703 = vmatprep.subr.mxu0 0.0
        %704 = vmatpush1.msra.mxu0 %v493
        %705 = vmatprep.subr.mxu0 0.0
        %706 = vmatpush1.msra.mxu0 %v494
        %707 = vmatprep.subr.mxu0 0.0
        %708 = vmatpush1.msra.mxu0 %v495
        %709 = vmatprep.subr.mxu0 0.0
        %710 = vmatpush1.msra.mxu0 %v496
        %711 = vmatprep.subr.mxu0 0.0
        %712 = vmatpush1.msra.mxu0 %v497
        %713 = vmatprep.subr.mxu0 0.0
        %714 = vmatpush1.msra.mxu0 %v498
        %715 = vmatprep.subr.mxu0 0.0
        %716 = vmatpush1.msra.mxu0 %v499
        %717 = vmatprep.subr.mxu0 0.0
        %718 = vmatpush1.msra.mxu0 %v500
        %719 = vmatprep.subr.mxu0 0.0
        %720 = vmatpush1.msra.mxu0 0.0
        %721 = vmatprep.subr.mxu0 0.0
        %722 = vmatpush1.msra.mxu0 0.0
        %723 = vmatprep.subr.mxu0 0.0
        %724 = vmatpush1.msra.mxu0 0.0
        %725 = vmatprep.subr.mxu0 0.0
        %726 = vmatpush1.msra.mxu0 0.0
        %727 = vmatprep.subr.mxu0 0.0
        %728 = vmatpush1.msra.mxu0 0.0
        %729 = vmatprep.subr.mxu0 0.0
        %730 = vmatpush1.msra.mxu0 0.0
        %731 = vmatprep.subr.mxu0 0.0
        %732 = vmatpush1.msra.mxu0 0.0
        %733 = vmatprep.subr.mxu0 0.0
        %734 = vmatpush1.msra.mxu0 0.0
        %735 = vmatprep.subr.mxu0 0.0
        %736 = vmatpush1.msra.mxu0 0.0
        %737 = vmatprep.subr.mxu0 0.0
        %738 = vmatpush1.msra.mxu0 0.0
        %739 = vmatprep.subr.mxu0 0.0
        %740 = vmatpush1.msra.mxu0 0.0
        %741 = vmatprep.subr.mxu0 0.0
        %742 = vmatpush1.msra.mxu0 0.0
        %743 = vmatprep.subr.mxu0 0.0
        %744 = vmatpush1.msra.mxu0 0.0
        %745 = vmatprep.subr.mxu0 0.0
        %746 = vmatpush1.msra.mxu0 0.0
        %747 = vmatprep.subr.mxu0 0.0
        %748 = vmatpush1.msra.mxu0 0.0
        %749 = vmatprep.subr.mxu0 0.0
        %750 = vmatpush1.msra.mxu0 0.0
        %751 = vmatprep.mubr.f32.mxu0 0.0
        %752 = vmatmul.mubr.f32.gmra.mrb[0].mxu0 %v685
        %v753 = vpop.f32.mrb[0].mxu0
        %v754 = vadd.f32 %v522, %v753
        %v755 = vpop.f32.mrb[0].mxu0
        %756 = vmatprep.mubr.f32.mxu0 0.0
        %757 = vmatmul.mubr.f32.gmra.mrb[0].mxu0 %v686
        %v758 = vpop.f32.mrb[0].mxu0
        %v759 = vadd.f32 %v522, %v758
        %v760 = vpop.f32.mrb[0].mxu0
        %761 = vdwg.mxu0
        %v762 = vmax.f32 %v754, 0.0
        %v763 = vmax.f32 %v759, 0.0
        %p764 = scmp.gt.s32.totalorder %s34, 0
        %s765 = scalar_select %p764, 1.0, 0.0
        %v766 = vstv %s765
        %v767 = vmul.f32 %v762, %v766
        %v768 = vmul.f32 %v763, %v766
        %v769 = vld [vmem:[%s415] sm:$0xff]
        %v770 = vld [vmem:[%s415 + $0x8] sm:$0xff]
        %771 = vmatprep.subr.mxu0 0.0
        %772 = vmatpush1.msra.mxu0 %v485
        %773 = vmatprep.subr.mxu0 0.0
        %774 = vmatpush1.msra.mxu0 %v486
        %775 = vmatprep.subr.mxu0 0.0
        %776 = vmatpush1.msra.mxu0 %v487
        %777 = vmatprep.subr.mxu0 0.0
        %778 = vmatpush1.msra.mxu0 %v488
        %779 = vmatprep.subr.mxu0 0.0
        %780 = vmatpush1.msra.mxu0 %v489
        %781 = vmatprep.subr.mxu0 0.0
        %782 = vmatpush1.msra.mxu0 %v490
        %783 = vmatprep.subr.mxu0 0.0
        %784 = vmatpush1.msra.mxu0 %v491
        %785 = vmatprep.subr.mxu0 0.0
        %786 = vmatpush1.msra.mxu0 %v492
        %787 = vmatprep.subr.mxu0 0.0
        %788 = vmatpush1.msra.mxu0 %v493
        %789 = vmatprep.subr.mxu0 0.0
        %790 = vmatpush1.msra.mxu0 %v494
        %791 = vmatprep.subr.mxu0 0.0
        %792 = vmatpush1.msra.mxu0 %v495
        %793 = vmatprep.subr.mxu0 0.0
        %794 = vmatpush1.msra.mxu0 %v496
        %795 = vmatprep.subr.mxu0 0.0
        %796 = vmatpush1.msra.mxu0 %v497
        %797 = vmatprep.subr.mxu0 0.0
        %798 = vmatpush1.msra.mxu0 %v498
        %799 = vmatprep.subr.mxu0 0.0
        %800 = vmatpush1.msra.mxu0 %v499
        %801 = vmatprep.subr.mxu0 0.0
        %802 = vmatpush1.msra.mxu0 %v500
        %803 = vmatprep.subr.mxu0 0.0
        %804 = vmatpush1.msra.mxu0 0.0
        %805 = vmatprep.subr.mxu0 0.0
        %806 = vmatpush1.msra.mxu0 0.0
        %807 = vmatprep.subr.mxu0 0.0
        %808 = vmatpush1.msra.mxu0 0.0
        %809 = vmatprep.subr.mxu0 0.0
        %810 = vmatpush1.msra.mxu0 0.0
        %811 = vmatprep.subr.mxu0 0.0
        %812 = vmatpush1.msra.mxu0 0.0
        %813 = vmatprep.subr.mxu0 0.0
        %814 = vmatpush1.msra.mxu0 0.0
        %815 = vmatprep.subr.mxu0 0.0
        %816 = vmatpush1.msra.mxu0 0.0
        %817 = vmatprep.subr.mxu0 0.0
        %818 = vmatpush1.msra.mxu0 0.0
        %819 = vmatprep.subr.mxu0 0.0
        %820 = vmatpush1.msra.mxu0 0.0
        %821 = vmatprep.subr.mxu0 0.0
        %822 = vmatpush1.msra.mxu0 0.0
        %823 = vmatprep.subr.mxu0 0.0
        %824 = vmatpush1.msra.mxu0 0.0
        %825 = vmatprep.subr.mxu0 0.0
        %826 = vmatpush1.msra.mxu0 0.0
        %827 = vmatprep.subr.mxu0 0.0
        %828 = vmatpush1.msra.mxu0 0.0
        %829 = vmatprep.subr.mxu0 0.0
        %830 = vmatpush1.msra.mxu0 0.0
        %831 = vmatprep.subr.mxu0 0.0
        %832 = vmatpush1.msra.mxu0 0.0
        %833 = vmatprep.subr.mxu0 0.0
        %834 = vmatpush1.msra.mxu0 0.0
        %835 = vmatprep.mubr.f32.mxu0 0.0
        %836 = vmatmul.mubr.f32.gmra.mrb[0].mxu0 %v769
        %v837 = vpop.f32.mrb[0].mxu0
        %v838 = vadd.f32 %v522, %v837
        %v839 = vpop.f32.mrb[0].mxu0
        %840 = vmatprep.mubr.f32.mxu0 0.0
        %841 = vmatmul.mubr.f32.gmra.mrb[0].mxu0 %v770
        %v842 = vpop.f32.mrb[0].mxu0
        %v843 = vadd.f32 %v522, %v842
        %v844 = vpop.f32.mrb[0].mxu0
        %845 = vdwg.mxu0
        %v846 = vmax.f32 %v838, 0.0
        %v847 = vmax.f32 %v843, 0.0
        %p848 = scmp.lt.s32.totalorder %s34, 1
        %s849 = scalar_select %p848, 1.0, 0.0
        %v850 = vstv %s849
        %v851 = vmul.f32 %v846, %v850
        %v852 = vmul.f32 %v847, %v850
        %vm853 = vcmask 253952
        %854 = vst.msk [vmem:[#allocation2] sm:$0x1] %vm853, 0.0
        %855 = vst.msk [vmem:[#allocation2 + $0x18] sm:$0x1] %vm853, 0.0
        %856 = vst.msk [vmem:[#allocation2 + $0x30] sm:$0x1] %vm853, 0.0
        %857 = vst.msk [vmem:[#allocation2 + $0x48] sm:$0x1] %vm853, 0.0
        %858 = vst.msk [vmem:[#allocation2 + $0x60] sm:$0x1] %vm853, 0.0
        %859 = vst.msk [vmem:[#allocation2 + $0x78] sm:$0x1] %vm853, 0.0
        %860 = vst.msk [vmem:[#allocation2 + $0x90] sm:$0x1] %vm853, 0.0
        %861 = vst.msk [vmem:[#allocation2 + $0xa8] sm:$0x1] %vm853, 0.0
        %862 = vst.msk [vmem:[#allocation2 + $0xc0] sm:$0x1] %vm853, 0.0
        %863 = vst.msk [vmem:[#allocation2 + $0xd8] sm:$0x1] %vm853, 0.0
        %864 = vst.msk [vmem:[#allocation2 + $0x11] sm:$0x1] %vm853, 0.0
        %865 = vst.msk [vmem:[#allocation2 + $0x29] sm:$0x1] %vm853, 0.0
        %866 = vst.msk [vmem:[#allocation2 + $0x41] sm:$0x1] %vm853, 0.0
        %867 = vst.msk [vmem:[#allocation2 + $0x59] sm:$0x1] %vm853, 0.0
        %868 = vst.msk [vmem:[#allocation2 + $0x71] sm:$0x1] %vm853, 0.0
        %869 = vst.msk [vmem:[#allocation2 + $0x89] sm:$0x1] %vm853, 0.0
        %870 = vst.msk [vmem:[#allocation2 + $0xa1] sm:$0x1] %vm853, 0.0
        %871 = vst.msk [vmem:[#allocation2 + $0xb9] sm:$0x1] %vm853, 0.0
        %872 = vst.msk [vmem:[#allocation2 + $0xd1] sm:$0x1] %vm853, 0.0
        %873 = vst.msk [vmem:[#allocation2 + $0xe9] sm:$0x1] %vm853, 0.0
        %vm874 = vcmask 261120
        %875 = vst.msk [vmem:[#allocation2 + $0x1] sm:$0xff] %vm874, %v767
        %876 = vst.msk [vmem:[#allocation2 + $0x9] sm:$0xff] %vm874, %v768
        %s877 = scalar_lea.vmem [#allocation2], 24
        %878 = vst.msk [vmem:[%s877 + $0x1] sm:$0xff] %vm874, %v669
        %879 = vst.msk [vmem:[%s877 + $0x9] sm:$0xff] %vm874, %v670
        %880 = vst.msk [vmem:[%s877 + $0x19] sm:$0xff] %vm874, %v671
        %881 = vst.msk [vmem:[%s877 + $0x21] sm:$0xff] %vm874, %v672
        %882 = vst.msk [vmem:[%s877 + $0x31] sm:$0xff] %vm874, %v673
        %883 = vst.msk [vmem:[%s877 + $0x39] sm:$0xff] %vm874, %v674
        %884 = vst.msk [vmem:[%s877 + $0x49] sm:$0xff] %vm874, %v675
        %885 = vst.msk [vmem:[%s877 + $0x51] sm:$0xff] %vm874, %v676
        %886 = vst.msk [vmem:[%s877 + $0x61] sm:$0xff] %vm874, %v677
        %887 = vst.msk [vmem:[%s877 + $0x69] sm:$0xff] %vm874, %v678
        %888 = vst.msk [vmem:[%s877 + $0x79] sm:$0xff] %vm874, %v679
        %889 = vst.msk [vmem:[%s877 + $0x81] sm:$0xff] %vm874, %v680
        %890 = vst.msk [vmem:[%s877 + $0x91] sm:$0xff] %vm874, %v681
        %891 = vst.msk [vmem:[%s877 + $0x99] sm:$0xff] %vm874, %v682
        %892 = vst.msk [vmem:[%s877 + $0xa9] sm:$0xff] %vm874, %v683
        %893 = vst.msk [vmem:[%s877 + $0xb1] sm:$0xff] %vm874, %v684
        %s894 = scalar_lea.vmem [#allocation2], 216
        %895 = vst.msk [vmem:[%s894 + $0x1] sm:$0xff] %vm874, %v851
        %896 = vst.msk [vmem:[%s894 + $0x9] sm:$0xff] %vm874, %v852
        %v897 = vld [vmem:[#allocation2] sm:$0xff]
        %v898 = vld [vmem:[#allocation2 + $0x8] sm:$0xff]
        %v899 = vld [vmem:[#allocation2 + $0x18] sm:$0xff]
        %v900 = vld [vmem:[#allocation2 + $0x20] sm:$0xff]
        %v901 = vld [vmem:[#allocation2 + $0x30] sm:$0xff]
        %v902 = vld [vmem:[#allocation2 + $0x38] sm:$0xff]
        %v903 = vld [vmem:[#allocation2 + $0x48] sm:$0xff]
        %v904 = vld [vmem:[#allocation2 + $0x50] sm:$0xff]
        %v905 = vld [vmem:[#allocation2 + $0x60] sm:$0xff]
        %v906 = vld [vmem:[#allocation2 + $0x68] sm:$0xff]
        %v907 = vld [vmem:[#allocation2 + $0x78] sm:$0xff]
        %v908 = vld [vmem:[#allocation2 + $0x80] sm:$0xff]
        %v909 = vld [vmem:[#allocation2 + $0x90] sm:$0xff]
        %v910 = vld [vmem:[#allocation2 + $0x98] sm:$0xff]
        %v911 = vld [vmem:[#allocation2 + $0xa8] sm:$0xff]
        %v912 = vld [vmem:[#allocation2 + $0xb0] sm:$0xff]
        %913 = vst.msk [vmem:[#allocation3] sm:$0xff] %vm874, %v897
        %914 = vst.msk [vmem:[#allocation3 + $0x18] sm:$0xff] %vm874, %v898
        %915 = vst.msk [vmem:[#allocation3 + $0x30] sm:$0xff] %vm874, %v899
        %916 = vst.msk [vmem:[#allocation3 + $0x48] sm:$0xff] %vm874, %v900
        %917 = vst.msk [vmem:[#allocation3 + $0x60] sm:$0xff] %vm874, %v901
        %918 = vst.msk [vmem:[#allocation3 + $0x78] sm:$0xff] %vm874, %v902
        %919 = vst.msk [vmem:[#allocation3 + $0x90] sm:$0xff] %vm874, %v903
        %920 = vst.msk [vmem:[#allocation3 + $0xa8] sm:$0xff] %vm874, %v904
        %921 = vst.msk [vmem:[#allocation3 + $0xc0] sm:$0xff] %vm874, %v905
        %922 = vst.msk [vmem:[#allocation3 + $0xd8] sm:$0xff] %vm874, %v906
        %923 = vst.msk [vmem:[#allocation3 + $0xf0] sm:$0xff] %vm874, %v907
        %924 = vst.msk [vmem:[#allocation3 + $0x108] sm:$0xff] %vm874, %v908
        %925 = vst.msk [vmem:[#allocation3 + $0x120] sm:$0xff] %vm874, %v909
        %926 = vst.msk [vmem:[#allocation3 + $0x138] sm:$0xff] %vm874, %v910
        %927 = vst.msk [vmem:[#allocation3 + $0x150] sm:$0xff] %vm874, %v911
        %928 = vst.msk [vmem:[#allocation3 + $0x168] sm:$0xff] %vm874, %v912
        %v929 = vld [vmem:[#allocation2 + $0x1] sm:$0xff]
        %v930 = vld [vmem:[#allocation2 + $0x9] sm:$0xff]
        %v931 = vld [vmem:[#allocation2 + $0x19] sm:$0xff]
        %v932 = vld [vmem:[#allocation2 + $0x21] sm:$0xff]
        %v933 = vld [vmem:[#allocation2 + $0x31] sm:$0xff]
        %v934 = vld [vmem:[#allocation2 + $0x39] sm:$0xff]
        %v935 = vld [vmem:[#allocation2 + $0x49] sm:$0xff]
        %v936 = vld [vmem:[#allocation2 + $0x51] sm:$0xff]
        %v937 = vld [vmem:[#allocation2 + $0x61] sm:$0xff]
        %v938 = vld [vmem:[#allocation2 + $0x69] sm:$0xff]
        %v939 = vld [vmem:[#allocation2 + $0x79] sm:$0xff]
        %v940 = vld [vmem:[#allocation2 + $0x81] sm:$0xff]
        %v941 = vld [vmem:[#allocation2 + $0x91] sm:$0xff]
        %v942 = vld [vmem:[#allocation2 + $0x99] sm:$0xff]
        %v943 = vld [vmem:[#allocation2 + $0xa9] sm:$0xff]
        %v944 = vld [vmem:[#allocation2 + $0xb1] sm:$0xff]
        %961 = vrot.lane.b32.xlu0 %v929, 32
        %v962 = vpop.permute.xlu0 %961
        %963 = vrot.lane.b32.xlu0 %v930, 32
        %v964 = vpop.permute.xlu0 %963
        %965 = vrot.lane.b32.xlu0 %v931, 32
        %v966 = vpop.permute.xlu0 %965
        %967 = vrot.lane.b32.xlu0 %v932, 32
        %v968 = vpop.permute.xlu0 %967
        %969 = vrot.lane.b32.xlu0 %v933, 32
        %v970 = vpop.permute.xlu0 %969
        %971 = vrot.lane.b32.xlu0 %v934, 32
        %v972 = vpop.permute.xlu0 %971
        %973 = vrot.lane.b32.xlu0 %v935, 32
        %v974 = vpop.permute.xlu0 %973
        %975 = vrot.lane.b32.xlu0 %v936, 32
        %v976 = vpop.permute.xlu0 %975
        %977 = vrot.lane.b32.xlu0 %v937, 32
        %v978 = vpop.permute.xlu0 %977
        %979 = vrot.lane.b32.xlu0 %v938, 32
        %v980 = vpop.permute.xlu0 %979
        %981 = vrot.lane.b32.xlu0 %v939, 32
        %v982 = vpop.permute.xlu0 %981
        %983 = vrot.lane.b32.xlu0 %v940, 32
        %v984 = vpop.permute.xlu0 %983
        %985 = vrot.lane.b32.xlu0 %v941, 32
        %v986 = vpop.permute.xlu0 %985
        %987 = vrot.lane.b32.xlu0 %v942, 32
        %v988 = vpop.permute.xlu0 %987
        %989 = vrot.lane.b32.xlu0 %v943, 32
        %v990 = vpop.permute.xlu0 %989
        %991 = vrot.lane.b32.xlu0 %v944, 32
        %v992 = vpop.permute.xlu0 %991
        %vm1009 = vcmask 523520
        %1010 = vst.msk [vmem:[#allocation3] sm:$0xff] %vm1009, %v962
        %1011 = vst.msk [vmem:[#allocation3 + $0x18] sm:$0xff] %vm1009, %v964
        %1012 = vst.msk [vmem:[#allocation3 + $0x30] sm:$0xff] %vm1009, %v966
        %1013 = vst.msk [vmem:[#allocation3 + $0x48] sm:$0xff] %vm1009, %v968
        %1014 = vst.msk [vmem:[#allocation3 + $0x60] sm:$0xff] %vm1009, %v970
        %1015 = vst.msk [vmem:[#allocation3 + $0x78] sm:$0xff] %vm1009, %v972
        %1016 = vst.msk [vmem:[#allocation3 + $0x90] sm:$0xff] %vm1009, %v974
        %1017 = vst.msk [vmem:[#allocation3 + $0xa8] sm:$0xff] %vm1009, %v976
        %1018 = vst.msk [vmem:[#allocation3 + $0xc0] sm:$0xff] %vm1009, %v978
        %1019 = vst.msk [vmem:[#allocation3 + $0xd8] sm:$0xff] %vm1009, %v980
        %1020 = vst.msk [vmem:[#allocation3 + $0xf0] sm:$0xff] %vm1009, %v982
        %1021 = vst.msk [vmem:[#allocation3 + $0x108] sm:$0xff] %vm1009, %v984
        %1022 = vst.msk [vmem:[#allocation3 + $0x120] sm:$0xff] %vm1009, %v986
        %1023 = vst.msk [vmem:[#allocation3 + $0x138] sm:$0xff] %vm1009, %v988
        %1024 = vst.msk [vmem:[#allocation3 + $0x150] sm:$0xff] %vm1009, %v990
        %1025 = vst.msk [vmem:[#allocation3 + $0x168] sm:$0xff] %vm1009, %v992
        %v1026 = vld [vmem:[#allocation2 + $0x2] sm:$0xff]
        %v1027 = vld [vmem:[#allocation2 + $0xa] sm:$0xff]
        %v1028 = vld [vmem:[#allocation2 + $0x1a] sm:$0xff]
        %v1029 = vld [vmem:[#allocation2 + $0x22] sm:$0xff]
        %v1030 = vld [vmem:[#allocation2 + $0x32] sm:$0xff]
        %v1031 = vld [vmem:[#allocation2 + $0x3a] sm:$0xff]
        %v1032 = vld [vmem:[#allocation2 + $0x4a] sm:$0xff]
        %v1033 = vld [vmem:[#allocation2 + $0x52] sm:$0xff]
        %v1034 = vld [vmem:[#allocation2 + $0x62] sm:$0xff]
        %v1035 = vld [vmem:[#allocation2 + $0x6a] sm:$0xff]
        %v1036 = vld [vmem:[#allocation2 + $0x7a] sm:$0xff]
        %v1037 = vld [vmem:[#allocation2 + $0x82] sm:$0xff]
        %v1038 = vld [vmem:[#allocation2 + $0x92] sm:$0xff]
        %v1039 = vld [vmem:[#allocation2 + $0x9a] sm:$0xff]
        %v1040 = vld [vmem:[#allocation2 + $0xaa] sm:$0xff]
        %v1041 = vld [vmem:[#allocation2 + $0xb2] sm:$0xff]
        %1058 = vrot.lane.b32.xlu0 %v1026, 64
        %v1059 = vpop.permute.xlu0 %1058
        %1060 = vrot.lane.b32.xlu0 %v1027, 64
        %v1061 = vpop.permute.xlu0 %1060
        %1062 = vrot.lane.b32.xlu0 %v1028, 64
        %v1063 = vpop.permute.xlu0 %1062
        %1064 = vrot.lane.b32.xlu0 %v1029, 64
        %v1065 = vpop.permute.xlu0 %1064
        %1066 = vrot.lane.b32.xlu0 %v1030, 64
        %v1067 = vpop.permute.xlu0 %1066
        %1068 = vrot.lane.b32.xlu0 %v1031, 64
        %v1069 = vpop.permute.xlu0 %1068
        %1070 = vrot.lane.b32.xlu0 %v1032, 64
        %v1071 = vpop.permute.xlu0 %1070
        %1072 = vrot.lane.b32.xlu0 %v1033, 64
        %v1073 = vpop.permute.xlu0 %1072
        %1074 = vrot.lane.b32.xlu0 %v1034, 64
        %v1075 = vpop.permute.xlu0 %1074
        %1076 = vrot.lane.b32.xlu0 %v1035, 64
        %v1077 = vpop.permute.xlu0 %1076
        %1078 = vrot.lane.b32.xlu0 %v1036, 64
        %v1079 = vpop.permute.xlu0 %1078
        %1080 = vrot.lane.b32.xlu0 %v1037, 64
        %v1081 = vpop.permute.xlu0 %1080
        %1082 = vrot.lane.b32.xlu0 %v1038, 64
        %v1083 = vpop.permute.xlu0 %1082
        %1084 = vrot.lane.b32.xlu0 %v1039, 64
        %v1085 = vpop.permute.xlu0 %1084
        %1086 = vrot.lane.b32.xlu0 %v1040, 64
        %v1087 = vpop.permute.xlu0 %1086
        %1088 = vrot.lane.b32.xlu0 %v1041, 64
        %v1089 = vpop.permute.xlu0 %1088
        %vm1106 = vcmask 785920
        %1107 = vst.msk [vmem:[#allocation3] sm:$0xff] %vm1106, %v1059
        %1108 = vst.msk [vmem:[#allocation3 + $0x18] sm:$0xff] %vm1106, %v1061
        %1109 = vst.msk [vmem:[#allocation3 + $0x30] sm:$0xff] %vm1106, %v1063
        %1110 = vst.msk [vmem:[#allocation3 + $0x48] sm:$0xff] %vm1106, %v1065
        %1111 = vst.msk [vmem:[#allocation3 + $0x60] sm:$0xff] %vm1106, %v1067
        %1112 = vst.msk [vmem:[#allocation3 + $0x78] sm:$0xff] %vm1106, %v1069
        %1113 = vst.msk [vmem:[#allocation3 + $0x90] sm:$0xff] %vm1106, %v1071
        %1114 = vst.msk [vmem:[#allocation3 + $0xa8] sm:$0xff] %vm1106, %v1073
        %1115 = vst.msk [vmem:[#allocation3 + $0xc0] sm:$0xff] %vm1106, %v1075
        %1116 = vst.msk [vmem:[#allocation3 + $0xd8] sm:$0xff] %vm1106, %v1077
        %1117 = vst.msk [vmem:[#allocation3 + $0xf0] sm:$0xff] %vm1106, %v1079
        %1118 = vst.msk [vmem:[#allocation3 + $0x108] sm:$0xff] %vm1106, %v1081
        %1119 = vst.msk [vmem:[#allocation3 + $0x120] sm:$0xff] %vm1106, %v1083
        %1120 = vst.msk [vmem:[#allocation3 + $0x138] sm:$0xff] %vm1106, %v1085
        %1121 = vst.msk [vmem:[#allocation3 + $0x150] sm:$0xff] %vm1106, %v1087
        %1122 = vst.msk [vmem:[#allocation3 + $0x168] sm:$0xff] %vm1106, %v1089
        %v1123 = vld [vmem:[%s877] sm:$0xff]
        %v1124 = vld [vmem:[%s877 + $0x8] sm:$0xff]
        %v1125 = vld [vmem:[%s877 + $0x18] sm:$0xff]
        %v1126 = vld [vmem:[%s877 + $0x20] sm:$0xff]
        %v1127 = vld [vmem:[%s877 + $0x30] sm:$0xff]
        %v1128 = vld [vmem:[%s877 + $0x38] sm:$0xff]
        %v1129 = vld [vmem:[%s877 + $0x48] sm:$0xff]
        %v1130 = vld [vmem:[%s877 + $0x50] sm:$0xff]
        %v1131 = vld [vmem:[%s877 + $0x60] sm:$0xff]
        %v1132 = vld [vmem:[%s877 + $0x68] sm:$0xff]
        %v1133 = vld [vmem:[%s877 + $0x78] sm:$0xff]
        %v1134 = vld [vmem:[%s877 + $0x80] sm:$0xff]
        %v1135 = vld [vmem:[%s877 + $0x90] sm:$0xff]
        %v1136 = vld [vmem:[%s877 + $0x98] sm:$0xff]
        %v1137 = vld [vmem:[%s877 + $0xa8] sm:$0xff]
        %v1138 = vld [vmem:[%s877 + $0xb0] sm:$0xff]
        %1155 = vrot.lane.b32.xlu0 %v1123, 96
        %v1156 = vpop.permute.xlu0 %1155
        %1157 = vrot.lane.b32.xlu0 %v1124, 96
        %v1158 = vpop.permute.xlu0 %1157
        %1159 = vrot.lane.b32.xlu0 %v1125, 96
        %v1160 = vpop.permute.xlu0 %1159
        %1161 = vrot.lane.b32.xlu0 %v1126, 96
        %v1162 = vpop.permute.xlu0 %1161
        %1163 = vrot.lane.b32.xlu0 %v1127, 96
        %v1164 = vpop.permute.xlu0 %1163
        %1165 = vrot.lane.b32.xlu0 %v1128, 96
        %v1166 = vpop.permute.xlu0 %1165
        %1167 = vrot.lane.b32.xlu0 %v1129, 96
        %v1168 = vpop.permute.xlu0 %1167
        %1169 = vrot.lane.b32.xlu0 %v1130, 96
        %v1170 = vpop.permute.xlu0 %1169
        %1171 = vrot.lane.b32.xlu0 %v1131, 96
        %v1172 = vpop.permute.xlu0 %1171
        %1173 = vrot.lane.b32.xlu0 %v1132, 96
        %v1174 = vpop.permute.xlu0 %1173
        %1175 = vrot.lane.b32.xlu0 %v1133, 96
        %v1176 = vpop.permute.xlu0 %1175
        %1177 = vrot.lane.b32.xlu0 %v1134, 96
        %v1178 = vpop.permute.xlu0 %1177
        %1179 = vrot.lane.b32.xlu0 %v1135, 96
        %v1180 = vpop.permute.xlu0 %1179
        %1181 = vrot.lane.b32.xlu0 %v1136, 96
        %v1182 = vpop.permute.xlu0 %1181
        %1183 = vrot.lane.b32.xlu0 %v1137, 96
        %v1184 = vpop.permute.xlu0 %1183
        %1185 = vrot.lane.b32.xlu0 %v1138, 96
        %v1186 = vpop.permute.xlu0 %1185
        %vm1203 = vcmask 1048320
        %1204 = vst.msk [vmem:[#allocation3] sm:$0xff] %vm1203, %v1156
        %1205 = vst.msk [vmem:[#allocation3 + $0x18] sm:$0xff] %vm1203, %v1158
        %1206 = vst.msk [vmem:[#allocation3 + $0x30] sm:$0xff] %vm1203, %v1160
        %1207 = vst.msk [vmem:[#allocation3 + $0x48] sm:$0xff] %vm1203, %v1162
        %1208 = vst.msk [vmem:[#allocation3 + $0x60] sm:$0xff] %vm1203, %v1164
        %1209 = vst.msk [vmem:[#allocation3 + $0x78] sm:$0xff] %vm1203, %v1166
        %1210 = vst.msk [vmem:[#allocation3 + $0x90] sm:$0xff] %vm1203, %v1168
        %1211 = vst.msk [vmem:[#allocation3 + $0xa8] sm:$0xff] %vm1203, %v1170
        %1212 = vst.msk [vmem:[#allocation3 + $0xc0] sm:$0xff] %vm1203, %v1172
        %1213 = vst.msk [vmem:[#allocation3 + $0xd8] sm:$0xff] %vm1203, %v1174
        %1214 = vst.msk [vmem:[#allocation3 + $0xf0] sm:$0xff] %vm1203, %v1176
        %1215 = vst.msk [vmem:[#allocation3 + $0x108] sm:$0xff] %vm1203, %v1178
        %1216 = vst.msk [vmem:[#allocation3 + $0x120] sm:$0xff] %vm1203, %v1180
        %1217 = vst.msk [vmem:[#allocation3 + $0x138] sm:$0xff] %vm1203, %v1182
        %1218 = vst.msk [vmem:[#allocation3 + $0x150] sm:$0xff] %vm1203, %v1184
        %1219 = vst.msk [vmem:[#allocation3 + $0x168] sm:$0xff] %vm1203, %v1186
        %v1220 = vld [vmem:[%s877 + $0x1] sm:$0xff]
        %v1221 = vld [vmem:[%s877 + $0x9] sm:$0xff]
        %v1222 = vld [vmem:[%s877 + $0x19] sm:$0xff]
        %v1223 = vld [vmem:[%s877 + $0x21] sm:$0xff]
        %v1224 = vld [vmem:[%s877 + $0x31] sm:$0xff]
        %v1225 = vld [vmem:[%s877 + $0x39] sm:$0xff]
        %v1226 = vld [vmem:[%s877 + $0x49] sm:$0xff]
        %v1227 = vld [vmem:[%s877 + $0x51] sm:$0xff]
        %v1228 = vld [vmem:[%s877 + $0x61] sm:$0xff]
        %v1229 = vld [vmem:[%s877 + $0x69] sm:$0xff]
        %v1230 = vld [vmem:[%s877 + $0x79] sm:$0xff]
        %v1231 = vld [vmem:[%s877 + $0x81] sm:$0xff]
        %v1232 = vld [vmem:[%s877 + $0x91] sm:$0xff]
        %v1233 = vld [vmem:[%s877 + $0x99] sm:$0xff]
        %v1234 = vld [vmem:[%s877 + $0xa9] sm:$0xff]
        %v1235 = vld [vmem:[%s877 + $0xb1] sm:$0xff]
        %1236 = vst.msk [vmem:[#allocation3 + $0x8] sm:$0xff] %vm874, %v1220
        %1237 = vst.msk [vmem:[#allocation3 + $0x20] sm:$0xff] %vm874, %v1221
        %1238 = vst.msk [vmem:[#allocation3 + $0x38] sm:$0xff] %vm874, %v1222
        %1239 = vst.msk [vmem:[#allocation3 + $0x50] sm:$0xff] %vm874, %v1223
        %1240 = vst.msk [vmem:[#allocation3 + $0x68] sm:$0xff] %vm874, %v1224
        %1241 = vst.msk [vmem:[#allocation3 + $0x80] sm:$0xff] %vm874, %v1225
        %1242 = vst.msk [vmem:[#allocation3 + $0x98] sm:$0xff] %vm874, %v1226
        %1243 = vst.msk [vmem:[#allocation3 + $0xb0] sm:$0xff] %vm874, %v1227
        %1244 = vst.msk [vmem:[#allocation3 + $0xc8] sm:$0xff] %vm874, %v1228
        %1245 = vst.msk [vmem:[#allocation3 + $0xe0] sm:$0xff] %vm874, %v1229
        %1246 = vst.msk [vmem:[#allocation3 + $0xf8] sm:$0xff] %vm874, %v1230
        %1247 = vst.msk [vmem:[#allocation3 + $0x110] sm:$0xff] %vm874, %v1231
        %1248 = vst.msk [vmem:[#allocation3 + $0x128] sm:$0xff] %vm874, %v1232
        %1249 = vst.msk [vmem:[#allocation3 + $0x140] sm:$0xff] %vm874, %v1233
        %1250 = vst.msk [vmem:[#allocation3 + $0x158] sm:$0xff] %vm874, %v1234
        %1251 = vst.msk [vmem:[#allocation3 + $0x170] sm:$0xff] %vm874, %v1235
        %v1252 = vld [vmem:[%s877 + $0x2] sm:$0xff]
        %v1253 = vld [vmem:[%s877 + $0xa] sm:$0xff]
        %v1254 = vld [vmem:[%s877 + $0x1a] sm:$0xff]
        %v1255 = vld [vmem:[%s877 + $0x22] sm:$0xff]
        %v1256 = vld [vmem:[%s877 + $0x32] sm:$0xff]
        %v1257 = vld [vmem:[%s877 + $0x3a] sm:$0xff]
        %v1258 = vld [vmem:[%s877 + $0x4a] sm:$0xff]
        %v1259 = vld [vmem:[%s877 + $0x52] sm:$0xff]
        %v1260 = vld [vmem:[%s877 + $0x62] sm:$0xff]
        %v1261 = vld [vmem:[%s877 + $0x6a] sm:$0xff]
        %v1262 = vld [vmem:[%s877 + $0x7a] sm:$0xff]
        %v1263 = vld [vmem:[%s877 + $0x82] sm:$0xff]
        %v1264 = vld [vmem:[%s877 + $0x92] sm:$0xff]
        %v1265 = vld [vmem:[%s877 + $0x9a] sm:$0xff]
        %v1266 = vld [vmem:[%s877 + $0xaa] sm:$0xff]
        %v1267 = vld [vmem:[%s877 + $0xb2] sm:$0xff]
        %1284 = vrot.lane.b32.xlu0 %v1252, 32
        %v1285 = vpop.permute.xlu0 %1284
        %1286 = vrot.lane.b32.xlu0 %v1253, 32
        %v1287 = vpop.permute.xlu0 %1286
        %1288 = vrot.lane.b32.xlu0 %v1254, 32
        %v1289 = vpop.permute.xlu0 %1288
        %1290 = vrot.lane.b32.xlu0 %v1255, 32
        %v1291 = vpop.permute.xlu0 %1290
        %1292 = vrot.lane.b32.xlu0 %v1256, 32
        %v1293 = vpop.permute.xlu0 %1292
        %1294 = vrot.lane.b32.xlu0 %v1257, 32
        %v1295 = vpop.permute.xlu0 %1294
        %1296 = vrot.lane.b32.xlu0 %v1258, 32
        %v1297 = vpop.permute.xlu0 %1296
        %1298 = vrot.lane.b32.xlu0 %v1259, 32
        %v1299 = vpop.permute.xlu0 %1298
        %1300 = vrot.lane.b32.xlu0 %v1260, 32
        %v1301 = vpop.permute.xlu0 %1300
        %1302 = vrot.lane.b32.xlu0 %v1261, 32
        %v1303 = vpop.permute.xlu0 %1302
        %1304 = vrot.lane.b32.xlu0 %v1262, 32
        %v1305 = vpop.permute.xlu0 %1304
        %1306 = vrot.lane.b32.xlu0 %v1263, 32
        %v1307 = vpop.permute.xlu0 %1306
        %1308 = vrot.lane.b32.xlu0 %v1264, 32
        %v1309 = vpop.permute.xlu0 %1308
        %1310 = vrot.lane.b32.xlu0 %v1265, 32
        %v1311 = vpop.permute.xlu0 %1310
        %1312 = vrot.lane.b32.xlu0 %v1266, 32
        %v1313 = vpop.permute.xlu0 %1312
        %1314 = vrot.lane.b32.xlu0 %v1267, 32
        %v1315 = vpop.permute.xlu0 %1314
        %1332 = vst.msk [vmem:[#allocation3 + $0x8] sm:$0xff] %vm1009, %v1285
        %1333 = vst.msk [vmem:[#allocation3 + $0x20] sm:$0xff] %vm1009, %v1287
        %1334 = vst.msk [vmem:[#allocation3 + $0x38] sm:$0xff] %vm1009, %v1289
        %1335 = vst.msk [vmem:[#allocation3 + $0x50] sm:$0xff] %vm1009, %v1291
        %1336 = vst.msk [vmem:[#allocation3 + $0x68] sm:$0xff] %vm1009, %v1293
        %1337 = vst.msk [vmem:[#allocation3 + $0x80] sm:$0xff] %vm1009, %v1295
        %1338 = vst.msk [vmem:[#allocation3 + $0x98] sm:$0xff] %vm1009, %v1297
        %1339 = vst.msk [vmem:[#allocation3 + $0xb0] sm:$0xff] %vm1009, %v1299
        %1340 = vst.msk [vmem:[#allocation3 + $0xc8] sm:$0xff] %vm1009, %v1301
        %1341 = vst.msk [vmem:[#allocation3 + $0xe0] sm:$0xff] %vm1009, %v1303
        %1342 = vst.msk [vmem:[#allocation3 + $0xf8] sm:$0xff] %vm1009, %v1305
        %1343 = vst.msk [vmem:[#allocation3 + $0x110] sm:$0xff] %vm1009, %v1307
        %1344 = vst.msk [vmem:[#allocation3 + $0x128] sm:$0xff] %vm1009, %v1309
        %1345 = vst.msk [vmem:[#allocation3 + $0x140] sm:$0xff] %vm1009, %v1311
        %1346 = vst.msk [vmem:[#allocation3 + $0x158] sm:$0xff] %vm1009, %v1313
        %1347 = vst.msk [vmem:[#allocation3 + $0x170] sm:$0xff] %vm1009, %v1315
        %s1348 = scalar_lea.vmem [#allocation2], 48
        %v1349 = vld [vmem:[%s1348] sm:$0xff]
        %v1350 = vld [vmem:[%s1348 + $0x8] sm:$0xff]
        %v1351 = vld [vmem:[%s1348 + $0x18] sm:$0xff]
        %v1352 = vld [vmem:[%s1348 + $0x20] sm:$0xff]
        %v1353 = vld [vmem:[%s1348 + $0x30] sm:$0xff]
        %v1354 = vld [vmem:[%s1348 + $0x38] sm:$0xff]
        %v1355 = vld [vmem:[%s1348 + $0x48] sm:$0xff]
        %v1356 = vld [vmem:[%s1348 + $0x50] sm:$0xff]
        %v1357 = vld [vmem:[%s1348 + $0x60] sm:$0xff]
        %v1358 = vld [vmem:[%s1348 + $0x68] sm:$0xff]
        %v1359 = vld [vmem:[%s1348 + $0x78] sm:$0xff]
        %v1360 = vld [vmem:[%s1348 + $0x80] sm:$0xff]
        %v1361 = vld [vmem:[%s1348 + $0x90] sm:$0xff]
        %v1362 = vld [vmem:[%s1348 + $0x98] sm:$0xff]
        %v1363 = vld [vmem:[%s1348 + $0xa8] sm:$0xff]
        %v1364 = vld [vmem:[%s1348 + $0xb0] sm:$0xff]
        %1381 = vrot.lane.b32.xlu0 %v1349, 64
        %v1382 = vpop.permute.xlu0 %1381
        %1383 = vrot.lane.b32.xlu0 %v1350, 64
        %v1384 = vpop.permute.xlu0 %1383
        %1385 = vrot.lane.b32.xlu0 %v1351, 64
        %v1386 = vpop.permute.xlu0 %1385
        %1387 = vrot.lane.b32.xlu0 %v1352, 64
        %v1388 = vpop.permute.xlu0 %1387
        %1389 = vrot.lane.b32.xlu0 %v1353, 64
        %v1390 = vpop.permute.xlu0 %1389
        %1391 = vrot.lane.b32.xlu0 %v1354, 64
        %v1392 = vpop.permute.xlu0 %1391
        %1393 = vrot.lane.b32.xlu0 %v1355, 64
        %v1394 = vpop.permute.xlu0 %1393
        %1395 = vrot.lane.b32.xlu0 %v1356, 64
        %v1396 = vpop.permute.xlu0 %1395
        %1397 = vrot.lane.b32.xlu0 %v1357, 64
        %v1398 = vpop.permute.xlu0 %1397
        %1399 = vrot.lane.b32.xlu0 %v1358, 64
        %v1400 = vpop.permute.xlu0 %1399
        %1401 = vrot.lane.b32.xlu0 %v1359, 64
        %v1402 = vpop.permute.xlu0 %1401
        %1403 = vrot.lane.b32.xlu0 %v1360, 64
        %v1404 = vpop.permute.xlu0 %1403
        %1405 = vrot.lane.b32.xlu0 %v1361, 64
        %v1406 = vpop.permute.xlu0 %1405
        %1407 = vrot.lane.b32.xlu0 %v1362, 64
        %v1408 = vpop.permute.xlu0 %1407
        %1409 = vrot.lane.b32.xlu0 %v1363, 64
        %v1410 = vpop.permute.xlu0 %1409
        %1411 = vrot.lane.b32.xlu0 %v1364, 64
        %v1412 = vpop.permute.xlu0 %1411
        %1429 = vst.msk [vmem:[#allocation3 + $0x8] sm:$0xff] %vm1106, %v1382
        %1430 = vst.msk [vmem:[#allocation3 + $0x20] sm:$0xff] %vm1106, %v1384
        %1431 = vst.msk [vmem:[#allocation3 + $0x38] sm:$0xff] %vm1106, %v1386
        %1432 = vst.msk [vmem:[#allocation3 + $0x50] sm:$0xff] %vm1106, %v1388
        %1433 = vst.msk [vmem:[#allocation3 + $0x68] sm:$0xff] %vm1106, %v1390
        %1434 = vst.msk [vmem:[#allocation3 + $0x80] sm:$0xff] %vm1106, %v1392
        %1435 = vst.msk [vmem:[#allocation3 + $0x98] sm:$0xff] %vm1106, %v1394
        %1436 = vst.msk [vmem:[#allocation3 + $0xb0] sm:$0xff] %vm1106, %v1396
        %1437 = vst.msk [vmem:[#allocation3 + $0xc8] sm:$0xff] %vm1106, %v1398
        %1438 = vst.msk [vmem:[#allocation3 + $0xe0] sm:$0xff] %vm1106, %v1400
        %1439 = vst.msk [vmem:[#allocation3 + $0xf8] sm:$0xff] %vm1106, %v1402
        %1440 = vst.msk [vmem:[#allocation3 + $0x110] sm:$0xff] %vm1106, %v1404
        %1441 = vst.msk [vmem:[#allocation3 + $0x128] sm:$0xff] %vm1106, %v1406
        %1442 = vst.msk [vmem:[#allocation3 + $0x140] sm:$0xff] %vm1106, %v1408
        %1443 = vst.msk [vmem:[#allocation3 + $0x158] sm:$0xff] %vm1106, %v1410
        %1444 = vst.msk [vmem:[#allocation3 + $0x170] sm:$0xff] %vm1106, %v1412
        %v1445 = vld [vmem:[%s1348 + $0x1] sm:$0xff]
        %v1446 = vld [vmem:[%s1348 + $0x9] sm:$0xff]
        %v1447 = vld [vmem:[%s1348 + $0x19] sm:$0xff]
        %v1448 = vld [vmem:[%s1348 + $0x21] sm:$0xff]
        %v1449 = vld [vmem:[%s1348 + $0x31] sm:$0xff]
        %v1450 = vld [vmem:[%s1348 + $0x39] sm:$0xff]
        %v1451 = vld [vmem:[%s1348 + $0x49] sm:$0xff]
        %v1452 = vld [vmem:[%s1348 + $0x51] sm:$0xff]
        %v1453 = vld [vmem:[%s1348 + $0x61] sm:$0xff]
        %v1454 = vld [vmem:[%s1348 + $0x69] sm:$0xff]
        %v1455 = vld [vmem:[%s1348 + $0x79] sm:$0xff]
        %v1456 = vld [vmem:[%s1348 + $0x81] sm:$0xff]
        %v1457 = vld [vmem:[%s1348 + $0x91] sm:$0xff]
        %v1458 = vld [vmem:[%s1348 + $0x99] sm:$0xff]
        %v1459 = vld [vmem:[%s1348 + $0xa9] sm:$0xff]
        %v1460 = vld [vmem:[%s1348 + $0xb1] sm:$0xff]
        %1477 = vrot.lane.b32.xlu0 %v1445, 96
        %v1478 = vpop.permute.xlu0 %1477
        %1479 = vrot.lane.b32.xlu0 %v1446, 96
        %v1480 = vpop.permute.xlu0 %1479
        %1481 = vrot.lane.b32.xlu0 %v1447, 96
        %v1482 = vpop.permute.xlu0 %1481
        %1483 = vrot.lane.b32.xlu0 %v1448, 96
        %v1484 = vpop.permute.xlu0 %1483
        %1485 = vrot.lane.b32.xlu0 %v1449, 96
        %v1486 = vpop.permute.xlu0 %1485
        %1487 = vrot.lane.b32.xlu0 %v1450, 96
        %v1488 = vpop.permute.xlu0 %1487
        %1489 = vrot.lane.b32.xlu0 %v1451, 96
        %v1490 = vpop.permute.xlu0 %1489
        %1491 = vrot.lane.b32.xlu0 %v1452, 96
        %v1492 = vpop.permute.xlu0 %1491
        %1493 = vrot.lane.b32.xlu0 %v1453, 96
        %v1494 = vpop.permute.xlu0 %1493
        %1495 = vrot.lane.b32.xlu0 %v1454, 96
        %v1496 = vpop.permute.xlu0 %1495
        %1497 = vrot.lane.b32.xlu0 %v1455, 96
        %v1498 = vpop.permute.xlu0 %1497
        %1499 = vrot.lane.b32.xlu0 %v1456, 96
        %v1500 = vpop.permute.xlu0 %1499
        %1501 = vrot.lane.b32.xlu0 %v1457, 96
        %v1502 = vpop.permute.xlu0 %1501
        %1503 = vrot.lane.b32.xlu0 %v1458, 96
        %v1504 = vpop.permute.xlu0 %1503
        %1505 = vrot.lane.b32.xlu0 %v1459, 96
        %v1506 = vpop.permute.xlu0 %1505
        %1507 = vrot.lane.b32.xlu0 %v1460, 96
        %v1508 = vpop.permute.xlu0 %1507
        %1525 = vst.msk [vmem:[#allocation3 + $0x8] sm:$0xff] %vm1203, %v1478
        %1526 = vst.msk [vmem:[#allocation3 + $0x20] sm:$0xff] %vm1203, %v1480
        %1527 = vst.msk [vmem:[#allocation3 + $0x38] sm:$0xff] %vm1203, %v1482
        %1528 = vst.msk [vmem:[#allocation3 + $0x50] sm:$0xff] %vm1203, %v1484
        %1529 = vst.msk [vmem:[#allocation3 + $0x68] sm:$0xff] %vm1203, %v1486
        %1530 = vst.msk [vmem:[#allocation3 + $0x80] sm:$0xff] %vm1203, %v1488
        %1531 = vst.msk [vmem:[#allocation3 + $0x98] sm:$0xff] %vm1203, %v1490
        %1532 = vst.msk [vmem:[#allocation3 + $0xb0] sm:$0xff] %vm1203, %v1492
        %1533 = vst.msk [vmem:[#allocation3 + $0xc8] sm:$0xff] %vm1203, %v1494
        %1534 = vst.msk [vmem:[#allocation3 + $0xe0] sm:$0xff] %vm1203, %v1496
        %1535 = vst.msk [vmem:[#allocation3 + $0xf8] sm:$0xff] %vm1203, %v1498
        %1536 = vst.msk [vmem:[#allocation3 + $0x110] sm:$0xff] %vm1203, %v1500
        %1537 = vst.msk [vmem:[#allocation3 + $0x128] sm:$0xff] %vm1203, %v1502
        %1538 = vst.msk [vmem:[#allocation3 + $0x140] sm:$0xff] %vm1203, %v1504
        %1539 = vst.msk [vmem:[#allocation3 + $0x158] sm:$0xff] %vm1203, %v1506
        %1540 = vst.msk [vmem:[#allocation3 + $0x170] sm:$0xff] %vm1203, %v1508
        %v1541 = vld [vmem:[%s1348 + $0x2] sm:$0xff]
        %v1542 = vld [vmem:[%s1348 + $0xa] sm:$0xff]
        %v1543 = vld [vmem:[%s1348 + $0x1a] sm:$0xff]
        %v1544 = vld [vmem:[%s1348 + $0x22] sm:$0xff]
        %v1545 = vld [vmem:[%s1348 + $0x32] sm:$0xff]
        %v1546 = vld [vmem:[%s1348 + $0x3a] sm:$0xff]
        %v1547 = vld [vmem:[%s1348 + $0x4a] sm:$0xff]
        %v1548 = vld [vmem:[%s1348 + $0x52] sm:$0xff]
        %v1549 = vld [vmem:[%s1348 + $0x62] sm:$0xff]
        %v1550 = vld [vmem:[%s1348 + $0x6a] sm:$0xff]
        %v1551 = vld [vmem:[%s1348 + $0x7a] sm:$0xff]
        %v1552 = vld [vmem:[%s1348 + $0x82] sm:$0xff]
        %v1553 = vld [vmem:[%s1348 + $0x92] sm:$0xff]
        %v1554 = vld [vmem:[%s1348 + $0x9a] sm:$0xff]
        %v1555 = vld [vmem:[%s1348 + $0xaa] sm:$0xff]
        %v1556 = vld [vmem:[%s1348 + $0xb2] sm:$0xff]
        %1557 = vst.msk [vmem:[#allocation3 + $0x10] sm:$0xff] %vm874, %v1541
        %1558 = vst.msk [vmem:[#allocation3 + $0x28] sm:$0xff] %vm874, %v1542
        %1559 = vst.msk [vmem:[#allocation3 + $0x40] sm:$0xff] %vm874, %v1543
        %1560 = vst.msk [vmem:[#allocation3 + $0x58] sm:$0xff] %vm874, %v1544
        %1561 = vst.msk [vmem:[#allocation3 + $0x70] sm:$0xff] %vm874, %v1545
        %1562 = vst.msk [vmem:[#allocation3 + $0x88] sm:$0xff] %vm874, %v1546
        %1563 = vst.msk [vmem:[#allocation3 + $0xa0] sm:$0xff] %vm874, %v1547
        %1564 = vst.msk [vmem:[#allocation3 + $0xb8] sm:$0xff] %vm874, %v1548
        %1565 = vst.msk [vmem:[#allocation3 + $0xd0] sm:$0xff] %vm874, %v1549
        %1566 = vst.msk [vmem:[#allocation3 + $0xe8] sm:$0xff] %vm874, %v1550
        %1567 = vst.msk [vmem:[#allocation3 + $0x100] sm:$0xff] %vm874, %v1551
        %1568 = vst.msk [vmem:[#allocation3 + $0x118] sm:$0xff] %vm874, %v1552
        %1569 = vst.msk [vmem:[#allocation3 + $0x130] sm:$0xff] %vm874, %v1553
        %1570 = vst.msk [vmem:[#allocation3 + $0x148] sm:$0xff] %vm874, %v1554
        %1571 = vst.msk [vmem:[#allocation3 + $0x160] sm:$0xff] %vm874, %v1555
        %1572 = vst.msk [vmem:[#allocation3 + $0x178] sm:$0xff] %vm874, %v1556
        %v1573 = vld [vmem:[#allocation3] sm:$0xff]
        %v1574 = vld [vmem:[#allocation3 + $0x8] sm:$0xff]
        %v1575 = vld [vmem:[#allocation3 + $0x10] sm:$0xff]
        %v1576 = vld [vmem:[#allocation3 + $0x18] sm:$0xff]
        %v1577 = vld [vmem:[#allocation3 + $0x20] sm:$0xff]
        %v1578 = vld [vmem:[#allocation3 + $0x28] sm:$0xff]
        %v1579 = vld [vmem:[#allocation3 + $0x30] sm:$0xff]
        %v1580 = vld [vmem:[#allocation3 + $0x38] sm:$0xff]
        %v1581 = vld [vmem:[#allocation3 + $0x40] sm:$0xff]
        %v1582 = vld [vmem:[#allocation3 + $0x48] sm:$0xff]
        %v1583 = vld [vmem:[#allocation3 + $0x50] sm:$0xff]
        %v1584 = vld [vmem:[#allocation3 + $0x58] sm:$0xff]
        %v1585 = vld [vmem:[#allocation3 + $0x60] sm:$0xff]
        %v1586 = vld [vmem:[#allocation3 + $0x68] sm:$0xff]
        %v1587 = vld [vmem:[#allocation3 + $0x70] sm:$0xff]
        %v1588 = vld [vmem:[#allocation3 + $0x78] sm:$0xff]
        %v1589 = vld [vmem:[#allocation3 + $0x80] sm:$0xff]
        %v1590 = vld [vmem:[#allocation3 + $0x88] sm:$0xff]
        %v1591 = vld [vmem:[#allocation3 + $0x90] sm:$0xff]
        %v1592 = vld [vmem:[#allocation3 + $0x98] sm:$0xff]
        %v1593 = vld [vmem:[#allocation3 + $0xa0] sm:$0xff]
        %v1594 = vld [vmem:[#allocation3 + $0xa8] sm:$0xff]
        %v1595 = vld [vmem:[#allocation3 + $0xb0] sm:$0xff]
        %v1596 = vld [vmem:[#allocation3 + $0xb8] sm:$0xff]
        %v1597 = vld [vmem:[#allocation3 + $0xc0] sm:$0xff]
        %v1598 = vld [vmem:[#allocation3 + $0xc8] sm:$0xff]
        %v1599 = vld [vmem:[#allocation3 + $0xd0] sm:$0xff]
        %v1600 = vld [vmem:[#allocation3 + $0xd8] sm:$0xff]
        %v1601 = vld [vmem:[#allocation3 + $0xe0] sm:$0xff]
        %v1602 = vld [vmem:[#allocation3 + $0xe8] sm:$0xff]
        %v1603 = vld [vmem:[#allocation3 + $0xf0] sm:$0xff]
        %v1604 = vld [vmem:[#allocation3 + $0xf8] sm:$0xff]
        %v1605 = vld [vmem:[#allocation3 + $0x100] sm:$0xff]
        %v1606 = vld [vmem:[#allocation3 + $0x108] sm:$0xff]
        %v1607 = vld [vmem:[#allocation3 + $0x110] sm:$0xff]
        %v1608 = vld [vmem:[#allocation3 + $0x118] sm:$0xff]
        %v1609 = vld [vmem:[#allocation3 + $0x120] sm:$0xff]
        %v1610 = vld [vmem:[#allocation3 + $0x128] sm:$0xff]
        %v1611 = vld [vmem:[#allocation3 + $0x130] sm:$0xff]
        %v1612 = vld [vmem:[#allocation3 + $0x138] sm:$0xff]
        %v1613 = vld [vmem:[#allocation3 + $0x140] sm:$0xff]
        %v1614 = vld [vmem:[#allocation3 + $0x148] sm:$0xff]
        %v1615 = vld [vmem:[#allocation3 + $0x150] sm:$0xff]
        %v1616 = vld [vmem:[#allocation3 + $0x158] sm:$0xff]
        %v1617 = vld [vmem:[#allocation3 + $0x160] sm:$0xff]
        %v1618 = vld [vmem:[#allocation3 + $0x168] sm:$0xff]
        %v1619 = vld [vmem:[#allocation3 + $0x170] sm:$0xff]
        %v1620 = vld [vmem:[#allocation3 + $0x178] sm:$0xff]
        %v1621 = vld [vmem:[%s4] sm:$0xff]
        %v1622 = vld [vmem:[%s4 + $0x8] sm:$0xff]
        %v1623 = vld [vmem:[%s4 + $0x10] sm:$0xff]
        %v1624 = vld [vmem:[%s4 + $0x18] sm:$0xff]
        %v1625 = vld [vmem:[%s4 + $0x20] sm:$0xff]
        %v1626 = vld [vmem:[%s4 + $0x28] sm:$0xff]
        %v1627 = vld [vmem:[%s4 + $0x30] sm:$0xff]
        %v1628 = vld [vmem:[%s4 + $0x38] sm:$0xff]
        %v1629 = vld [vmem:[%s4 + $0x40] sm:$0xff]
        %v1630 = vld [vmem:[%s4 + $0x48] sm:$0xff]
        %v1631 = vld [vmem:[%s4 + $0x50] sm:$0xff]
        %v1632 = vld [vmem:[%s4 + $0x58] sm:$0xff]
        %v1633 = vld [vmem:[%s4 + $0x60] sm:$0xff]
        %v1634 = vld [vmem:[%s4 + $0x68] sm:$0xff]
        %v1635 = vld [vmem:[%s4 + $0x70] sm:$0xff]
        %v1636 = vld [vmem:[%s4 + $0x78] sm:$0xff]
        %v1637 = vld [vmem:[%s4 + $0x80] sm:$0xff]
        %v1638 = vld [vmem:[%s4 + $0x88] sm:$0xff]
        %v1639 = vld [vmem:[%s4 + $0x90] sm:$0xff]
        %v1640 = vld [vmem:[%s4 + $0x98] sm:$0xff]
        %v1641 = vld [vmem:[%s4 + $0xa0] sm:$0xff]
        %v1642 = vld [vmem:[%s4 + $0xa8] sm:$0xff]
        %v1643 = vld [vmem:[%s4 + $0xb0] sm:$0xff]
        %v1644 = vld [vmem:[%s4 + $0xb8] sm:$0xff]
        %v1645 = vld [vmem:[%s4 + $0xc0] sm:$0xff]
        %v1646 = vld [vmem:[%s4 + $0xc8] sm:$0xff]
        %v1647 = vld [vmem:[%s4 + $0xd0] sm:$0xff]
        %v1648 = vld [vmem:[%s4 + $0xd8] sm:$0xff]
        %v1649 = vld [vmem:[%s4 + $0xe0] sm:$0xff]
        %v1650 = vld [vmem:[%s4 + $0xe8] sm:$0xff]
        %v1651 = vld [vmem:[%s4 + $0xf0] sm:$0xff]
        %v1652 = vld [vmem:[%s4 + $0xf8] sm:$0xff]
        %v1653 = vld [vmem:[%s4 + $0x100] sm:$0xff]
        %v1654 = vld [vmem:[%s4 + $0x108] sm:$0xff]
        %v1655 = vld [vmem:[%s4 + $0x110] sm:$0xff]
        %v1656 = vld [vmem:[%s4 + $0x118] sm:$0xff]
        %v1657 = vld [vmem:[%s7] sm:$0x1]
        %v1659 = vlaneseq
        %v1660 = vshrl.u32 %v1659, 7
        %v1661 = vsub.s32 0, %v1660
        %v1662 = vrot.slane %v1657, %v1661
        %v1665 = vsel %vm874, %v1575, 0
        %v1668 = vsel %vm874, %v1578, 0
        %v1671 = vsel %vm874, %v1581, 0
        %v1674 = vsel %vm874, %v1584, 0
        %v1677 = vsel %vm874, %v1587, 0
        %v1680 = vsel %vm874, %v1590, 0
        %v1683 = vsel %vm874, %v1593, 0
        %v1686 = vsel %vm874, %v1596, 0
        %v1689 = vsel %vm874, %v1599, 0
        %v1692 = vsel %vm874, %v1602, 0
        %v1695 = vsel %vm874, %v1605, 0
        %v1698 = vsel %vm874, %v1608, 0
        %v1701 = vsel %vm874, %v1611, 0
        %v1704 = vsel %vm874, %v1614, 0
        %v1707 = vsel %vm874, %v1617, 0
        %v1710 = vsel %vm874, %v1620, 0
        %1712 = vmatprep.subr.mxu0 0.0
        %1713 = vmatpush1.msra.mxu0 %v1621
        %1714 = vmatprep.subr.mxu0 0.0
        %1715 = vmatpush1.msra.mxu0 %v1622
        %1716 = vmatprep.subr.mxu0 0.0
        %1717 = vmatpush1.msra.mxu0 %v1623
        %1718 = vmatprep.subr.mxu0 0.0
        %1719 = vmatpush1.msra.mxu0 %v1624
        %1720 = vmatprep.subr.mxu0 0.0
        %1721 = vmatpush1.msra.mxu0 %v1625
        %1722 = vmatprep.subr.mxu0 0.0
        %1723 = vmatpush1.msra.mxu0 %v1626
        %1724 = vmatprep.subr.mxu0 0.0
        %1725 = vmatpush1.msra.mxu0 %v1627
        %1726 = vmatprep.subr.mxu0 0.0
        %1727 = vmatpush1.msra.mxu0 %v1628
        %1728 = vmatprep.subr.mxu0 0.0
        %1729 = vmatpush1.msra.mxu0 %v1629
        %1730 = vmatprep.subr.mxu0 0.0
        %1731 = vmatpush1.msra.mxu0 %v1630
        %1732 = vmatprep.subr.mxu0 0.0
        %1733 = vmatpush1.msra.mxu0 %v1631
        %1734 = vmatprep.subr.mxu0 0.0
        %1735 = vmatpush1.msra.mxu0 %v1632
        %1736 = vmatprep.subr.mxu0 0.0
        %1737 = vmatpush1.msra.mxu0 %v1633
        %1738 = vmatprep.subr.mxu0 0.0
        %1739 = vmatpush1.msra.mxu0 %v1634
        %1740 = vmatprep.subr.mxu0 0.0
        %1741 = vmatpush1.msra.mxu0 %v1635
        %1742 = vmatprep.subr.mxu0 0.0
        %1743 = vmatpush1.msra.mxu0 %v1636
        %1744 = vmatprep.subr.mxu0 0.0
        %1745 = vmatpush1.msra.mxu0 %v1637
        %1746 = vmatprep.subr.mxu0 0.0
        %1747 = vmatpush1.msra.mxu0 %v1638
        %1748 = vmatprep.subr.mxu0 0.0
        %1749 = vmatpush1.msra.mxu0 %v1639
        %1750 = vmatprep.subr.mxu0 0.0
        %1751 = vmatpush1.msra.mxu0 %v1640
        %1752 = vmatprep.subr.mxu0 0.0
        %1753 = vmatpush1.msra.mxu0 %v1641
        %1754 = vmatprep.subr.mxu0 0.0
        %1755 = vmatpush1.msra.mxu0 %v1642
        %1756 = vmatprep.subr.mxu0 0.0
        %1757 = vmatpush1.msra.mxu0 %v1643
        %1758 = vmatprep.subr.mxu0 0.0
        %1759 = vmatpush1.msra.mxu0 %v1644
        %1760 = vmatprep.subr.mxu0 0.0
        %1761 = vmatpush1.msra.mxu0 %v1645
        %1762 = vmatprep.subr.mxu0 0.0
        %1763 = vmatpush1.msra.mxu0 %v1646
        %1764 = vmatprep.subr.mxu0 0.0
        %1765 = vmatpush1.msra.mxu0 %v1647
        %1766 = vmatprep.subr.mxu0 0.0
        %1767 = vmatpush1.msra.mxu0 %v1648
        %1768 = vmatprep.subr.mxu0 0.0
        %1769 = vmatpush1.msra.mxu0 %v1649
        %1770 = vmatprep.subr.mxu0 0.0
        %1771 = vmatpush1.msra.mxu0 %v1650
        %1772 = vmatprep.subr.mxu0 0.0
        %1773 = vmatpush1.msra.mxu0 %v1651
        %1774 = vmatprep.subr.mxu0 0.0
        %1775 = vmatpush1.msra.mxu0 %v1652
        %1776 = vmatprep.mubr.f32.mxu0 %v1574
        %1777 = vmatmul.mubr.f32.gmra.mrb[0].mxu0 %v1573
        %v1778 = vpop.f32.mrb[0].mxu0
        %v1779 = vadd.f32 %v1662, %v1778
        %v1780 = vpop.f32.mrb[0].mxu0
        %1781 = vmatprep.mubr.f32.mxu0 %v1577
        %1782 = vmatmul.mubr.f32.gmra.mrb[0].mxu0 %v1576
        %v1783 = vpop.f32.mrb[0].mxu0
        %v1784 = vadd.f32 %v1662, %v1783
        %v1785 = vpop.f32.mrb[0].mxu0
        %1786 = vmatprep.mubr.f32.mxu0 %v1580
        %1787 = vmatmul.mubr.f32.gmra.mrb[0].mxu0 %v1579
        %v1788 = vpop.f32.mrb[0].mxu0
        %v1789 = vadd.f32 %v1662, %v1788
        %v1790 = vpop.f32.mrb[0].mxu0
        %1791 = vmatprep.mubr.f32.mxu0 %v1583
        %1792 = vmatmul.mubr.f32.gmra.mrb[0].mxu0 %v1582
        %v1793 = vpop.f32.mrb[0].mxu0
        %v1794 = vadd.f32 %v1662, %v1793
        %v1795 = vpop.f32.mrb[0].mxu0
        %1796 = vmatprep.mubr.f32.mxu0 %v1586
        %1797 = vmatmul.mubr.f32.gmra.mrb[0].mxu0 %v1585
        %v1798 = vpop.f32.mrb[0].mxu0
        %v1799 = vadd.f32 %v1662, %v1798
        %v1800 = vpop.f32.mrb[0].mxu0
        %1801 = vmatprep.mubr.f32.mxu0 %v1589
        %1802 = vmatmul.mubr.f32.gmra.mrb[0].mxu0 %v1588
        %v1803 = vpop.f32.mrb[0].mxu0
        %v1804 = vadd.f32 %v1662, %v1803
        %v1805 = vpop.f32.mrb[0].mxu0
        %1806 = vmatprep.mubr.f32.mxu0 %v1592
        %1807 = vmatmul.mubr.f32.gmra.mrb[0].mxu0 %v1591
        %v1808 = vpop.f32.mrb[0].mxu0
        %v1809 = vadd.f32 %v1662, %v1808
        %v1810 = vpop.f32.mrb[0].mxu0
        %1811 = vmatprep.mubr.f32.mxu0 %v1595
        %1812 = vmatmul.mubr.f32.gmra.mrb[0].mxu0 %v1594
        %v1813 = vpop.f32.mrb[0].mxu0
        %v1814 = vadd.f32 %v1662, %v1813
        %v1815 = vpop.f32.mrb[0].mxu0
        %1816 = vmatprep.mubr.f32.mxu0 %v1598
        %1817 = vmatmul.mubr.f32.gmra.mrb[0].mxu0 %v1597
        %v1818 = vpop.f32.mrb[0].mxu0
        %v1819 = vadd.f32 %v1662, %v1818
        %v1820 = vpop.f32.mrb[0].mxu0
        %1821 = vmatprep.mubr.f32.mxu0 %v1601
        %1822 = vmatmul.mubr.f32.gmra.mrb[0].mxu0 %v1600
        %v1823 = vpop.f32.mrb[0].mxu0
        %v1824 = vadd.f32 %v1662, %v1823
        %v1825 = vpop.f32.mrb[0].mxu0
        %1826 = vmatprep.mubr.f32.mxu0 %v1604
        %1827 = vmatmul.mubr.f32.gmra.mrb[0].mxu0 %v1603
        %v1828 = vpop.f32.mrb[0].mxu0
        %v1829 = vadd.f32 %v1662, %v1828
        %v1830 = vpop.f32.mrb[0].mxu0
        %1831 = vmatprep.mubr.f32.mxu0 %v1607
        %1832 = vmatmul.mubr.f32.gmra.mrb[0].mxu0 %v1606
        %v1833 = vpop.f32.mrb[0].mxu0
        %v1834 = vadd.f32 %v1662, %v1833
        %v1835 = vpop.f32.mrb[0].mxu0
        %1836 = vmatprep.mubr.f32.mxu0 %v1610
        %1837 = vmatmul.mubr.f32.gmra.mrb[0].mxu0 %v1609
        %v1838 = vpop.f32.mrb[0].mxu0
        %v1839 = vadd.f32 %v1662, %v1838
        %v1840 = vpop.f32.mrb[0].mxu0
        %1841 = vmatprep.mubr.f32.mxu0 %v1613
        %1842 = vmatmul.mubr.f32.gmra.mrb[0].mxu0 %v1612
        %v1843 = vpop.f32.mrb[0].mxu0
        %v1844 = vadd.f32 %v1662, %v1843
        %v1845 = vpop.f32.mrb[0].mxu0
        %1846 = vmatprep.mubr.f32.mxu0 %v1616
        %1847 = vmatmul.mubr.f32.gmra.mrb[0].mxu0 %v1615
        %v1848 = vpop.f32.mrb[0].mxu0
        %v1849 = vadd.f32 %v1662, %v1848
        %v1850 = vpop.f32.mrb[0].mxu0
        %1851 = vmatprep.mubr.f32.mxu0 %v1619
        %1852 = vmatmul.mubr.f32.gmra.mrb[0].mxu0 %v1618
        %v1853 = vpop.f32.mrb[0].mxu0
        %v1854 = vadd.f32 %v1662, %v1853
        %v1855 = vpop.f32.mrb[0].mxu0
        %1856 = vdwg.mxu0
        %1857 = vmatprep.subr.mxu0 0.0
        %1858 = vmatpush1.msra.mxu0 %v1653
        %1859 = vmatprep.subr.mxu0 0.0
        %1860 = vmatpush1.msra.mxu0 %v1654
        %1861 = vmatprep.subr.mxu0 0.0
        %1862 = vmatpush1.msra.mxu0 %v1655
        %1863 = vmatprep.subr.mxu0 0.0
        %1864 = vmatpush1.msra.mxu0 %v1656
        %1865 = vmatprep.subr.mxu0 0.0
        %1866 = vmatpush1.msra.mxu0 0.0
        %1867 = vmatprep.subr.mxu0 0.0
        %1868 = vmatpush1.msra.mxu0 0.0
        %1869 = vmatprep.subr.mxu0 0.0
        %1870 = vmatpush1.msra.mxu0 0.0
        %1871 = vmatprep.subr.mxu0 0.0
        %1872 = vmatpush1.msra.mxu0 0.0
        %1873 = vmatprep.subr.mxu0 0.0
        %1874 = vmatpush1.msra.mxu0 0.0
        %1875 = vmatprep.subr.mxu0 0.0
        %1876 = vmatpush1.msra.mxu0 0.0
        %1877 = vmatprep.subr.mxu0 0.0
        %1878 = vmatpush1.msra.mxu0 0.0
        %1879 = vmatprep.subr.mxu0 0.0
        %1880 = vmatpush1.msra.mxu0 0.0
        %1881 = vmatprep.subr.mxu0 0.0
        %1882 = vmatpush1.msra.mxu0 0.0
        %1883 = vmatprep.subr.mxu0 0.0
        %1884 = vmatpush1.msra.mxu0 0.0
        %1885 = vmatprep.subr.mxu0 0.0
        %1886 = vmatpush1.msra.mxu0 0.0
        %1887 = vmatprep.subr.mxu0 0.0
        %1888 = vmatpush1.msra.mxu0 0.0
        %1889 = vmatprep.subr.mxu0 0.0
        %1890 = vmatpush1.msra.mxu0 0.0
        %1891 = vmatprep.subr.mxu0 0.0
        %1892 = vmatpush1.msra.mxu0 0.0
        %1893 = vmatprep.subr.mxu0 0.0
        %1894 = vmatpush1.msra.mxu0 0.0
        %1895 = vmatprep.subr.mxu0 0.0
        %1896 = vmatpush1.msra.mxu0 0.0
        %1897 = vmatprep.subr.mxu0 0.0
        %1898 = vmatpush1.msra.mxu0 0.0
        %1899 = vmatprep.subr.mxu0 0.0
        %1900 = vmatpush1.msra.mxu0 0.0
        %1901 = vmatprep.subr.mxu0 0.0
        %1902 = vmatpush1.msra.mxu0 0.0
        %1903 = vmatprep.subr.mxu0 0.0
        %1904 = vmatpush1.msra.mxu0 0.0
        %1905 = vmatprep.subr.mxu0 0.0
        %1906 = vmatpush1.msra.mxu0 0.0
        %1907 = vmatprep.subr.mxu0 0.0
        %1908 = vmatpush1.msra.mxu0 0.0
        %1909 = vmatprep.subr.mxu0 0.0
        %1910 = vmatpush1.msra.mxu0 0.0
        %1911 = vmatprep.subr.mxu0 0.0
        %1912 = vmatpush1.msra.mxu0 0.0
        %1913 = vmatprep.subr.mxu0 0.0
        %1914 = vmatpush1.msra.mxu0 0.0
        %1915 = vmatprep.subr.mxu0 0.0
        %1916 = vmatpush1.msra.mxu0 0.0
        %1917 = vmatprep.subr.mxu0 0.0
        %1918 = vmatpush1.msra.mxu0 0.0
        %1919 = vmatprep.subr.mxu0 0.0
        %1920 = vmatpush1.msra.mxu0 0.0
        %1921 = vmatprep.mubr.f32.mxu0 0.0
        %1922 = vmatmul.mubr.f32.gmra.mrb[0].mxu0 %v1665
        %v1923 = vpop.f32.mrb[0].mxu0
        %v1924 = vadd.f32 %v1779, %v1923
        %v1925 = vpop.f32.mrb[0].mxu0
        %1926 = vmatprep.mubr.f32.mxu0 0.0
        %1927 = vmatmul.mubr.f32.gmra.mrb[0].mxu0 %v1668
        %v1928 = vpop.f32.mrb[0].mxu0
        %v1929 = vadd.f32 %v1784, %v1928
        %v1930 = vpop.f32.mrb[0].mxu0
        %1931 = vmatprep.mubr.f32.mxu0 0.0
        %1932 = vmatmul.mubr.f32.gmra.mrb[0].mxu0 %v1671
        %v1933 = vpop.f32.mrb[0].mxu0
        %v1934 = vadd.f32 %v1789, %v1933
        %v1935 = vpop.f32.mrb[0].mxu0
        %1936 = vmatprep.mubr.f32.mxu0 0.0
        %1937 = vmatmul.mubr.f32.gmra.mrb[0].mxu0 %v1674
        %v1938 = vpop.f32.mrb[0].mxu0
        %v1939 = vadd.f32 %v1794, %v1938
        %v1940 = vpop.f32.mrb[0].mxu0
        %1941 = vmatprep.mubr.f32.mxu0 0.0
        %1942 = vmatmul.mubr.f32.gmra.mrb[0].mxu0 %v1677
        %v1943 = vpop.f32.mrb[0].mxu0
        %v1944 = vadd.f32 %v1799, %v1943
        %v1945 = vpop.f32.mrb[0].mxu0
        %1946 = vmatprep.mubr.f32.mxu0 0.0
        %1947 = vmatmul.mubr.f32.gmra.mrb[0].mxu0 %v1680
        %v1948 = vpop.f32.mrb[0].mxu0
        %v1949 = vadd.f32 %v1804, %v1948
        %v1950 = vpop.f32.mrb[0].mxu0
        %1951 = vmatprep.mubr.f32.mxu0 0.0
        %1952 = vmatmul.mubr.f32.gmra.mrb[0].mxu0 %v1683
        %v1953 = vpop.f32.mrb[0].mxu0
        %v1954 = vadd.f32 %v1809, %v1953
        %v1955 = vpop.f32.mrb[0].mxu0
        %1956 = vmatprep.mubr.f32.mxu0 0.0
        %1957 = vmatmul.mubr.f32.gmra.mrb[0].mxu0 %v1686
        %v1958 = vpop.f32.mrb[0].mxu0
        %v1959 = vadd.f32 %v1814, %v1958
        %v1960 = vpop.f32.mrb[0].mxu0
        %1961 = vmatprep.mubr.f32.mxu0 0.0
        %1962 = vmatmul.mubr.f32.gmra.mrb[0].mxu0 %v1689
        %v1963 = vpop.f32.mrb[0].mxu0
        %v1964 = vadd.f32 %v1819, %v1963
        %v1965 = vpop.f32.mrb[0].mxu0
        %1966 = vmatprep.mubr.f32.mxu0 0.0
        %1967 = vmatmul.mubr.f32.gmra.mrb[0].mxu0 %v1692
        %v1968 = vpop.f32.mrb[0].mxu0
        %v1969 = vadd.f32 %v1824, %v1968
        %v1970 = vpop.f32.mrb[0].mxu0
        %1971 = vmatprep.mubr.f32.mxu0 0.0
        %1972 = vmatmul.mubr.f32.gmra.mrb[0].mxu0 %v1695
        %v1973 = vpop.f32.mrb[0].mxu0
        %v1974 = vadd.f32 %v1829, %v1973
        %v1975 = vpop.f32.mrb[0].mxu0
        %1976 = vmatprep.mubr.f32.mxu0 0.0
        %1977 = vmatmul.mubr.f32.gmra.mrb[0].mxu0 %v1698
        %v1978 = vpop.f32.mrb[0].mxu0
        %v1979 = vadd.f32 %v1834, %v1978
        %v1980 = vpop.f32.mrb[0].mxu0
        %1981 = vmatprep.mubr.f32.mxu0 0.0
        %1982 = vmatmul.mubr.f32.gmra.mrb[0].mxu0 %v1701
        %v1983 = vpop.f32.mrb[0].mxu0
        %v1984 = vadd.f32 %v1839, %v1983
        %v1985 = vpop.f32.mrb[0].mxu0
        %1986 = vmatprep.mubr.f32.mxu0 0.0
        %1987 = vmatmul.mubr.f32.gmra.mrb[0].mxu0 %v1704
        %v1988 = vpop.f32.mrb[0].mxu0
        %v1989 = vadd.f32 %v1844, %v1988
        %v1990 = vpop.f32.mrb[0].mxu0
        %1991 = vmatprep.mubr.f32.mxu0 0.0
        %1992 = vmatmul.mubr.f32.gmra.mrb[0].mxu0 %v1707
        %v1993 = vpop.f32.mrb[0].mxu0
        %v1994 = vadd.f32 %v1849, %v1993
        %v1995 = vpop.f32.mrb[0].mxu0
        %1996 = vmatprep.mubr.f32.mxu0 0.0
        %1997 = vmatmul.mubr.f32.gmra.mrb[0].mxu0 %v1710
        %v1998 = vpop.f32.mrb[0].mxu0
        %v1999 = vadd.f32 %v1854, %v1998
        %v2000 = vpop.f32.mrb[0].mxu0
        %2001 = vdwg.mxu0
        %v2002 = vmax.f32 %v1924, 0.0
        %v2003 = vmax.f32 %v1929, 0.0
        %v2004 = vmax.f32 %v1934, 0.0
        %v2005 = vmax.f32 %v1939, 0.0
        %v2006 = vmax.f32 %v1944, 0.0
        %v2007 = vmax.f32 %v1949, 0.0
        %v2008 = vmax.f32 %v1954, 0.0
        %v2009 = vmax.f32 %v1959, 0.0
        %v2010 = vmax.f32 %v1964, 0.0
        %v2011 = vmax.f32 %v1969, 0.0
        %v2012 = vmax.f32 %v1974, 0.0
        %v2013 = vmax.f32 %v1979, 0.0
        %v2014 = vmax.f32 %v1984, 0.0
        %v2015 = vmax.f32 %v1989, 0.0
        %v2016 = vmax.f32 %v1994, 0.0
        %v2017 = vmax.f32 %v1999, 0.0
        %v2018 = vld [vmem:[%s5] sm:$0xff]
        %v2019 = vld [vmem:[%s5 + $0x8] sm:$0xff]
        %v2020 = vld [vmem:[%s5 + $0x10] sm:$0xff]
        %v2021 = vld [vmem:[%s5 + $0x18] sm:$0xff]
        %v2022 = vld [vmem:[%s8] sm:$0x1]
        %v2024 = vlaneseq
        %v2025 = vshrl.u32 %v2024, 7
        %v2026 = vsub.s32 0, %v2025
        %v2027 = vrot.slane %v2022, %v2026
        %v2030 = vsel %vm874, %v2002, 0
        %v2033 = vsel %vm874, %v2003, 0
        %v2036 = vsel %vm874, %v2004, 0
        %v2039 = vsel %vm874, %v2005, 0
        %v2042 = vsel %vm874, %v2006, 0
        %v2045 = vsel %vm874, %v2007, 0
        %v2048 = vsel %vm874, %v2008, 0
        %v2051 = vsel %vm874, %v2009, 0
        %v2054 = vsel %vm874, %v2010, 0
        %v2057 = vsel %vm874, %v2011, 0
        %v2060 = vsel %vm874, %v2012, 0
        %v2063 = vsel %vm874, %v2013, 0
        %v2066 = vsel %vm874, %v2014, 0
        %v2069 = vsel %vm874, %v2015, 0
        %v2072 = vsel %vm874, %v2016, 0
        %v2075 = vsel %vm874, %v2017, 0
        %2077 = vmatprep.subr.mxu0 0.0
        %2078 = vmatpush1.msra.mxu0 %v2018
        %2079 = vmatprep.subr.mxu0 0.0
        %2080 = vmatpush1.msra.mxu0 %v2019
        %2081 = vmatprep.subr.mxu0 0.0
        %2082 = vmatpush1.msra.mxu0 %v2020
        %2083 = vmatprep.subr.mxu0 0.0
        %2084 = vmatpush1.msra.mxu0 %v2021
        %2085 = vmatprep.subr.mxu0 0.0
        %2086 = vmatpush1.msra.mxu0 0.0
        %2087 = vmatprep.subr.mxu0 0.0
        %2088 = vmatpush1.msra.mxu0 0.0
        %2089 = vmatprep.subr.mxu0 0.0
        %2090 = vmatpush1.msra.mxu0 0.0
        %2091 = vmatprep.subr.mxu0 0.0
        %2092 = vmatpush1.msra.mxu0 0.0
        %2093 = vmatprep.subr.mxu0 0.0
        %2094 = vmatpush1.msra.mxu0 0.0
        %2095 = vmatprep.subr.mxu0 0.0
        %2096 = vmatpush1.msra.mxu0 0.0
        %2097 = vmatprep.subr.mxu0 0.0
        %2098 = vmatpush1.msra.mxu0 0.0
        %2099 = vmatprep.subr.mxu0 0.0
        %2100 = vmatpush1.msra.mxu0 0.0
        %2101 = vmatprep.subr.mxu0 0.0
        %2102 = vmatpush1.msra.mxu0 0.0
        %2103 = vmatprep.subr.mxu0 0.0
        %2104 = vmatpush1.msra.mxu0 0.0
        %2105 = vmatprep.subr.mxu0 0.0
        %2106 = vmatpush1.msra.mxu0 0.0
        %2107 = vmatprep.subr.mxu0 0.0
        %2108 = vmatpush1.msra.mxu0 0.0
        %2109 = vmatprep.subr.mxu0 0.0
        %2110 = vmatpush1.msra.mxu0 0.0
        %2111 = vmatprep.subr.mxu0 0.0
        %2112 = vmatpush1.msra.mxu0 0.0
        %2113 = vmatprep.subr.mxu0 0.0
        %2114 = vmatpush1.msra.mxu0 0.0
        %2115 = vmatprep.subr.mxu0 0.0
        %2116 = vmatpush1.msra.mxu0 0.0
        %2117 = vmatprep.subr.mxu0 0.0
        %2118 = vmatpush1.msra.mxu0 0.0
        %2119 = vmatprep.subr.mxu0 0.0
        %2120 = vmatpush1.msra.mxu0 0.0
        %2121 = vmatprep.subr.mxu0 0.0
        %2122 = vmatpush1.msra.mxu0 0.0
        %2123 = vmatprep.subr.mxu0 0.0
        %2124 = vmatpush1.msra.mxu0 0.0
        %2125 = vmatprep.subr.mxu0 0.0
        %2126 = vmatpush1.msra.mxu0 0.0
        %2127 = vmatprep.subr.mxu0 0.0
        %2128 = vmatpush1.msra.mxu0 0.0
        %2129 = vmatprep.subr.mxu0 0.0
        %2130 = vmatpush1.msra.mxu0 0.0
        %2131 = vmatprep.subr.mxu0 0.0
        %2132 = vmatpush1.msra.mxu0 0.0
        %2133 = vmatprep.subr.mxu0 0.0
        %2134 = vmatpush1.msra.mxu0 0.0
        %2135 = vmatprep.subr.mxu0 0.0
        %2136 = vmatpush1.msra.mxu0 0.0
        %2137 = vmatprep.subr.mxu0 0.0
        %2138 = vmatpush1.msra.mxu0 0.0
        %2139 = vmatprep.subr.mxu0 0.0
        %2140 = vmatpush1.msra.mxu0 0.0
        %2141 = vmatprep.mubr.f32.mxu0 0.0
        %2142 = vmatmul.mubr.f32.gmra.mrb[0].mxu0 %v2030
        %v2143 = vpop.f32.mrb[0].mxu0
        %v2144 = vadd.f32 %v2027, %v2143
        %v2145 = vpop.f32.mrb[0].mxu0
        %2146 = vmatprep.mubr.f32.mxu0 0.0
        %2147 = vmatmul.mubr.f32.gmra.mrb[0].mxu0 %v2033
        %v2148 = vpop.f32.mrb[0].mxu0
        %v2149 = vadd.f32 %v2027, %v2148
        %v2150 = vpop.f32.mrb[0].mxu0
        %2151 = vmatprep.mubr.f32.mxu0 0.0
        %2152 = vmatmul.mubr.f32.gmra.mrb[0].mxu0 %v2036
        %v2153 = vpop.f32.mrb[0].mxu0
        %v2154 = vadd.f32 %v2027, %v2153
        %v2155 = vpop.f32.mrb[0].mxu0
        %2156 = vmatprep.mubr.f32.mxu0 0.0
        %2157 = vmatmul.mubr.f32.gmra.mrb[0].mxu0 %v2039
        %v2158 = vpop.f32.mrb[0].mxu0
        %v2159 = vadd.f32 %v2027, %v2158
        %v2160 = vpop.f32.mrb[0].mxu0
        %2161 = vmatprep.mubr.f32.mxu0 0.0
        %2162 = vmatmul.mubr.f32.gmra.mrb[0].mxu0 %v2042
        %v2163 = vpop.f32.mrb[0].mxu0
        %v2164 = vadd.f32 %v2027, %v2163
        %v2165 = vpop.f32.mrb[0].mxu0
        %2166 = vmatprep.mubr.f32.mxu0 0.0
        %2167 = vmatmul.mubr.f32.gmra.mrb[0].mxu0 %v2045
        %v2168 = vpop.f32.mrb[0].mxu0
        %v2169 = vadd.f32 %v2027, %v2168
        %v2170 = vpop.f32.mrb[0].mxu0
        %2171 = vmatprep.mubr.f32.mxu0 0.0
        %2172 = vmatmul.mubr.f32.gmra.mrb[0].mxu0 %v2048
        %v2173 = vpop.f32.mrb[0].mxu0
        %v2174 = vadd.f32 %v2027, %v2173
        %v2175 = vpop.f32.mrb[0].mxu0
        %2176 = vmatprep.mubr.f32.mxu0 0.0
        %2177 = vmatmul.mubr.f32.gmra.mrb[0].mxu0 %v2051
        %v2178 = vpop.f32.mrb[0].mxu0
        %v2179 = vadd.f32 %v2027, %v2178
        %v2180 = vpop.f32.mrb[0].mxu0
        %2181 = vmatprep.mubr.f32.mxu0 0.0
        %2182 = vmatmul.mubr.f32.gmra.mrb[0].mxu0 %v2054
        %v2183 = vpop.f32.mrb[0].mxu0
        %v2184 = vadd.f32 %v2027, %v2183
        %v2185 = vpop.f32.mrb[0].mxu0
        %2186 = vmatprep.mubr.f32.mxu0 0.0
        %2187 = vmatmul.mubr.f32.gmra.mrb[0].mxu0 %v2057
        %v2188 = vpop.f32.mrb[0].mxu0
        %v2189 = vadd.f32 %v2027, %v2188
        %v2190 = vpop.f32.mrb[0].mxu0
        %2191 = vmatprep.mubr.f32.mxu0 0.0
        %2192 = vmatmul.mubr.f32.gmra.mrb[0].mxu0 %v2060
        %v2193 = vpop.f32.mrb[0].mxu0
        %v2194 = vadd.f32 %v2027, %v2193
        %v2195 = vpop.f32.mrb[0].mxu0
        %2196 = vmatprep.mubr.f32.mxu0 0.0
        %2197 = vmatmul.mubr.f32.gmra.mrb[0].mxu0 %v2063
        %v2198 = vpop.f32.mrb[0].mxu0
        %v2199 = vadd.f32 %v2027, %v2198
        %v2200 = vpop.f32.mrb[0].mxu0
        %2201 = vmatprep.mubr.f32.mxu0 0.0
        %2202 = vmatmul.mubr.f32.gmra.mrb[0].mxu0 %v2066
        %v2203 = vpop.f32.mrb[0].mxu0
        %v2204 = vadd.f32 %v2027, %v2203
        %v2205 = vpop.f32.mrb[0].mxu0
        %2206 = vmatprep.mubr.f32.mxu0 0.0
        %2207 = vmatmul.mubr.f32.gmra.mrb[0].mxu0 %v2069
        %v2208 = vpop.f32.mrb[0].mxu0
        %v2209 = vadd.f32 %v2027, %v2208
        %v2210 = vpop.f32.mrb[0].mxu0
        %2211 = vmatprep.mubr.f32.mxu0 0.0
        %2212 = vmatmul.mubr.f32.gmra.mrb[0].mxu0 %v2072
        %v2213 = vpop.f32.mrb[0].mxu0
        %v2214 = vadd.f32 %v2027, %v2213
        %v2215 = vpop.f32.mrb[0].mxu0
        %2216 = vmatprep.mubr.f32.mxu0 0.0
        %2217 = vmatmul.mubr.f32.gmra.mrb[0].mxu0 %v2075
        %v2218 = vpop.f32.mrb[0].mxu0
        %v2219 = vadd.f32 %v2027, %v2218
        %v2220 = vpop.f32.mrb[0].mxu0
        %2221 = vdwg.mxu0
        %v2222 = vadd.f32 %v2144, %v502
        %v2223 = vadd.f32 %v2149, %v503
        %v2224 = vadd.f32 %v2154, %v504
        %v2225 = vadd.f32 %v2159, %v505
        %v2226 = vadd.f32 %v2164, %v506
        %v2227 = vadd.f32 %v2169, %v507
        %v2228 = vadd.f32 %v2174, %v508
        %v2229 = vadd.f32 %v2179, %v509
        %v2230 = vadd.f32 %v2184, %v510
        %v2231 = vadd.f32 %v2189, %v511
        %v2232 = vadd.f32 %v2194, %v512
        %v2233 = vadd.f32 %v2199, %v513
        %v2234 = vadd.f32 %v2204, %v514
        %v2235 = vadd.f32 %v2209, %v515
        %v2236 = vadd.f32 %v2214, %v516
        %v2237 = vadd.f32 %v2219, %v517
        %v2238 = vmax.f32 %v2222, 0.0
        %v2239 = vmax.f32 %v2223, 0.0
        %v2240 = vmax.f32 %v2224, 0.0
        %v2241 = vmax.f32 %v2225, 0.0
        %v2242 = vmax.f32 %v2226, 0.0
        %v2243 = vmax.f32 %v2227, 0.0
        %v2244 = vmax.f32 %v2228, 0.0
        %v2245 = vmax.f32 %v2229, 0.0
        %v2246 = vmax.f32 %v2230, 0.0
        %v2247 = vmax.f32 %v2231, 0.0
        %v2248 = vmax.f32 %v2232, 0.0
        %v2249 = vmax.f32 %v2233, 0.0
        %v2250 = vmax.f32 %v2234, 0.0
        %v2251 = vmax.f32 %v2235, 0.0
        %v2252 = vmax.f32 %v2236, 0.0
        %v2253 = vmax.f32 %v2237, 0.0
        %2254 = vst [vmem:[%s464] sm:$0xff] %v2238
        %2255 = vst [vmem:[%s464 + $0x8] sm:$0xff] %v2239
        %2256 = vst [vmem:[%s464 + $0x10] sm:$0xff] %v2240
        %2257 = vst [vmem:[%s464 + $0x18] sm:$0xff] %v2241
        %2258 = vst [vmem:[%s464 + $0x20] sm:$0xff] %v2242
        %2259 = vst [vmem:[%s464 + $0x28] sm:$0xff] %v2243
        %2260 = vst [vmem:[%s464 + $0x30] sm:$0xff] %v2244
        %2261 = vst [vmem:[%s464 + $0x38] sm:$0xff] %v2245
        %2262 = vst [vmem:[%s464 + $0x40] sm:$0xff] %v2246
        %2263 = vst [vmem:[%s464 + $0x48] sm:$0xff] %v2247
        %2264 = vst [vmem:[%s464 + $0x50] sm:$0xff] %v2248
        %2265 = vst [vmem:[%s464 + $0x58] sm:$0xff] %v2249
        %2266 = vst [vmem:[%s464 + $0x60] sm:$0xff] %v2250
        %2267 = vst [vmem:[%s464 + $0x68] sm:$0xff] %v2251
        %2268 = vst [vmem:[%s464 + $0x70] sm:$0xff] %v2252
        %2269 = vst [vmem:[%s464 + $0x78] sm:$0xff] %v2253
        %s2270 = sand.u32 %s277, 1
        %s2271 = scalar_lea.sflag [#allocation6], %s2270
        %s2272 = sand.u32 %s277, 1
        %s2273 = smul.addr %s2272, 128
        %s2274 = scalar_lea.vmem [#allocation9], %s2273
        // Predicated region
        $region65: #{tpu_custom_call.1} parent=55 // pred_check
          %p2275 = pneg %p287
        $region66: #{tpu_custom_call.1} parent=55 // pred_check_branch
          %2277 = sbr.rel (%p2275) target = $region68
        $region67: #{tpu_custom_call.1} parent=55 // pred_region
          %s2278 = smul.u32 8, %s34
          %s2280 = ssub.s32 2048, 2048
          %2281 = vsyncadd %s2271, %s2280
          %s2282 = smul.addr %s2278, 2
          %s2283 = smul.addr %s33, 32
          %s2284 = sadd.s32 %s2282, %s2283
          %s2285 = smul.addr %s2284, 128
          %s2286 = scalar_lea.hbm %s9, %s2285
          %s2287 = sshll.u32 %s2274, 4
          %s2288 = int_to_ptr.vmem [resolvable:$true] %s2287
          %2293 = dma.vmem_to_hbm [thread:$0]  %s2288, 2048, %s2286, %s2271, 128, 128, 8
        $region68: #{tpu_custom_call.1} parent=55 // pred_fallthru
          _
      $region56: #{tpu_custom_call.1} parent=5 // pred_fallthru
        _
      %p2294 = scmp.le.s32.totalorder 2, %s24
      // Predicated region
      $region69: #{tpu_custom_call.1} parent=5 // pred_check
        %p2295 = pneg %p2294
      $region70: #{tpu_custom_call.1} parent=5 // pred_check_branch
        %2297 = sbr.rel (%p2295) target = $region72
      $region71: #{tpu_custom_call.1} parent=5 // pred_region
        %s2298 = ssub.s32 %s24, 2
        // Predicated region
        $region73: #{tpu_custom_call.1} parent=71 // pred_check
          %p2299 = pneg %p293
        $region74: #{tpu_custom_call.1} parent=71 // pred_check_branch
          %2301 = sbr.rel (%p2299) target = $region76
        $region75: #{tpu_custom_call.1} parent=71 // pred_region
          %s2302 = sand.u32 %s278, 1
          %s2303 = scalar_lea.sflag [#allocation6], %s2302
          %s2304 = sand.u32 %s278, 1
          %s2305 = smul.addr %s2304, 128
          %s2306 = scalar_lea.vmem [#allocation9], %s2305
          %2307 = dma.done %s2303, 2048
        $region76: #{tpu_custom_call.1} parent=71 // pred_fallthru
          _
      $region72: #{tpu_custom_call.1} parent=5 // pred_fallthru
        _
    $region6: #{tpu_custom_call.1} parent=1 // loop_footer
      %s28 = sadd.s32 1, %s24
    $region7: #{tpu_custom_call.1} parent=1 // loop_footer_branch
      %23 = sbr.rel target = $region3
    $region8: #{tpu_custom_call.1} parent=1 // loop_exit
      _
    %2308 = vsyncpa [#allocation5], 1
    %s2309 = scalar_lea.sflag [#allocation5], 1
    %2310 = vsyncpa %s2309, 1
    %2311 = vsyncpa [#allocation8], 1
    %s2312 = scalar_lea.sflag [#allocation8], 1
    %2313 = vsyncpa %s2312, 1
    %2314 = vsyncpa [#allocation6], 1
    %s2315 = scalar_lea.sflag [#allocation6], 1
    %2316 = vsyncpa %s2315, 1

// kernel: tpu_custom_call.1
$region0: #{tpu_custom_call.1}
  #allocation0 [shape = 'u32[]', space=smem, size = 0x4, offset = 0x4, fixed_abs, tag = 'smem constant byte address 0x4 - core index']
  #allocation1 [shape = 'u32[144,128]{1,0:T(1,128)}', space=vmem, size = 0x12000, scoped, tag = 'internal scratch']
  #allocation2 [shape = 'f32[10,18,32]{2,1,0:T(8,128)}', space=vmem, size = 0x1e000, scoped, tag = 'scratch operand']
  #allocation3 [shape = 'f32[128,288]{1,0:T(8,128)}', space=vmem, size = 0x30000, scoped, tag = 'scratch operand']
  %s0 = inlined_call_operand.vmem [shape: f32[2,16,16,128], index: 0, kind: input, shape index: {}]
  %s1 = inlined_call_operand.hbm [shape: f32[2,16,16,128], index: 1, kind: input, shape index: {}]
  %s2 = inlined_call_operand.hbm [shape: f32[2,16,16,128], index: 2, kind: input, shape index: {}]
  %s3 = inlined_call_operand.vmem [shape: f32[128,32], index: 3, kind: input, shape index: {}]
  %s4 = inlined_call_operand.vmem [shape: f32[288,32], index: 4, kind: input, shape index: {}]
  %s5 = inlined_call_operand.vmem [shape: f32[32,128], index: 5, kind: input, shape index: {}]
  %s6 = inlined_call_operand.vmem [shape: f32[1,32], index: 6, kind: input, shape index: {}]
  %s7 = inlined_call_operand.vmem [shape: f32[1,32], index: 7, kind: input, shape index: {}]
  %s8 = inlined_call_operand.vmem [shape: f32[1,128], index: 8, kind: input, shape index: {}]
  %s9 = inlined_call_operand.hbm [shape: f32[2,16,16,128], index: 9, kind: output, shape index: {}]
  %s10 = sld [smem:[#allocation0]]
  $region77: #{tpu_custom_call.1} parent=0
    _
  %s12 = ssub.s32 1, %s10
  %s13 = scalar_select 0, %s12, %s10
  $region1: #{tpu_custom_call.1} parent=0
    #allocation4 [shape = 'u8[16384]{0}', space=vmem, size = 0x4000, scoped, tag = 'input window, operand 1']
    #allocation5 [shape = 's32[2]{0}', space=sflag, size = 0x8, scoped, tag = 'scoped memory for tpu_custom_call.1']
    #allocation6 [shape = 's32[2]{0}', space=sflag, size = 0x8, scoped, tag = 'scoped memory for tpu_custom_call.1']
    #allocation7 [shape = 'u8[16384]{0}', space=vmem, size = 0x4000, scoped, tag = 'input window, operand 2']
    #allocation8 [shape = 's32[2]{0}', space=sflag, size = 0x8, scoped, tag = 'scoped memory for tpu_custom_call.1']
    #allocation9 [shape = 'u8[131072]{0}', space=vmem, size = 0x20000, scoped, tag = 'output window, operand 0']
    %14 = vsyncpa [#allocation5], 0
    %s15 = scalar_lea.sflag [#allocation5], 1
    %16 = vsyncpa %s15, 0
    %17 = vsyncpa [#allocation8], 0
    %s18 = scalar_lea.sflag [#allocation8], 1
    %19 = vsyncpa %s18, 0
    %20 = vsyncpa [#allocation6], 0
    %s21 = scalar_lea.sflag [#allocation6], 1
    %22 = vsyncpa %s21, 0
    loop: start=0, step=1, limit=6
    $region2: #{tpu_custom_call.1} parent=1 // loop_pre_header
      _
    $region3: #{tpu_custom_call.1} parent=1 // loop_header
      %s24 = sphi 0, %s28
      %p25 = scmp.ge.s32.totalorder %s24, 6
      %s31 = sphi 0, %s43
      %s32 = sphi 0, %s39
      %s33 = sphi 0, %s31
      %s34 = sphi 0, %s32
      %s35 = sphi 0, %s33
      %s36 = sphi 0, %s34
      %s48 = sphi 0, %s50
      %s51 = sphi 0, %s48
      %s52 = sphi 0, %s51
      %s68 = sphi 0, %s52
      %s84 = sphi 0, %s86
      %s87 = sphi 0, %s84
      %s88 = sphi 0, %s87
      %s104 = sphi 0, %s88
      %s120 = sphi 0, %s122
      %s123 = sphi 0, %s120
      %s124 = sphi 0, %s123
      %s140 = sphi 0, %s124
      %s144 = sphi 0, %s144
      %s146 = sphi 0, %s144
      %s147 = sphi 0, %s146
      %s161 = sphi 0, %s147
      %s165 = sphi 0, %s165
      %s167 = sphi 0, %s165
      %s168 = sphi 0, %s167
      %s182 = sphi 0, %s168
      %s186 = sphi 0, %s186
      %s188 = sphi 0, %s186
      %s189 = sphi 0, %s188
      %s203 = sphi 0, %s189
      %s207 = sphi 0, %s207
      %s209 = sphi 0, %s207
      %s210 = sphi 0, %s209
      %s224 = sphi 0, %s210
      %s228 = sphi 0, %s228
      %s230 = sphi 0, %s228
      %s231 = sphi 0, %s230
      %s245 = sphi 0, %s231
      %s249 = sphi 0, %s249
      %s251 = sphi 0, %s249
      %s252 = sphi 0, %s251
      %s266 = sphi 0, %s252
      %s274 = sphi 0, %s276
      %s277 = sphi 0, %s274
      %s278 = sphi 0, %s277
      %s294 = sphi 0, %s278
    $region4: #{tpu_custom_call.1} parent=1 // loop_header_branch
      %27 = sbr.rel (%p25) target = $region8
    $region5: #{tpu_custom_call.1} parent=1 // loop_body
      %s29 = ssub.s32 %s24, 1
      %s30 = ssub.s32 %s24, 2
      %s37 = sadd.s32 1, %s32
      %p38 = scmp.ge.s32.totalorder %s37, 2
      %s39 = scalar_select %p38, 0, %s37
      %s40 = sadd.s32 1, %s31
      %s41 = scalar_select %p38, %s40, %s31
      %p42 = scmp.ge.s32.totalorder %s41, 2
      %s43 = scalar_select %p42, 0, %s41
      %s44 = ssub.s32 %s31, %s43
      %s45 = ssub.s32 %s32, %s39
      %s46 = sor.u32 %s44, %s45
      %p47 = scmp.eq.s32.totalorder %s46, 0
      %s49 = sadd.s32 %s48, 1
      %s50 = scalar_select %p47, %s48, %s49
      %p53 = pneg %p47
      %p54 = scmp.eq.s32.totalorder %s24, 3
      %p55 = por %p53, %p54
      %p56 = scmp.ne.s32.totalorder %s48, %s51
      %p57 = scmp.eq.s32.totalorder %s24, 0
      %p58 = por %p56, %p57
      %p59 = scmp.ne.s32.totalorder %s48, %s51
      %p60 = scmp.eq.s32.totalorder %s29, 3
      %p61 = por %p59, %p60
      %p62 = scmp.ne.s32.totalorder %s51, %s52
      %p63 = scmp.eq.s32.totalorder %s29, 0
      %p64 = por %p62, %p63
      %p65 = scmp.ne.s32.totalorder %s51, %s52
      %p66 = scmp.eq.s32.totalorder %s30, 3
      %p67 = por %p65, %p66
      %p69 = scmp.ne.s32.totalorder %s52, %s68
      %p70 = scmp.eq.s32.totalorder %s30, 0
      %p71 = por %p69, %p70
      %s72 = smul.u32 %s32, 8
      %s73 = ssub.s32 %s72, 1
      %p74 = scmp.gt.s32.totalorder %s73, 0
      %s75 = scalar_select %p74, %s73, 0
      %s76 = smul.u32 %s39, 8
      %s77 = ssub.s32 %s76, 1
      %p78 = scmp.gt.s32.totalorder %s77, 0
      %s79 = scalar_select %p78, %s77, 0
      %s80 = ssub.s32 %s31, %s43
      %s81 = ssub.s32 %s75, %s79
      %s82 = sor.u32 %s80, %s81
      %p83 = scmp.eq.s32.totalorder %s82, 0
      %s85 = sadd.s32 %s84, 1
      %s86 = scalar_select %p83, %s84, %s85
      %p89 = pneg %p83
      %p90 = scmp.eq.s32.totalorder %s24, 3
      %p91 = por %p89, %p90
      %p92 = scmp.ne.s32.totalorder %s84, %s87
      %p93 = scmp.eq.s32.totalorder %s24, 0
      %p94 = por %p92, %p93
      %p95 = scmp.ne.s32.totalorder %s84, %s87
      %p96 = scmp.eq.s32.totalorder %s29, 3
      %p97 = por %p95, %p96
      %p98 = scmp.ne.s32.totalorder %s87, %s88
      %p99 = scmp.eq.s32.totalorder %s29, 0
      %p100 = por %p98, %p99
      %p101 = scmp.ne.s32.totalorder %s87, %s88
      %p102 = scmp.eq.s32.totalorder %s30, 3
      %p103 = por %p101, %p102
      %p105 = scmp.ne.s32.totalorder %s88, %s104
      %p106 = scmp.eq.s32.totalorder %s30, 0
      %p107 = por %p105, %p106
      %s108 = smul.u32 %s32, 8
      %s109 = sadd.s32 %s108, 8
      %p110 = scmp.lt.s32.totalorder %s109, 15
      %s111 = scalar_select %p110, %s109, 15
      %s112 = smul.u32 %s39, 8
      %s113 = sadd.s32 %s112, 8
      %p114 = scmp.lt.s32.totalorder %s113, 15
      %s115 = scalar_select %p114, %s113, 15
      %s116 = ssub.s32 %s31, %s43
      %s117 = ssub.s32 %s111, %s115
      %s118 = sor.u32 %s116, %s117
      %p119 = scmp.eq.s32.totalorder %s118, 0
      %s121 = sadd.s32 %s120, 1
      %s122 = scalar_select %p119, %s120, %s121
      %p125 = pneg %p119
      %p126 = scmp.eq.s32.totalorder %s24, 3
      %p127 = por %p125, %p126
      %p128 = scmp.ne.s32.totalorder %s120, %s123
      %p129 = scmp.eq.s32.totalorder %s24, 0
      %p130 = por %p128, %p129
      %p131 = scmp.ne.s32.totalorder %s120, %s123
      %p132 = scmp.eq.s32.totalorder %s29, 3
      %p133 = por %p131, %p132
      %p134 = scmp.ne.s32.totalorder %s123, %s124
      %p135 = scmp.eq.s32.totalorder %s29, 0
      %p136 = por %p134, %p135
      %p137 = scmp.ne.s32.totalorder %s123, %s124
      %p138 = scmp.eq.s32.totalorder %s30, 3
      %p139 = por %p137, %p138
      %p141 = scmp.ne.s32.totalorder %s124, %s140
      %p142 = scmp.eq.s32.totalorder %s30, 0
      %p143 = por %p141, %p142
      %s145 = sadd.s32 %s144, 1
      %p148 = scmp.eq.s32.totalorder %s24, 3
      %p149 = scmp.ne.s32.totalorder %s144, %s146
      %p150 = scmp.eq.s32.totalorder %s24, 0
      %p151 = por %p149, %p150
      %p152 = scmp.ne.s32.totalorder %s144, %s146
      %p153 = scmp.eq.s32.totalorder %s29, 3
      %p154 = por %p152, %p153
      %p155 = scmp.ne.s32.totalorder %s146, %s147
      %p156 = scmp.eq.s32.totalorder %s29, 0
      %p157 = por %p155, %p156
      %p158 = scmp.ne.s32.totalorder %s146, %s147
      %p159 = scmp.eq.s32.totalorder %s30, 3
      %p160 = por %p158, %p159
      %p162 = scmp.ne.s32.totalorder %s147, %s161
      %p163 = scmp.eq.s32.totalorder %s30, 0
      %p164 = por %p162, %p163
      %s166 = sadd.s32 %s165, 1
      %p169 = scmp.eq.s32.totalorder %s24, 3
      %p170 = scmp.ne.s32.totalorder %s165, %s167
      %p171 = scmp.eq.s32.totalorder %s24, 0
      %p172 = por %p170, %p171
      %p173 = scmp.ne.s32.totalorder %s165, %s167
      %p174 = scmp.eq.s32.totalorder %s29, 3
      %p175 = por %p173, %p174
      %p176 = scmp.ne.s32.totalorder %s167, %s168
      %p177 = scmp.eq.s32.totalorder %s29, 0
      %p178 = por %p176, %p177
      %p179 = scmp.ne.s32.totalorder %s167, %s168
      %p180 = scmp.eq.s32.totalorder %s30, 3
      %p181 = por %p179, %p180
      %p183 = scmp.ne.s32.totalorder %s168, %s182
      %p184 = scmp.eq.s32.totalorder %s30, 0
      %p185 = por %p183, %p184
      %s187 = sadd.s32 %s186, 1
      %p190 = scmp.eq.s32.totalorder %s24, 3
      %p191 = scmp.ne.s32.totalorder %s186, %s188
      %p192 = scmp.eq.s32.totalorder %s24, 0
      %p193 = por %p191, %p192
      %p194 = scmp.ne.s32.totalorder %s186, %s188
      %p195 = scmp.eq.s32.totalorder %s29, 3
      %p196 = por %p194, %p195
      %p197 = scmp.ne.s32.totalorder %s188, %s189
      %p198 = scmp.eq.s32.totalorder %s29, 0
      %p199 = por %p197, %p198
      %p200 = scmp.ne.s32.totalorder %s188, %s189
      %p201 = scmp.eq.s32.totalorder %s30, 3
      %p202 = por %p200, %p201
      %p204 = scmp.ne.s32.totalorder %s189, %s203
      %p205 = scmp.eq.s32.totalorder %s30, 0
      %p206 = por %p204, %p205
      %s208 = sadd.s32 %s207, 1
      %p211 = scmp.eq.s32.totalorder %s24, 3
      %p212 = scmp.ne.s32.totalorder %s207, %s209
      %p213 = scmp.eq.s32.totalorder %s24, 0
      %p214 = por %p212, %p213
      %p215 = scmp.ne.s32.totalorder %s207, %s209
      %p216 = scmp.eq.s32.totalorder %s29, 3
      %p217 = por %p215, %p216
      %p218 = scmp.ne.s32.totalorder %s209, %s210
      %p219 = scmp.eq.s32.totalorder %s29, 0
      %p220 = por %p218, %p219
      %p221 = scmp.ne.s32.totalorder %s209, %s210
      %p222 = scmp.eq.s32.totalorder %s30, 3
      %p223 = por %p221, %p222
      %p225 = scmp.ne.s32.totalorder %s210, %s224
      %p226 = scmp.eq.s32.totalorder %s30, 0
      %p227 = por %p225, %p226
      %s229 = sadd.s32 %s228, 1
      %p232 = scmp.eq.s32.totalorder %s24, 3
      %p233 = scmp.ne.s32.totalorder %s228, %s230
      %p234 = scmp.eq.s32.totalorder %s24, 0
      %p235 = por %p233, %p234
      %p236 = scmp.ne.s32.totalorder %s228, %s230
      %p237 = scmp.eq.s32.totalorder %s29, 3
      %p238 = por %p236, %p237
      %p239 = scmp.ne.s32.totalorder %s230, %s231
      %p240 = scmp.eq.s32.totalorder %s29, 0
      %p241 = por %p239, %p240
      %p242 = scmp.ne.s32.totalorder %s230, %s231
      %p243 = scmp.eq.s32.totalorder %s30, 3
      %p244 = por %p242, %p243
      %p246 = scmp.ne.s32.totalorder %s231, %s245
      %p247 = scmp.eq.s32.totalorder %s30, 0
      %p248 = por %p246, %p247
      %s250 = sadd.s32 %s249, 1
      %p253 = scmp.eq.s32.totalorder %s24, 3
      %p254 = scmp.ne.s32.totalorder %s249, %s251
      %p255 = scmp.eq.s32.totalorder %s24, 0
      %p256 = por %p254, %p255
      %p257 = scmp.ne.s32.totalorder %s249, %s251
      %p258 = scmp.eq.s32.totalorder %s29, 3
      %p259 = por %p257, %p258
      %p260 = scmp.ne.s32.totalorder %s251, %s252
      %p261 = scmp.eq.s32.totalorder %s29, 0
      %p262 = por %p260, %p261
      %p263 = scmp.ne.s32.totalorder %s251, %s252
      %p264 = scmp.eq.s32.totalorder %s30, 3
      %p265 = por %p263, %p264
      %p267 = scmp.ne.s32.totalorder %s252, %s266
      %p268 = scmp.eq.s32.totalorder %s30, 0
      %p269 = por %p267, %p268
      %s270 = ssub.s32 %s31, %s43
      %s271 = ssub.s32 %s32, %s39
      %s272 = sor.u32 %s270, %s271
      %p273 = scmp.eq.s32.totalorder %s272, 0
      %s275 = sadd.s32 %s274, 1
      %s276 = scalar_select %p273, %s274, %s275
      %p279 = pneg %p273
      %p280 = scmp.eq.s32.totalorder %s24, 3
      %p281 = por %p279, %p280
      %p282 = scmp.ne.s32.totalorder %s274, %s277
      %p283 = scmp.eq.s32.totalorder %s24, 0
      %p284 = por %p282, %p283
      %p285 = scmp.ne.s32.totalorder %s274, %s277
      %p286 = scmp.eq.s32.totalorder %s29, 3
      %p287 = por %p285, %p286
      %p288 = scmp.ne.s32.totalorder %s277, %s278
      %p289 = scmp.eq.s32.totalorder %s29, 0
      %p290 = por %p288, %p289
      %p291 = scmp.ne.s32.totalorder %s277, %s278
      %p292 = scmp.eq.s32.totalorder %s30, 3
      %p293 = por %p291, %p292
      %p295 = scmp.ne.s32.totalorder %s278, %s294
      %p296 = scmp.eq.s32.totalorder %s30, 0
      %p297 = por %p295, %p296
      %p298 = scmp.le.s32.totalorder 1, %s24
      %p299 = scmp.lt.s32.totalorder %s24, 5
      %p300 = pnand %p298, %p299
      %p301 = pneg %p300
      // Predicated region
      $region9: #{tpu_custom_call.1} parent=5 // pred_check
        _
      $region10: #{tpu_custom_call.1} parent=5 // pred_check_branch
        %303 = sbr.rel (%p300) target = $region12
      $region11: #{tpu_custom_call.1} parent=5 // pred_region
        %s304 = ssub.s32 %s24, 1
        // Predicated region
        $region13: #{tpu_custom_call.1} parent=11 // pred_check
          %p305 = pneg %p157
        $region14: #{tpu_custom_call.1} parent=11 // pred_check_branch
          %307 = sbr.rel (%p305) target = $region16
        $region15: #{tpu_custom_call.1} parent=11 // pred_region
          _
        $region16: #{tpu_custom_call.1} parent=11 // pred_fallthru
          _
        // Predicated region
        $region17: #{tpu_custom_call.1} parent=11 // pred_check
          %p308 = pneg %p178
        $region18: #{tpu_custom_call.1} parent=11 // pred_check_branch
          %310 = sbr.rel (%p308) target = $region20
        $region19: #{tpu_custom_call.1} parent=11 // pred_region
          _
        $region20: #{tpu_custom_call.1} parent=11 // pred_fallthru
          _
        // Predicated region
        $region21: #{tpu_custom_call.1} parent=11 // pred_check
          %p311 = pneg %p199
        $region22: #{tpu_custom_call.1} parent=11 // pred_check_branch
          %313 = sbr.rel (%p311) target = $region24
        $region23: #{tpu_custom_call.1} parent=11 // pred_region
          _
        $region24: #{tpu_custom_call.1} parent=11 // pred_fallthru
          _
        // Predicated region
        $region25: #{tpu_custom_call.1} parent=11 // pred_check
          %p314 = pneg %p220
        $region26: #{tpu_custom_call.1} parent=11 // pred_check_branch
          %316 = sbr.rel (%p314) target = $region28
        $region27: #{tpu_custom_call.1} parent=11 // pred_region
          _
        $region28: #{tpu_custom_call.1} parent=11 // pred_fallthru
          _
        // Predicated region
        $region29: #{tpu_custom_call.1} parent=11 // pred_check
          %p317 = pneg %p241
        $region30: #{tpu_custom_call.1} parent=11 // pred_check_branch
          %319 = sbr.rel (%p317) target = $region32
        $region31: #{tpu_custom_call.1} parent=11 // pred_region
          _
        $region32: #{tpu_custom_call.1} parent=11 // pred_fallthru
          _
        // Predicated region
        $region33: #{tpu_custom_call.1} parent=11 // pred_check
          %p320 = pneg %p262
        $region34: #{tpu_custom_call.1} parent=11 // pred_check_branch
          %322 = sbr.rel (%p320) target = $region36
        $region35: #{tpu_custom_call.1} parent=11 // pred_region
          _
        $region36: #{tpu_custom_call.1} parent=11 // pred_fallthru
          _
      $region12: #{tpu_custom_call.1} parent=5 // pred_fallthru
        _
      %p323 = scmp.lt.s32.totalorder %s24, 4
      // Predicated region
      $region37: #{tpu_custom_call.1} parent=5 // pred_check
        %p324 = pneg %p323
      $region38: #{tpu_custom_call.1} parent=5 // pred_check_branch
        %326 = sbr.rel (%p324) target = $region40
      $region39: #{tpu_custom_call.1} parent=5 // pred_region
        // Predicated region
        $region41: #{tpu_custom_call.1} parent=39 // pred_check
          %p327 = pneg %p58
        $region42: #{tpu_custom_call.1} parent=39 // pred_check_branch
          %329 = sbr.rel (%p327) target = $region44
        $region43: #{tpu_custom_call.1} parent=39 // pred_region
          %s330 = smul.u32 8, %s32
          %p331 = scmp.lt.s32.totalorder %s31, 1
          %s332 = scalar_select %p331, %s31, 1
          %p333 = scmp.lt.s32.totalorder %s330, 15
          %s334 = scalar_select %p333, %s330, 15
          %s335 = smul.addr %s334, 2
          %s336 = smul.addr %s332, 32
          %s337 = sadd.s32 %s335, %s336
          %s338 = smul.addr %s337, 8
          %s339 = scalar_lea.vmem %s0, %s338
          %s340 = smul.u32 8, %s32
        $region44: #{tpu_custom_call.1} parent=39 // pred_fallthru
          _
        // Predicated region
        $region45: #{tpu_custom_call.1} parent=39 // pred_check
          %p341 = pneg %p94
        $region46: #{tpu_custom_call.1} parent=39 // pred_check_branch
          %343 = sbr.rel (%p341) target = $region48
        $region47: #{tpu_custom_call.1} parent=39 // pred_region
          %s344 = sand.u32 %s84, 1
          %s345 = scalar_lea.sflag [#allocation5], %s344
          %s346 = sand.u32 %s84, 1
          %s347 = smul.addr %s346, 16
          %s348 = scalar_lea.vmem [#allocation4], %s347
          %s349 = smul.u32 %s32, 8
          %s350 = ssub.s32 %s349, 1
          %p351 = scmp.gt.s32.totalorder %s350, 0
          %s352 = scalar_select %p351, %s350, 0
          %s354 = ssub.s32 256, 256
          %355 = vsyncadd %s345, %s354
          %s356 = smul.addr %s352, 2
          %s357 = smul.addr %s31, 32
          %s358 = sadd.s32 %s356, %s357
          %s359 = smul.addr %s358, 128
          %s360 = scalar_lea.hbm %s1, %s359
          %s361 = sshll.u32 %s348, 4
          %s362 = int_to_ptr.vmem [resolvable:$true] %s361
          %367 = dma.hbm_to_vmem [thread:$0]  %s360, 256, %s362, %s345, 128, 128, 8
        $region48: #{tpu_custom_call.1} parent=39 // pred_fallthru
          _
        // Predicated region
        $region49: #{tpu_custom_call.1} parent=39 // pred_check
          %p368 = pneg %p130
        $region50: #{tpu_custom_call.1} parent=39 // pred_check_branch
          %370 = sbr.rel (%p368) target = $region52
        $region51: #{tpu_custom_call.1} parent=39 // pred_region
          %s371 = sand.u32 %s120, 1
          %s372 = scalar_lea.sflag [#allocation8], %s371
          %s373 = sand.u32 %s120, 1
          %s374 = smul.addr %s373, 16
          %s375 = scalar_lea.vmem [#allocation7], %s374
          %s376 = smul.u32 %s32, 8
          %s377 = sadd.s32 %s376, 8
          %p378 = scmp.lt.s32.totalorder %s377, 15
          %s379 = scalar_select %p378, %s377, 15
          %s381 = ssub.s32 256, 256
          %382 = vsyncadd %s372, %s381
          %s383 = smul.addr %s379, 2
          %s384 = smul.addr %s31, 32
          %s385 = sadd.s32 %s383, %s384
          %s386 = smul.addr %s385, 128
          %s387 = scalar_lea.hbm %s2, %s386
          %s388 = sshll.u32 %s375, 4
          %s389 = int_to_ptr.vmem [resolvable:$true] %s388
          %394 = dma.hbm_to_vmem [thread:$0]  %s387, 256, %s389, %s372, 128, 128, 8
        $region52: #{tpu_custom_call.1} parent=39 // pred_fallthru
          _
      $region40: #{tpu_custom_call.1} parent=5 // pred_fallthru
        _
      %p395 = scmp.le.s32.totalorder 1, %s24
      %p396 = scmp.lt.s32.totalorder %s24, 5
      %p397 = pnand %p395, %p396
      %p398 = pneg %p397
      // Predicated region
      $region53: #{tpu_custom_call.1} parent=5 // pred_check
        _
      $region54: #{tpu_custom_call.1} parent=5 // pred_check_branch
        %400 = sbr.rel (%p397) target = $region56
      $region55: #{tpu_custom_call.1} parent=5 // pred_region
        %s401 = ssub.s32 %s24, 1
        %s402 = sand.u32 %s87, 1
        %s403 = scalar_lea.sflag [#allocation5], %s402
        %s404 = sand.u32 %s87, 1
        %s405 = smul.addr %s404, 16
        %s406 = scalar_lea.vmem [#allocation4], %s405
        // Predicated region
        $region57: #{tpu_custom_call.1} parent=55 // pred_check
          %p407 = pneg %p100
        $region58: #{tpu_custom_call.1} parent=55 // pred_check_branch
          %409 = sbr.rel (%p407) target = $region60
        $region59: #{tpu_custom_call.1} parent=55 // pred_region
          %410 = dma.done %s403, 256
        $region60: #{tpu_custom_call.1} parent=55 // pred_fallthru
          _
        %s411 = sand.u32 %s123, 1
        %s412 = scalar_lea.sflag [#allocation8], %s411
        %s413 = sand.u32 %s123, 1
        %s414 = smul.addr %s413, 16
        %s415 = scalar_lea.vmem [#allocation7], %s414
        // Predicated region
        $region61: #{tpu_custom_call.1} parent=55 // pred_check
          %p416 = pneg %p136
        $region62: #{tpu_custom_call.1} parent=55 // pred_check_branch
          %418 = sbr.rel (%p416) target = $region64
        $region63: #{tpu_custom_call.1} parent=55 // pred_region
          %419 = dma.done %s412, 256
        $region64: #{tpu_custom_call.1} parent=55 // pred_fallthru
          _
        %s420 = smul.u32 8, %s34
        %p421 = scmp.lt.s32.totalorder %s33, 1
        %s422 = scalar_select %p421, %s33, 1
        %p423 = scmp.lt.s32.totalorder %s420, 15
        %s424 = scalar_select %p423, %s420, 15
        %s425 = smul.addr %s424, 2
        %s426 = smul.addr %s422, 32
        %s427 = sadd.s32 %s425, %s426
        %s428 = smul.addr %s427, 8
        %s429 = scalar_lea.vmem %s0, %s428
        %p430 = pneg %p64
        %p431 = pneg %p61
        %s432 = sand.u32 %s87, 1
        %s433 = scalar_lea.sflag [#allocation5], %s432
        %s434 = sand.u32 %s87, 1
        %s435 = smul.addr %s434, 16
        %s436 = scalar_lea.vmem [#allocation4], %s435
        %p437 = pneg %p100
        %p438 = pneg %p97
        %s439 = sand.u32 %s123, 1
        %s440 = scalar_lea.sflag [#allocation8], %s439
        %s441 = sand.u32 %s123, 1
        %s442 = smul.addr %s441, 16
        %s443 = scalar_lea.vmem [#allocation7], %s442
        %p444 = pneg %p136
        %p445 = pneg %p133
        %p446 = pneg %p157
        %p447 = pneg %p154
        %p448 = pneg %p178
        %p449 = pneg %p175
        %p450 = pneg %p199
        %p451 = pneg %p196
        %p452 = pneg %p220
        %p453 = pneg %p217
        %p454 = pneg %p241
        %p455 = pneg %p238
        %p456 = pneg %p262
        %p457 = pneg %p259
        %p458 = pneg %p290
        %p459 = pneg %p287
        %s460 = sand.u32 %s277, 1
        %s461 = scalar_lea.sflag [#allocation6], %s460
        %s462 = sand.u32 %s277, 1
        %s463 = smul.addr %s462, 128
        %s464 = scalar_lea.vmem [#allocation9], %s463
        %s465 = smul.u32 8, %s34
        %p466 = scmp.lt.s32.totalorder %s33, 1
        %s467 = scalar_select %p466, %s33, 1
        %p468 = scmp.lt.s32.totalorder %s465, 15
        %s469 = scalar_select %p468, %s465, 15
        %s470 = smul.addr %s469, 2
        %s471 = smul.addr %s467, 32
        %s472 = sadd.s32 %s470, %s471
        %s473 = smul.addr %s472, 8
        %s474 = scalar_lea.vmem %s0, %s473
        %s475 = smul.u32 8, %s34
        %s476 = smul.u32 %s34, 8
        %s477 = ssub.s32 %s476, 1
        %p478 = scmp.gt.s32.totalorder %s477, 0
        %s479 = scalar_select %p478, %s477, 0
        %s480 = smul.u32 %s34, 8
        %s481 = sadd.s32 %s480, 8
        %p482 = scmp.lt.s32.totalorder %s481, 15
        %s483 = scalar_select %p482, %s481, 15
        %s484 = smul.u32 8, %s34
        %v485 = vld [vmem:[%s3] sm:$0xff]
        %v486 = vld [vmem:[%s3 + $0x8] sm:$0xff]
        %v487 = vld [vmem:[%s3 + $0x10] sm:$0xff]
        %v488 = vld [vmem:[%s3 + $0x18] sm:$0xff]
        %v489 = vld [vmem:[%s3 + $0x20] sm:$0xff]
        %v490 = vld [vmem:[%s3 + $0x28] sm:$0xff]
        %v491 = vld [vmem:[%s3 + $0x30] sm:$0xff]
        %v492 = vld [vmem:[%s3 + $0x38] sm:$0xff]
        %v493 = vld [vmem:[%s3 + $0x40] sm:$0xff]
        %v494 = vld [vmem:[%s3 + $0x48] sm:$0xff]
        %v495 = vld [vmem:[%s3 + $0x50] sm:$0xff]
        %v496 = vld [vmem:[%s3 + $0x58] sm:$0xff]
        %v497 = vld [vmem:[%s3 + $0x60] sm:$0xff]
        %v498 = vld [vmem:[%s3 + $0x68] sm:$0xff]
        %v499 = vld [vmem:[%s3 + $0x70] sm:$0xff]
        %v500 = vld [vmem:[%s3 + $0x78] sm:$0xff]
        %v501 = vld [vmem:[%s6] sm:$0x1]
        %v502 = vld [vmem:[%s474] sm:$0xff]
        %v503 = vld [vmem:[%s474 + $0x8] sm:$0xff]
        %v504 = vld [vmem:[%s474 + $0x10] sm:$0xff]
        %v505 = vld [vmem:[%s474 + $0x18] sm:$0xff]
        %v506 = vld [vmem:[%s474 + $0x20] sm:$0xff]
        %v507 = vld [vmem:[%s474 + $0x28] sm:$0xff]
        %v508 = vld [vmem:[%s474 + $0x30] sm:$0xff]
        %v509 = vld [vmem:[%s474 + $0x38] sm:$0xff]
        %v510 = vld [vmem:[%s474 + $0x40] sm:$0xff]
        %v511 = vld [vmem:[%s474 + $0x48] sm:$0xff]
        %v512 = vld [vmem:[%s474 + $0x50] sm:$0xff]
        %v513 = vld [vmem:[%s474 + $0x58] sm:$0xff]
        %v514 = vld [vmem:[%s474 + $0x60] sm:$0xff]
        %v515 = vld [vmem:[%s474 + $0x68] sm:$0xff]
        %v516 = vld [vmem:[%s474 + $0x70] sm:$0xff]
        %v517 = vld [vmem:[%s474 + $0x78] sm:$0xff]
        %v519 = vlaneseq
        %v520 = vshrl.u32 %v519, 7
        %v521 = vsub.s32 0, %v520
        %v522 = vrot.slane %v501, %v521
        %524 = vmatprep.subr.mxu0 0.0
        %525 = vmatpush1.msra.mxu0 %v485
        %526 = vmatprep.subr.mxu0 0.0
        %527 = vmatpush1.msra.mxu0 %v486
        %528 = vmatprep.subr.mxu0 0.0
        %529 = vmatpush1.msra.mxu0 %v487
        %530 = vmatprep.subr.mxu0 0.0
        %531 = vmatpush1.msra.mxu0 %v488
        %532 = vmatprep.subr.mxu0 0.0
        %533 = vmatpush1.msra.mxu0 %v489
        %534 = vmatprep.subr.mxu0 0.0
        %535 = vmatpush1.msra.mxu0 %v490
        %536 = vmatprep.subr.mxu0 0.0
        %537 = vmatpush1.msra.mxu0 %v491
        %538 = vmatprep.subr.mxu0 0.0
        %539 = vmatpush1.msra.mxu0 %v492
        %540 = vmatprep.subr.mxu0 0.0
        %541 = vmatpush1.msra.mxu0 %v493
        %542 = vmatprep.subr.mxu0 0.0
        %543 = vmatpush1.msra.mxu0 %v494
        %544 = vmatprep.subr.mxu0 0.0
        %545 = vmatpush1.msra.mxu0 %v495
        %546 = vmatprep.subr.mxu0 0.0
        %547 = vmatpush1.msra.mxu0 %v496
        %548 = vmatprep.subr.mxu0 0.0
        %549 = vmatpush1.msra.mxu0 %v497
        %550 = vmatprep.subr.mxu0 0.0
        %551 = vmatpush1.msra.mxu0 %v498
        %552 = vmatprep.subr.mxu0 0.0
        %553 = vmatpush1.msra.mxu0 %v499
        %554 = vmatprep.subr.mxu0 0.0
        %555 = vmatpush1.msra.mxu0 %v500
        %556 = vmatprep.subr.mxu0 0.0
        %557 = vmatpush1.msra.mxu0 0.0
        %558 = vmatprep.subr.mxu0 0.0
        %559 = vmatpush1.msra.mxu0 0.0
        %560 = vmatprep.subr.mxu0 0.0
        %561 = vmatpush1.msra.mxu0 0.0
        %562 = vmatprep.subr.mxu0 0.0
        %563 = vmatpush1.msra.mxu0 0.0
        %564 = vmatprep.subr.mxu0 0.0
        %565 = vmatpush1.msra.mxu0 0.0
        %566 = vmatprep.subr.mxu0 0.0
        %567 = vmatpush1.msra.mxu0 0.0
        %568 = vmatprep.subr.mxu0 0.0
        %569 = vmatpush1.msra.mxu0 0.0
        %570 = vmatprep.subr.mxu0 0.0
        %571 = vmatpush1.msra.mxu0 0.0
        %572 = vmatprep.subr.mxu0 0.0
        %573 = vmatpush1.msra.mxu0 0.0
        %574 = vmatprep.subr.mxu0 0.0
        %575 = vmatpush1.msra.mxu0 0.0
        %576 = vmatprep.subr.mxu0 0.0
        %577 = vmatpush1.msra.mxu0 0.0
        %578 = vmatprep.subr.mxu0 0.0
        %579 = vmatpush1.msra.mxu0 0.0
        %580 = vmatprep.subr.mxu0 0.0
        %581 = vmatpush1.msra.mxu0 0.0
        %582 = vmatprep.subr.mxu0 0.0
        %583 = vmatpush1.msra.mxu0 0.0
        %584 = vmatprep.subr.mxu0 0.0
        %585 = vmatpush1.msra.mxu0 0.0
        %586 = vmatprep.subr.mxu0 0.0
        %587 = vmatpush1.msra.mxu0 0.0
        %588 = vmatprep.mubr.f32.mxu0 0.0
        %589 = vmatmul.mubr.f32.gmra.mrb[0].mxu0 %v502
        %v590 = vpop.f32.mrb[0].mxu0
        %v591 = vadd.f32 %v522, %v590
        %v592 = vpop.f32.mrb[0].mxu0
        %593 = vmatprep.mubr.f32.mxu0 0.0
        %594 = vmatmul.mubr.f32.gmra.mrb[0].mxu0 %v503
        %v595 = vpop.f32.mrb[0].mxu0
        %v596 = vadd.f32 %v522, %v595
        %v597 = vpop.f32.mrb[0].mxu0
        %598 = vmatprep.mubr.f32.mxu0 0.0
        %599 = vmatmul.mubr.f32.gmra.mrb[0].mxu0 %v504
        %v600 = vpop.f32.mrb[0].mxu0
        %v601 = vadd.f32 %v522, %v600
        %v602 = vpop.f32.mrb[0].mxu0
        %603 = vmatprep.mubr.f32.mxu0 0.0
        %604 = vmatmul.mubr.f32.gmra.mrb[0].mxu0 %v505
        %v605 = vpop.f32.mrb[0].mxu0
        %v606 = vadd.f32 %v522, %v605
        %v607 = vpop.f32.mrb[0].mxu0
        %608 = vmatprep.mubr.f32.mxu0 0.0
        %609 = vmatmul.mubr.f32.gmra.mrb[0].mxu0 %v506
        %v610 = vpop.f32.mrb[0].mxu0
        %v611 = vadd.f32 %v522, %v610
        %v612 = vpop.f32.mrb[0].mxu0
        %613 = vmatprep.mubr.f32.mxu0 0.0
        %614 = vmatmul.mubr.f32.gmra.mrb[0].mxu0 %v507
        %v615 = vpop.f32.mrb[0].mxu0
        %v616 = vadd.f32 %v522, %v615
        %v617 = vpop.f32.mrb[0].mxu0
        %618 = vmatprep.mubr.f32.mxu0 0.0
        %619 = vmatmul.mubr.f32.gmra.mrb[0].mxu0 %v508
        %v620 = vpop.f32.mrb[0].mxu0
        %v621 = vadd.f32 %v522, %v620
        %v622 = vpop.f32.mrb[0].mxu0
        %623 = vmatprep.mubr.f32.mxu0 0.0
        %624 = vmatmul.mubr.f32.gmra.mrb[0].mxu0 %v509
        %v625 = vpop.f32.mrb[0].mxu0
        %v626 = vadd.f32 %v522, %v625
        %v627 = vpop.f32.mrb[0].mxu0
        %628 = vmatprep.mubr.f32.mxu0 0.0
        %629 = vmatmul.mubr.f32.gmra.mrb[0].mxu0 %v510
        %v630 = vpop.f32.mrb[0].mxu0
        %v631 = vadd.f32 %v522, %v630
        %v632 = vpop.f32.mrb[0].mxu0
        %633 = vmatprep.mubr.f32.mxu0 0.0
        %634 = vmatmul.mubr.f32.gmra.mrb[0].mxu0 %v511
        %v635 = vpop.f32.mrb[0].mxu0
        %v636 = vadd.f32 %v522, %v635
        %v637 = vpop.f32.mrb[0].mxu0
        %638 = vmatprep.mubr.f32.mxu0 0.0
        %639 = vmatmul.mubr.f32.gmra.mrb[0].mxu0 %v512
        %v640 = vpop.f32.mrb[0].mxu0
        %v641 = vadd.f32 %v522, %v640
        %v642 = vpop.f32.mrb[0].mxu0
        %643 = vmatprep.mubr.f32.mxu0 0.0
        %644 = vmatmul.mubr.f32.gmra.mrb[0].mxu0 %v513
        %v645 = vpop.f32.mrb[0].mxu0
        %v646 = vadd.f32 %v522, %v645
        %v647 = vpop.f32.mrb[0].mxu0
        %648 = vmatprep.mubr.f32.mxu0 0.0
        %649 = vmatmul.mubr.f32.gmra.mrb[0].mxu0 %v514
        %v650 = vpop.f32.mrb[0].mxu0
        %v651 = vadd.f32 %v522, %v650
        %v652 = vpop.f32.mrb[0].mxu0
        %653 = vmatprep.mubr.f32.mxu0 0.0
        %654 = vmatmul.mubr.f32.gmra.mrb[0].mxu0 %v515
        %v655 = vpop.f32.mrb[0].mxu0
        %v656 = vadd.f32 %v522, %v655
        %v657 = vpop.f32.mrb[0].mxu0
        %658 = vmatprep.mubr.f32.mxu0 0.0
        %659 = vmatmul.mubr.f32.gmra.mrb[0].mxu0 %v516
        %v660 = vpop.f32.mrb[0].mxu0
        %v661 = vadd.f32 %v522, %v660
        %v662 = vpop.f32.mrb[0].mxu0
        %663 = vmatprep.mubr.f32.mxu0 0.0
        %664 = vmatmul.mubr.f32.gmra.mrb[0].mxu0 %v517
        %v665 = vpop.f32.mrb[0].mxu0
        %v666 = vadd.f32 %v522, %v665
        %v667 = vpop.f32.mrb[0].mxu0
        %668 = vdwg.mxu0
        %v669 = vmax.f32 %v591, 0.0
        %v670 = vmax.f32 %v596, 0.0
        %v671 = vmax.f32 %v601, 0.0
        %v672 = vmax.f32 %v606, 0.0
        %v673 = vmax.f32 %v611, 0.0
        %v674 = vmax.f32 %v616, 0.0
        %v675 = vmax.f32 %v621, 0.0
        %v676 = vmax.f32 %v626, 0.0
        %v677 = vmax.f32 %v631, 0.0
        %v678 = vmax.f32 %v636, 0.0
        %v679 = vmax.f32 %v641, 0.0
        %v680 = vmax.f32 %v646, 0.0
        %v681 = vmax.f32 %v651, 0.0
        %v682 = vmax.f32 %v656, 0.0
        %v683 = vmax.f32 %v661, 0.0
        %v684 = vmax.f32 %v666, 0.0
        %v685 = vld [vmem:[%s406] sm:$0xff]
        %v686 = vld [vmem:[%s406 + $0x8] sm:$0xff]
        %687 = vmatprep.subr.mxu0 0.0
        %688 = vmatpush1.msra.mxu0 %v485
        %689 = vmatprep.subr.mxu0 0.0
        %690 = vmatpush1.msra.mxu0 %v486
        %691 = vmatprep.subr.mxu0 0.0
        %692 = vmatpush1.msra.mxu0 %v487
        %693 = vmatprep.subr.mxu0 0.0
        %694 = vmatpush1.msra.mxu0 %v488
        %695 = vmatprep.subr.mxu0 0.0
        %696 = vmatpush1.msra.mxu0 %v489
        %697 = vmatprep.subr.mxu0 0.0
        %698 = vmatpush1.msra.mxu0 %v490
        %699 = vmatprep.subr.mxu0 0.0
        %700 = vmatpush1.msra.mxu0 %v491
        %701 = vmatprep.subr.mxu0 0.0
        %702 = vmatpush1.msra.mxu0 %v492
        %703 = vmatprep.subr.mxu0 0.0
        %704 = vmatpush1.msra.mxu0 %v493
        %705 = vmatprep.subr.mxu0 0.0
        %706 = vmatpush1.msra.mxu0 %v494
        %707 = vmatprep.subr.mxu0 0.0
        %708 = vmatpush1.msra.mxu0 %v495
        %709 = vmatprep.subr.mxu0 0.0
        %710 = vmatpush1.msra.mxu0 %v496
        %711 = vmatprep.subr.mxu0 0.0
        %712 = vmatpush1.msra.mxu0 %v497
        %713 = vmatprep.subr.mxu0 0.0
        %714 = vmatpush1.msra.mxu0 %v498
        %715 = vmatprep.subr.mxu0 0.0
        %716 = vmatpush1.msra.mxu0 %v499
        %717 = vmatprep.subr.mxu0 0.0
        %718 = vmatpush1.msra.mxu0 %v500
        %719 = vmatprep.subr.mxu0 0.0
        %720 = vmatpush1.msra.mxu0 0.0
        %721 = vmatprep.subr.mxu0 0.0
        %722 = vmatpush1.msra.mxu0 0.0
        %723 = vmatprep.subr.mxu0 0.0
        %724 = vmatpush1.msra.mxu0 0.0
        %725 = vmatprep.subr.mxu0 0.0
        %726 = vmatpush1.msra.mxu0 0.0
        %727 = vmatprep.subr.mxu0 0.0
        %728 = vmatpush1.msra.mxu0 0.0
        %729 = vmatprep.subr.mxu0 0.0
        %730 = vmatpush1.msra.mxu0 0.0
        %731 = vmatprep.subr.mxu0 0.0
        %732 = vmatpush1.msra.mxu0 0.0
        %733 = vmatprep.subr.mxu0 0.0
        %734 = vmatpush1.msra.mxu0 0.0
        %735 = vmatprep.subr.mxu0 0.0
        %736 = vmatpush1.msra.mxu0 0.0
        %737 = vmatprep.subr.mxu0 0.0
        %738 = vmatpush1.msra.mxu0 0.0
        %739 = vmatprep.subr.mxu0 0.0
        %740 = vmatpush1.msra.mxu0 0.0
        %741 = vmatprep.subr.mxu0 0.0
        %742 = vmatpush1.msra.mxu0 0.0
        %743 = vmatprep.subr.mxu0 0.0
        %744 = vmatpush1.msra.mxu0 0.0
        %745 = vmatprep.subr.mxu0 0.0
        %746 = vmatpush1.msra.mxu0 0.0
        %747 = vmatprep.subr.mxu0 0.0
        %748 = vmatpush1.msra.mxu0 0.0
        %749 = vmatprep.subr.mxu0 0.0
        %750 = vmatpush1.msra.mxu0 0.0
        %751 = vmatprep.mubr.f32.mxu0 0.0
        %752 = vmatmul.mubr.f32.gmra.mrb[0].mxu0 %v685
        %v753 = vpop.f32.mrb[0].mxu0
        %v754 = vadd.f32 %v522, %v753
        %v755 = vpop.f32.mrb[0].mxu0
        %756 = vmatprep.mubr.f32.mxu0 0.0
        %757 = vmatmul.mubr.f32.gmra.mrb[0].mxu0 %v686
        %v758 = vpop.f32.mrb[0].mxu0
        %v759 = vadd.f32 %v522, %v758
        %v760 = vpop.f32.mrb[0].mxu0
        %761 = vdwg.mxu0
        %v762 = vmax.f32 %v754, 0.0
        %v763 = vmax.f32 %v759, 0.0
        %p764 = scmp.gt.s32.totalorder %s34, 0
        %s765 = scalar_select %p764, 1.0, 0.0
        %v766 = vstv %s765
        %v767 = vmul.f32 %v762, %v766
        %v768 = vmul.f32 %v763, %v766
        %v769 = vld [vmem:[%s415] sm:$0xff]
        %v770 = vld [vmem:[%s415 + $0x8] sm:$0xff]
        %771 = vmatprep.subr.mxu0 0.0
        %772 = vmatpush1.msra.mxu0 %v485
        %773 = vmatprep.subr.mxu0 0.0
        %774 = vmatpush1.msra.mxu0 %v486
        %775 = vmatprep.subr.mxu0 0.0
        %776 = vmatpush1.msra.mxu0 %v487
        %777 = vmatprep.subr.mxu0 0.0
        %778 = vmatpush1.msra.mxu0 %v488
        %779 = vmatprep.subr.mxu0 0.0
        %780 = vmatpush1.msra.mxu0 %v489
        %781 = vmatprep.subr.mxu0 0.0
        %782 = vmatpush1.msra.mxu0 %v490
        %783 = vmatprep.subr.mxu0 0.0
        %784 = vmatpush1.msra.mxu0 %v491
        %785 = vmatprep.subr.mxu0 0.0
        %786 = vmatpush1.msra.mxu0 %v492
        %787 = vmatprep.subr.mxu0 0.0
        %788 = vmatpush1.msra.mxu0 %v493
        %789 = vmatprep.subr.mxu0 0.0
        %790 = vmatpush1.msra.mxu0 %v494
        %791 = vmatprep.subr.mxu0 0.0
        %792 = vmatpush1.msra.mxu0 %v495
        %793 = vmatprep.subr.mxu0 0.0
        %794 = vmatpush1.msra.mxu0 %v496
        %795 = vmatprep.subr.mxu0 0.0
        %796 = vmatpush1.msra.mxu0 %v497
        %797 = vmatprep.subr.mxu0 0.0
        %798 = vmatpush1.msra.mxu0 %v498
        %799 = vmatprep.subr.mxu0 0.0
        %800 = vmatpush1.msra.mxu0 %v499
        %801 = vmatprep.subr.mxu0 0.0
        %802 = vmatpush1.msra.mxu0 %v500
        %803 = vmatprep.subr.mxu0 0.0
        %804 = vmatpush1.msra.mxu0 0.0
        %805 = vmatprep.subr.mxu0 0.0
        %806 = vmatpush1.msra.mxu0 0.0
        %807 = vmatprep.subr.mxu0 0.0
        %808 = vmatpush1.msra.mxu0 0.0
        %809 = vmatprep.subr.mxu0 0.0
        %810 = vmatpush1.msra.mxu0 0.0
        %811 = vmatprep.subr.mxu0 0.0
        %812 = vmatpush1.msra.mxu0 0.0
        %813 = vmatprep.subr.mxu0 0.0
        %814 = vmatpush1.msra.mxu0 0.0
        %815 = vmatprep.subr.mxu0 0.0
        %816 = vmatpush1.msra.mxu0 0.0
        %817 = vmatprep.subr.mxu0 0.0
        %818 = vmatpush1.msra.mxu0 0.0
        %819 = vmatprep.subr.mxu0 0.0
        %820 = vmatpush1.msra.mxu0 0.0
        %821 = vmatprep.subr.mxu0 0.0
        %822 = vmatpush1.msra.mxu0 0.0
        %823 = vmatprep.subr.mxu0 0.0
        %824 = vmatpush1.msra.mxu0 0.0
        %825 = vmatprep.subr.mxu0 0.0
        %826 = vmatpush1.msra.mxu0 0.0
        %827 = vmatprep.subr.mxu0 0.0
        %828 = vmatpush1.msra.mxu0 0.0
        %829 = vmatprep.subr.mxu0 0.0
        %830 = vmatpush1.msra.mxu0 0.0
        %831 = vmatprep.subr.mxu0 0.0
        %832 = vmatpush1.msra.mxu0 0.0
        %833 = vmatprep.subr.mxu0 0.0
        %834 = vmatpush1.msra.mxu0 0.0
        %835 = vmatprep.mubr.f32.mxu0 0.0
        %836 = vmatmul.mubr.f32.gmra.mrb[0].mxu0 %v769
        %v837 = vpop.f32.mrb[0].mxu0
        %v838 = vadd.f32 %v522, %v837
        %v839 = vpop.f32.mrb[0].mxu0
        %840 = vmatprep.mubr.f32.mxu0 0.0
        %841 = vmatmul.mubr.f32.gmra.mrb[0].mxu0 %v770
        %v842 = vpop.f32.mrb[0].mxu0
        %v843 = vadd.f32 %v522, %v842
        %v844 = vpop.f32.mrb[0].mxu0
        %845 = vdwg.mxu0
        %v846 = vmax.f32 %v838, 0.0
        %v847 = vmax.f32 %v843, 0.0
        %p848 = scmp.lt.s32.totalorder %s34, 1
        %s849 = scalar_select %p848, 1.0, 0.0
        %v850 = vstv %s849
        %v851 = vmul.f32 %v846, %v850
        %v852 = vmul.f32 %v847, %v850
        %vm853 = vcmask 253952
        %854 = vst.msk [vmem:[#allocation2] sm:$0x1] %vm853, 0.0
        %855 = vst.msk [vmem:[#allocation2 + $0x18] sm:$0x1] %vm853, 0.0
        %856 = vst.msk [vmem:[#allocation2 + $0x30] sm:$0x1] %vm853, 0.0
        %857 = vst.msk [vmem:[#allocation2 + $0x48] sm:$0x1] %vm853, 0.0
        %858 = vst.msk [vmem:[#allocation2 + $0x60] sm:$0x1] %vm853, 0.0
        %859 = vst.msk [vmem:[#allocation2 + $0x78] sm:$0x1] %vm853, 0.0
        %860 = vst.msk [vmem:[#allocation2 + $0x90] sm:$0x1] %vm853, 0.0
        %861 = vst.msk [vmem:[#allocation2 + $0xa8] sm:$0x1] %vm853, 0.0
        %862 = vst.msk [vmem:[#allocation2 + $0xc0] sm:$0x1] %vm853, 0.0
        %863 = vst.msk [vmem:[#allocation2 + $0xd8] sm:$0x1] %vm853, 0.0
        %864 = vst.msk [vmem:[#allocation2 + $0x11] sm:$0x1] %vm853, 0.0
        %865 = vst.msk [vmem:[#allocation2 + $0x29] sm:$0x1] %vm853, 0.0
        %866 = vst.msk [vmem:[#allocation2 + $0x41] sm:$0x1] %vm853, 0.0
        %867 = vst.msk [vmem:[#allocation2 + $0x59] sm:$0x1] %vm853, 0.0
        %868 = vst.msk [vmem:[#allocation2 + $0x71] sm:$0x1] %vm853, 0.0
        %869 = vst.msk [vmem:[#allocation2 + $0x89] sm:$0x1] %vm853, 0.0
        %870 = vst.msk [vmem:[#allocation2 + $0xa1] sm:$0x1] %vm853, 0.0
        %871 = vst.msk [vmem:[#allocation2 + $0xb9] sm:$0x1] %vm853, 0.0
        %872 = vst.msk [vmem:[#allocation2 + $0xd1] sm:$0x1] %vm853, 0.0
        %873 = vst.msk [vmem:[#allocation2 + $0xe9] sm:$0x1] %vm853, 0.0
        %vm874 = vcmask 261120
        %875 = vst.msk [vmem:[#allocation2 + $0x1] sm:$0xff] %vm874, %v767
        %876 = vst.msk [vmem:[#allocation2 + $0x9] sm:$0xff] %vm874, %v768
        %s877 = scalar_lea.vmem [#allocation2], 24
        %878 = vst.msk [vmem:[%s877 + $0x1] sm:$0xff] %vm874, %v669
        %879 = vst.msk [vmem:[%s877 + $0x9] sm:$0xff] %vm874, %v670
        %880 = vst.msk [vmem:[%s877 + $0x19] sm:$0xff] %vm874, %v671
        %881 = vst.msk [vmem:[%s877 + $0x21] sm:$0xff] %vm874, %v672
        %882 = vst.msk [vmem:[%s877 + $0x31] sm:$0xff] %vm874, %v673
        %883 = vst.msk [vmem:[%s877 + $0x39] sm:$0xff] %vm874, %v674
        %884 = vst.msk [vmem:[%s877 + $0x49] sm:$0xff] %vm874, %v675
        %885 = vst.msk [vmem:[%s877 + $0x51] sm:$0xff] %vm874, %v676
        %886 = vst.msk [vmem:[%s877 + $0x61] sm:$0xff] %vm874, %v677
        %887 = vst.msk [vmem:[%s877 + $0x69] sm:$0xff] %vm874, %v678
        %888 = vst.msk [vmem:[%s877 + $0x79] sm:$0xff] %vm874, %v679
        %889 = vst.msk [vmem:[%s877 + $0x81] sm:$0xff] %vm874, %v680
        %890 = vst.msk [vmem:[%s877 + $0x91] sm:$0xff] %vm874, %v681
        %891 = vst.msk [vmem:[%s877 + $0x99] sm:$0xff] %vm874, %v682
        %892 = vst.msk [vmem:[%s877 + $0xa9] sm:$0xff] %vm874, %v683
        %893 = vst.msk [vmem:[%s877 + $0xb1] sm:$0xff] %vm874, %v684
        %s894 = scalar_lea.vmem [#allocation2], 216
        %895 = vst.msk [vmem:[%s894 + $0x1] sm:$0xff] %vm874, %v851
        %896 = vst.msk [vmem:[%s894 + $0x9] sm:$0xff] %vm874, %v852
        %v897 = vld [vmem:[#allocation2] sm:$0xff]
        %v898 = vld [vmem:[#allocation2 + $0x8] sm:$0xff]
        %v899 = vld [vmem:[#allocation2 + $0x18] sm:$0xff]
        %v900 = vld [vmem:[#allocation2 + $0x20] sm:$0xff]
        %v901 = vld [vmem:[#allocation2 + $0x30] sm:$0xff]
        %v902 = vld [vmem:[#allocation2 + $0x38] sm:$0xff]
        %v903 = vld [vmem:[#allocation2 + $0x48] sm:$0xff]
        %v904 = vld [vmem:[#allocation2 + $0x50] sm:$0xff]
        %v905 = vld [vmem:[#allocation2 + $0x60] sm:$0xff]
        %v906 = vld [vmem:[#allocation2 + $0x68] sm:$0xff]
        %v907 = vld [vmem:[#allocation2 + $0x78] sm:$0xff]
        %v908 = vld [vmem:[#allocation2 + $0x80] sm:$0xff]
        %v909 = vld [vmem:[#allocation2 + $0x90] sm:$0xff]
        %v910 = vld [vmem:[#allocation2 + $0x98] sm:$0xff]
        %v911 = vld [vmem:[#allocation2 + $0xa8] sm:$0xff]
        %v912 = vld [vmem:[#allocation2 + $0xb0] sm:$0xff]
        %913 = vst.msk [vmem:[#allocation3] sm:$0xff] %vm874, %v897
        %914 = vst.msk [vmem:[#allocation3 + $0x18] sm:$0xff] %vm874, %v898
        %915 = vst.msk [vmem:[#allocation3 + $0x30] sm:$0xff] %vm874, %v899
        %916 = vst.msk [vmem:[#allocation3 + $0x48] sm:$0xff] %vm874, %v900
        %917 = vst.msk [vmem:[#allocation3 + $0x60] sm:$0xff] %vm874, %v901
        %918 = vst.msk [vmem:[#allocation3 + $0x78] sm:$0xff] %vm874, %v902
        %919 = vst.msk [vmem:[#allocation3 + $0x90] sm:$0xff] %vm874, %v903
        %920 = vst.msk [vmem:[#allocation3 + $0xa8] sm:$0xff] %vm874, %v904
        %921 = vst.msk [vmem:[#allocation3 + $0xc0] sm:$0xff] %vm874, %v905
        %922 = vst.msk [vmem:[#allocation3 + $0xd8] sm:$0xff] %vm874, %v906
        %923 = vst.msk [vmem:[#allocation3 + $0xf0] sm:$0xff] %vm874, %v907
        %924 = vst.msk [vmem:[#allocation3 + $0x108] sm:$0xff] %vm874, %v908
        %925 = vst.msk [vmem:[#allocation3 + $0x120] sm:$0xff] %vm874, %v909
        %926 = vst.msk [vmem:[#allocation3 + $0x138] sm:$0xff] %vm874, %v910
        %927 = vst.msk [vmem:[#allocation3 + $0x150] sm:$0xff] %vm874, %v911
        %928 = vst.msk [vmem:[#allocation3 + $0x168] sm:$0xff] %vm874, %v912
        %v929 = vld [vmem:[#allocation2 + $0x1] sm:$0xff]
        %v930 = vld [vmem:[#allocation2 + $0x9] sm:$0xff]
        %v931 = vld [vmem:[#allocation2 + $0x19] sm:$0xff]
        %v932 = vld [vmem:[#allocation2 + $0x21] sm:$0xff]
        %v933 = vld [vmem:[#allocation2 + $0x31] sm:$0xff]
        %v934 = vld [vmem:[#allocation2 + $0x39] sm:$0xff]
        %v935 = vld [vmem:[#allocation2 + $0x49] sm:$0xff]
        %v936 = vld [vmem:[#allocation2 + $0x51] sm:$0xff]
        %v937 = vld [vmem:[#allocation2 + $0x61] sm:$0xff]
        %v938 = vld [vmem:[#allocation2 + $0x69] sm:$0xff]
        %v939 = vld [vmem:[#allocation2 + $0x79] sm:$0xff]
        %v940 = vld [vmem:[#allocation2 + $0x81] sm:$0xff]
        %v941 = vld [vmem:[#allocation2 + $0x91] sm:$0xff]
        %v942 = vld [vmem:[#allocation2 + $0x99] sm:$0xff]
        %v943 = vld [vmem:[#allocation2 + $0xa9] sm:$0xff]
        %v944 = vld [vmem:[#allocation2 + $0xb1] sm:$0xff]
        %961 = vrot.lane.b32.xlu0 %v929, 32
        %v962 = vpop.permute.xlu0 %961
        %963 = vrot.lane.b32.xlu0 %v930, 32
        %v964 = vpop.permute.xlu0 %963
        %965 = vrot.lane.b32.xlu0 %v931, 32
        %v966 = vpop.permute.xlu0 %965
        %967 = vrot.lane.b32.xlu0 %v932, 32
        %v968 = vpop.permute.xlu0 %967
        %969 = vrot.lane.b32.xlu0 %v933, 32
        %v970 = vpop.permute.xlu0 %969
        %971 = vrot.lane.b32.xlu0 %v934, 32
        %v972 = vpop.permute.xlu0 %971
        %973 = vrot.lane.b32.xlu0 %v935, 32
        %v974 = vpop.permute.xlu0 %973
        %975 = vrot.lane.b32.xlu0 %v936, 32
        %v976 = vpop.permute.xlu0 %975
        %977 = vrot.lane.b32.xlu0 %v937, 32
        %v978 = vpop.permute.xlu0 %977
        %979 = vrot.lane.b32.xlu0 %v938, 32
        %v980 = vpop.permute.xlu0 %979
        %981 = vrot.lane.b32.xlu0 %v939, 32
        %v982 = vpop.permute.xlu0 %981
        %983 = vrot.lane.b32.xlu0 %v940, 32
        %v984 = vpop.permute.xlu0 %983
        %985 = vrot.lane.b32.xlu0 %v941, 32
        %v986 = vpop.permute.xlu0 %985
        %987 = vrot.lane.b32.xlu0 %v942, 32
        %v988 = vpop.permute.xlu0 %987
        %989 = vrot.lane.b32.xlu0 %v943, 32
        %v990 = vpop.permute.xlu0 %989
        %991 = vrot.lane.b32.xlu0 %v944, 32
        %v992 = vpop.permute.xlu0 %991
        %vm1009 = vcmask 523520
        %1010 = vst.msk [vmem:[#allocation3] sm:$0xff] %vm1009, %v962
        %1011 = vst.msk [vmem:[#allocation3 + $0x18] sm:$0xff] %vm1009, %v964
        %1012 = vst.msk [vmem:[#allocation3 + $0x30] sm:$0xff] %vm1009, %v966
        %1013 = vst.msk [vmem:[#allocation3 + $0x48] sm:$0xff] %vm1009, %v968
        %1014 = vst.msk [vmem:[#allocation3 + $0x60] sm:$0xff] %vm1009, %v970
        %1015 = vst.msk [vmem:[#allocation3 + $0x78] sm:$0xff] %vm1009, %v972
        %1016 = vst.msk [vmem:[#allocation3 + $0x90] sm:$0xff] %vm1009, %v974
        %1017 = vst.msk [vmem:[#allocation3 + $0xa8] sm:$0xff] %vm1009, %v976
        %1018 = vst.msk [vmem:[#allocation3 + $0xc0] sm:$0xff] %vm1009, %v978
        %1019 = vst.msk [vmem:[#allocation3 + $0xd8] sm:$0xff] %vm1009, %v980
        %1020 = vst.msk [vmem:[#allocation3 + $0xf0] sm:$0xff] %vm1009, %v982
        %1021 = vst.msk [vmem:[#allocation3 + $0x108] sm:$0xff] %vm1009, %v984
        %1022 = vst.msk [vmem:[#allocation3 + $0x120] sm:$0xff] %vm1009, %v986
        %1023 = vst.msk [vmem:[#allocation3 + $0x138] sm:$0xff] %vm1009, %v988
        %1024 = vst.msk [vmem:[#allocation3 + $0x150] sm:$0xff] %vm1009, %v990
        %1025 = vst.msk [vmem:[#allocation3 + $0x168] sm:$0xff] %vm1009, %v992
        %v1026 = vld [vmem:[#allocation2 + $0x2] sm:$0xff]
        %v1027 = vld [vmem:[#allocation2 + $0xa] sm:$0xff]
        %v1028 = vld [vmem:[#allocation2 + $0x1a] sm:$0xff]
        %v1029 = vld [vmem:[#allocation2 + $0x22] sm:$0xff]
        %v1030 = vld [vmem:[#allocation2 + $0x32] sm:$0xff]
        %v1031 = vld [vmem:[#allocation2 + $0x3a] sm:$0xff]
        %v1032 = vld [vmem:[#allocation2 + $0x4a] sm:$0xff]
        %v1033 = vld [vmem:[#allocation2 + $0x52] sm:$0xff]
        %v1034 = vld [vmem:[#allocation2 + $0x62] sm:$0xff]
        %v1035 = vld [vmem:[#allocation2 + $0x6a] sm:$0xff]
        %v1036 = vld [vmem:[#allocation2 + $0x7a] sm:$0xff]
        %v1037 = vld [vmem:[#allocation2 + $0x82] sm:$0xff]
        %v1038 = vld [vmem:[#allocation2 + $0x92] sm:$0xff]
        %v1039 = vld [vmem:[#allocation2 + $0x9a] sm:$0xff]
        %v1040 = vld [vmem:[#allocation2 + $0xaa] sm:$0xff]
        %v1041 = vld [vmem:[#allocation2 + $0xb2] sm:$0xff]
        %1058 = vrot.lane.b32.xlu0 %v1026, 64
        %v1059 = vpop.permute.xlu0 %1058
        %1060 = vrot.lane.b32.xlu0 %v1027, 64
        %v1061 = vpop.permute.xlu0 %1060
        %1062 = vrot.lane.b32.xlu0 %v1028, 64
        %v1063 = vpop.permute.xlu0 %1062
        %1064 = vrot.lane.b32.xlu0 %v1029, 64
        %v1065 = vpop.permute.xlu0 %1064
        %1066 = vrot.lane.b32.xlu0 %v1030, 64
        %v1067 = vpop.permute.xlu0 %1066
        %1068 = vrot.lane.b32.xlu0 %v1031, 64
        %v1069 = vpop.permute.xlu0 %1068
        %1070 = vrot.lane.b32.xlu0 %v1032, 64
        %v1071 = vpop.permute.xlu0 %1070
        %1072 = vrot.lane.b32.xlu0 %v1033, 64
        %v1073 = vpop.permute.xlu0 %1072
        %1074 = vrot.lane.b32.xlu0 %v1034, 64
        %v1075 = vpop.permute.xlu0 %1074
        %1076 = vrot.lane.b32.xlu0 %v1035, 64
        %v1077 = vpop.permute.xlu0 %1076
        %1078 = vrot.lane.b32.xlu0 %v1036, 64
        %v1079 = vpop.permute.xlu0 %1078
        %1080 = vrot.lane.b32.xlu0 %v1037, 64
        %v1081 = vpop.permute.xlu0 %1080
        %1082 = vrot.lane.b32.xlu0 %v1038, 64
        %v1083 = vpop.permute.xlu0 %1082
        %1084 = vrot.lane.b32.xlu0 %v1039, 64
        %v1085 = vpop.permute.xlu0 %1084
        %1086 = vrot.lane.b32.xlu0 %v1040, 64
        %v1087 = vpop.permute.xlu0 %1086
        %1088 = vrot.lane.b32.xlu0 %v1041, 64
        %v1089 = vpop.permute.xlu0 %1088
        %vm1106 = vcmask 785920
        %1107 = vst.msk [vmem:[#allocation3] sm:$0xff] %vm1106, %v1059
        %1108 = vst.msk [vmem:[#allocation3 + $0x18] sm:$0xff] %vm1106, %v1061
        %1109 = vst.msk [vmem:[#allocation3 + $0x30] sm:$0xff] %vm1106, %v1063
        %1110 = vst.msk [vmem:[#allocation3 + $0x48] sm:$0xff] %vm1106, %v1065
        %1111 = vst.msk [vmem:[#allocation3 + $0x60] sm:$0xff] %vm1106, %v1067
        %1112 = vst.msk [vmem:[#allocation3 + $0x78] sm:$0xff] %vm1106, %v1069
        %1113 = vst.msk [vmem:[#allocation3 + $0x90] sm:$0xff] %vm1106, %v1071
        %1114 = vst.msk [vmem:[#allocation3 + $0xa8] sm:$0xff] %vm1106, %v1073
        %1115 = vst.msk [vmem:[#allocation3 + $0xc0] sm:$0xff] %vm1106, %v1075
        %1116 = vst.msk [vmem:[#allocation3 + $0xd8] sm:$0xff] %vm1106, %v1077
        %1117 = vst.msk [vmem:[#allocation3 + $0xf0] sm:$0xff] %vm1106, %v1079
        %1118 = vst.msk [vmem:[#allocation3 + $0x108] sm:$0xff] %vm1106, %v1081
        %1119 = vst.msk [vmem:[#allocation3 + $0x120] sm:$0xff] %vm1106, %v1083
        %1120 = vst.msk [vmem:[#allocation3 + $0x138] sm:$0xff] %vm1106, %v1085
        %1121 = vst.msk [vmem:[#allocation3 + $0x150] sm:$0xff] %vm1106, %v1087
        %1122 = vst.msk [vmem:[#allocation3 + $0x168] sm:$0xff] %vm1106, %v1089
        %v1123 = vld [vmem:[%s877] sm:$0xff]
        %v1124 = vld [vmem:[%s877 + $0x8] sm:$0xff]
        %v1125 = vld [vmem:[%s877 + $0x18] sm:$0xff]
        %v1126 = vld [vmem:[%s877 + $0x20] sm:$0xff]
        %v1127 = vld [vmem:[%s877 + $0x30] sm:$0xff]
        %v1128 = vld [vmem:[%s877 + $0x38] sm:$0xff]
        %v1129 = vld [vmem:[%s877 + $0x48] sm:$0xff]
        %v1130 = vld [vmem:[%s877 + $0x50] sm:$0xff]
        %v1131 = vld [vmem:[%s877 + $0x60] sm:$0xff]
        %v1132 = vld [vmem:[%s877 + $0x68] sm:$0xff]
        %v1133 = vld [vmem:[%s877 + $0x78] sm:$0xff]
        %v1134 = vld [vmem:[%s877 + $0x80] sm:$0xff]
        %v1135 = vld [vmem:[%s877 + $0x90] sm:$0xff]
        %v1136 = vld [vmem:[%s877 + $0x98] sm:$0xff]
        %v1137 = vld [vmem:[%s877 + $0xa8] sm:$0xff]
        %v1138 = vld [vmem:[%s877 + $0xb0] sm:$0xff]
        %1155 = vrot.lane.b32.xlu0 %v1123, 96
        %v1156 = vpop.permute.xlu0 %1155
        %1157 = vrot.lane.b32.xlu0 %v1124, 96
        %v1158 = vpop.permute.xlu0 %1157
        %1159 = vrot.lane.b32.xlu0 %v1125, 96
        %v1160 = vpop.permute.xlu0 %1159
        %1161 = vrot.lane.b32.xlu0 %v1126, 96
        %v1162 = vpop.permute.xlu0 %1161
        %1163 = vrot.lane.b32.xlu0 %v1127, 96
        %v1164 = vpop.permute.xlu0 %1163
        %1165 = vrot.lane.b32.xlu0 %v1128, 96
        %v1166 = vpop.permute.xlu0 %1165
        %1167 = vrot.lane.b32.xlu0 %v1129, 96
        %v1168 = vpop.permute.xlu0 %1167
        %1169 = vrot.lane.b32.xlu0 %v1130, 96
        %v1170 = vpop.permute.xlu0 %1169
        %1171 = vrot.lane.b32.xlu0 %v1131, 96
        %v1172 = vpop.permute.xlu0 %1171
        %1173 = vrot.lane.b32.xlu0 %v1132, 96
        %v1174 = vpop.permute.xlu0 %1173
        %1175 = vrot.lane.b32.xlu0 %v1133, 96
        %v1176 = vpop.permute.xlu0 %1175
        %1177 = vrot.lane.b32.xlu0 %v1134, 96
        %v1178 = vpop.permute.xlu0 %1177
        %1179 = vrot.lane.b32.xlu0 %v1135, 96
        %v1180 = vpop.permute.xlu0 %1179
        %1181 = vrot.lane.b32.xlu0 %v1136, 96
        %v1182 = vpop.permute.xlu0 %1181
        %1183 = vrot.lane.b32.xlu0 %v1137, 96
        %v1184 = vpop.permute.xlu0 %1183
        %1185 = vrot.lane.b32.xlu0 %v1138, 96
        %v1186 = vpop.permute.xlu0 %1185
        %vm1203 = vcmask 1048320
        %1204 = vst.msk [vmem:[#allocation3] sm:$0xff] %vm1203, %v1156
        %1205 = vst.msk [vmem:[#allocation3 + $0x18] sm:$0xff] %vm1203, %v1158
        %1206 = vst.msk [vmem:[#allocation3 + $0x30] sm:$0xff] %vm1203, %v1160
        %1207 = vst.msk [vmem:[#allocation3 + $0x48] sm:$0xff] %vm1203, %v1162
        %1208 = vst.msk [vmem:[#allocation3 + $0x60] sm:$0xff] %vm1203, %v1164
        %1209 = vst.msk [vmem:[#allocation3 + $0x78] sm:$0xff] %vm1203, %v1166
        %1210 = vst.msk [vmem:[#allocation3 + $0x90] sm:$0xff] %vm1203, %v1168
        %1211 = vst.msk [vmem:[#allocation3 + $0xa8] sm:$0xff] %vm1203, %v1170
        %1212 = vst.msk [vmem:[#allocation3 + $0xc0] sm:$0xff] %vm1203, %v1172
        %1213 = vst.msk [vmem:[#allocation3 + $0xd8] sm:$0xff] %vm1203, %v1174
        %1214 = vst.msk [vmem:[#allocation3 + $0xf0] sm:$0xff] %vm1203, %v1176
        %1215 = vst.msk [vmem:[#allocation3 + $0x108] sm:$0xff] %vm1203, %v1178
        %1216 = vst.msk [vmem:[#allocation3 + $0x120] sm:$0xff] %vm1203, %v1180
        %1217 = vst.msk [vmem:[#allocation3 + $0x138] sm:$0xff] %vm1203, %v1182
        %1218 = vst.msk [vmem:[#allocation3 + $0x150] sm:$0xff] %vm1203, %v1184
        %1219 = vst.msk [vmem:[#allocation3 + $0x168] sm:$0xff] %vm1203, %v1186
        %v1220 = vld [vmem:[%s877 + $0x1] sm:$0xff]
        %v1221 = vld [vmem:[%s877 + $0x9] sm:$0xff]
        %v1222 = vld [vmem:[%s877 + $0x19] sm:$0xff]
        %v1223 = vld [vmem:[%s877 + $0x21] sm:$0xff]
        %v1224 = vld [vmem:[%s877 + $0x31] sm:$0xff]
        %v1225 = vld [vmem:[%s877 + $0x39] sm:$0xff]
        %v1226 = vld [vmem:[%s877 + $0x49] sm:$0xff]
        %v1227 = vld [vmem:[%s877 + $0x51] sm:$0xff]
        %v1228 = vld [vmem:[%s877 + $0x61] sm:$0xff]
        %v1229 = vld [vmem:[%s877 + $0x69] sm:$0xff]
        %v1230 = vld [vmem:[%s877 + $0x79] sm:$0xff]
        %v1231 = vld [vmem:[%s877 + $0x81] sm:$0xff]
        %v1232 = vld [vmem:[%s877 + $0x91] sm:$0xff]
        %v1233 = vld [vmem:[%s877 + $0x99] sm:$0xff]
        %v1234 = vld [vmem:[%s877 + $0xa9] sm:$0xff]
        %v1235 = vld [vmem:[%s877 + $0xb1] sm:$0xff]
        %1236 = vst.msk [vmem:[#allocation3 + $0x8] sm:$0xff] %vm874, %v1220
        %1237 = vst.msk [vmem:[#allocation3 + $0x20] sm:$0xff] %vm874, %v1221
        %1238 = vst.msk [vmem:[#allocation3 + $0x38] sm:$0xff] %vm874, %v1222
        %1239 = vst.msk [vmem:[#allocation3 + $0x50] sm:$0xff] %vm874, %v1223
        %1240 = vst.msk [vmem:[#allocation3 + $0x68] sm:$0xff] %vm874, %v1224
        %1241 = vst.msk [vmem:[#allocation3 + $0x80] sm:$0xff] %vm874, %v1225
        %1242 = vst.msk [vmem:[#allocation3 + $0x98] sm:$0xff] %vm874, %v1226
        %1243 = vst.msk [vmem:[#allocation3 + $0xb0] sm:$0xff] %vm874, %v1227
        %1244 = vst.msk [vmem:[#allocation3 + $0xc8] sm:$0xff] %vm874, %v1228
        %1245 = vst.msk [vmem:[#allocation3 + $0xe0] sm:$0xff] %vm874, %v1229
        %1246 = vst.msk [vmem:[#allocation3 + $0xf8] sm:$0xff] %vm874, %v1230
        %1247 = vst.msk [vmem:[#allocation3 + $0x110] sm:$0xff] %vm874, %v1231
        %1248 = vst.msk [vmem:[#allocation3 + $0x128] sm:$0xff] %vm874, %v1232
        %1249 = vst.msk [vmem:[#allocation3 + $0x140] sm:$0xff] %vm874, %v1233
        %1250 = vst.msk [vmem:[#allocation3 + $0x158] sm:$0xff] %vm874, %v1234
        %1251 = vst.msk [vmem:[#allocation3 + $0x170] sm:$0xff] %vm874, %v1235
        %v1252 = vld [vmem:[%s877 + $0x2] sm:$0xff]
        %v1253 = vld [vmem:[%s877 + $0xa] sm:$0xff]
        %v1254 = vld [vmem:[%s877 + $0x1a] sm:$0xff]
        %v1255 = vld [vmem:[%s877 + $0x22] sm:$0xff]
        %v1256 = vld [vmem:[%s877 + $0x32] sm:$0xff]
        %v1257 = vld [vmem:[%s877 + $0x3a] sm:$0xff]
        %v1258 = vld [vmem:[%s877 + $0x4a] sm:$0xff]
        %v1259 = vld [vmem:[%s877 + $0x52] sm:$0xff]
        %v1260 = vld [vmem:[%s877 + $0x62] sm:$0xff]
        %v1261 = vld [vmem:[%s877 + $0x6a] sm:$0xff]
        %v1262 = vld [vmem:[%s877 + $0x7a] sm:$0xff]
        %v1263 = vld [vmem:[%s877 + $0x82] sm:$0xff]
        %v1264 = vld [vmem:[%s877 + $0x92] sm:$0xff]
        %v1265 = vld [vmem:[%s877 + $0x9a] sm:$0xff]
        %v1266 = vld [vmem:[%s877 + $0xaa] sm:$0xff]
        %v1267 = vld [vmem:[%s877 + $0xb2] sm:$0xff]
        %1284 = vrot.lane.b32.xlu0 %v1252, 32
        %v1285 = vpop.permute.xlu0 %1284
        %1286 = vrot.lane.b32.xlu0 %v1253, 32
        %v1287 = vpop.permute.xlu0 %1286
        %1288 = vrot.lane.b32.xlu0 %v1254, 32
        %v1289 = vpop.permute.xlu0 %1288
        %1290 = vrot.lane.b32.xlu0 %v1255, 32
        %v1291 = vpop.permute.xlu0 %1290
        %1292 = vrot.lane.b32.xlu0 %v1256, 32
        %v1293 = vpop.permute.xlu0 %1292
        %1294 = vrot.lane.b32.xlu0 %v1257, 32
        %v1295 = vpop.permute.xlu0 %1294
        %1296 = vrot.lane.b32.xlu0 %v1258, 32
        %v1297 = vpop.permute.xlu0 %1296
        %1298 = vrot.lane.b32.xlu0 %v1259, 32
        %v1299 = vpop.permute.xlu0 %1298
        %1300 = vrot.lane.b32.xlu0 %v1260, 32
        %v1301 = vpop.permute.xlu0 %1300
        %1302 = vrot.lane.b32.xlu0 %v1261, 32
        %v1303 = vpop.permute.xlu0 %1302
        %1304 = vrot.lane.b32.xlu0 %v1262, 32
        %v1305 = vpop.permute.xlu0 %1304
        %1306 = vrot.lane.b32.xlu0 %v1263, 32
        %v1307 = vpop.permute.xlu0 %1306
        %1308 = vrot.lane.b32.xlu0 %v1264, 32
        %v1309 = vpop.permute.xlu0 %1308
        %1310 = vrot.lane.b32.xlu0 %v1265, 32
        %v1311 = vpop.permute.xlu0 %1310
        %1312 = vrot.lane.b32.xlu0 %v1266, 32
        %v1313 = vpop.permute.xlu0 %1312
        %1314 = vrot.lane.b32.xlu0 %v1267, 32
        %v1315 = vpop.permute.xlu0 %1314
        %1332 = vst.msk [vmem:[#allocation3 + $0x8] sm:$0xff] %vm1009, %v1285
        %1333 = vst.msk [vmem:[#allocation3 + $0x20] sm:$0xff] %vm1009, %v1287
        %1334 = vst.msk [vmem:[#allocation3 + $0x38] sm:$0xff] %vm1009, %v1289
        %1335 = vst.msk [vmem:[#allocation3 + $0x50] sm:$0xff] %vm1009, %v1291
        %1336 = vst.msk [vmem:[#allocation3 + $0x68] sm:$0xff] %vm1009, %v1293
        %1337 = vst.msk [vmem:[#allocation3 + $0x80] sm:$0xff] %vm1009, %v1295
        %1338 = vst.msk [vmem:[#allocation3 + $0x98] sm:$0xff] %vm1009, %v1297
        %1339 = vst.msk [vmem:[#allocation3 + $0xb0] sm:$0xff] %vm1009, %v1299
        %1340 = vst.msk [vmem:[#allocation3 + $0xc8] sm:$0xff] %vm1009, %v1301
        %1341 = vst.msk [vmem:[#allocation3 + $0xe0] sm:$0xff] %vm1009, %v1303
        %1342 = vst.msk [vmem:[#allocation3 + $0xf8] sm:$0xff] %vm1009, %v1305
        %1343 = vst.msk [vmem:[#allocation3 + $0x110] sm:$0xff] %vm1009, %v1307
        %1344 = vst.msk [vmem:[#allocation3 + $0x128] sm:$0xff] %vm1009, %v1309
        %1345 = vst.msk [vmem:[#allocation3 + $0x140] sm:$0xff] %vm1009, %v1311
        %1346 = vst.msk [vmem:[#allocation3 + $0x158] sm:$0xff] %vm1009, %v1313
        %1347 = vst.msk [vmem:[#allocation3 + $0x170] sm:$0xff] %vm1009, %v1315
        %s1348 = scalar_lea.vmem [#allocation2], 48
        %v1349 = vld [vmem:[%s1348] sm:$0xff]
        %v1350 = vld [vmem:[%s1348 + $0x8] sm:$0xff]
        %v1351 = vld [vmem:[%s1348 + $0x18] sm:$0xff]
        %v1352 = vld [vmem:[%s1348 + $0x20] sm:$0xff]
        %v1353 = vld [vmem:[%s1348 + $0x30] sm:$0xff]
        %v1354 = vld [vmem:[%s1348 + $0x38] sm:$0xff]
        %v1355 = vld [vmem:[%s1348 + $0x48] sm:$0xff]
        %v1356 = vld [vmem:[%s1348 + $0x50] sm:$0xff]
        %v1357 = vld [vmem:[%s1348 + $0x60] sm:$0xff]
        %v1358 = vld [vmem:[%s1348 + $0x68] sm:$0xff]
        %v1359 = vld [vmem:[%s1348 + $0x78] sm:$0xff]
        %v1360 = vld [vmem:[%s1348 + $0x80] sm:$0xff]
        %v1361 = vld [vmem:[%s1348 + $0x90] sm:$0xff]
        %v1362 = vld [vmem:[%s1348 + $0x98] sm:$0xff]
        %v1363 = vld [vmem:[%s1348 + $0xa8] sm:$0xff]
        %v1364 = vld [vmem:[%s1348 + $0xb0] sm:$0xff]
        %1381 = vrot.lane.b32.xlu0 %v1349, 64
        %v1382 = vpop.permute.xlu0 %1381
        %1383 = vrot.lane.b32.xlu0 %v1350, 64
        %v1384 = vpop.permute.xlu0 %1383
        %1385 = vrot.lane.b32.xlu0 %v1351, 64
        %v1386 = vpop.permute.xlu0 %1385
        %1387 = vrot.lane.b32.xlu0 %v1352, 64
        %v1388 = vpop.permute.xlu0 %1387
        %1389 = vrot.lane.b32.xlu0 %v1353, 64
        %v1390 = vpop.permute.xlu0 %1389
        %1391 = vrot.lane.b32.xlu0 %v1354, 64
        %v1392 = vpop.permute.xlu0 %1391
        %1393 = vrot.lane.b32.xlu0 %v1355, 64
        %v1394 = vpop.permute.xlu0 %1393
        %1395 = vrot.lane.b32.xlu0 %v1356, 64
        %v1396 = vpop.permute.xlu0 %1395
        %1397 = vrot.lane.b32.xlu0 %v1357, 64
        %v1398 = vpop.permute.xlu0 %1397
        %1399 = vrot.lane.b32.xlu0 %v1358, 64
        %v1400 = vpop.permute.xlu0 %1399
        %1401 = vrot.lane.b32.xlu0 %v1359, 64
        %v1402 = vpop.permute.xlu0 %1401
        %1403 = vrot.lane.b32.xlu0 %v1360, 64
        %v1404 = vpop.permute.xlu0 %1403
        %1405 = vrot.lane.b32.xlu0 %v1361, 64
        %v1406 = vpop.permute.xlu0 %1405
        %1407 = vrot.lane.b32.xlu0 %v1362, 64
        %v1408 = vpop.permute.xlu0 %1407
        %1409 = vrot.lane.b32.xlu0 %v1363, 64
        %v1410 = vpop.permute.xlu0 %1409
        %1411 = vrot.lane.b32.xlu0 %v1364, 64
        %v1412 = vpop.permute.xlu0 %1411
        %1429 = vst.msk [vmem:[#allocation3 + $0x8] sm:$0xff] %vm1106, %v1382
        %1430 = vst.msk [vmem:[#allocation3 + $0x20] sm:$0xff] %vm1106, %v1384
        %1431 = vst.msk [vmem:[#allocation3 + $0x38] sm:$0xff] %vm1106, %v1386
        %1432 = vst.msk [vmem:[#allocation3 + $0x50] sm:$0xff] %vm1106, %v1388
        %1433 = vst.msk [vmem:[#allocation3 + $0x68] sm:$0xff] %vm1106, %v1390
        %1434 = vst.msk [vmem:[#allocation3 + $0x80] sm:$0xff] %vm1106, %v1392
        %1435 = vst.msk [vmem:[#allocation3 + $0x98] sm:$0xff] %vm1106, %v1394
        %1436 = vst.msk [vmem:[#allocation3 + $0xb0] sm:$0xff] %vm1106, %v1396
        %1437 = vst.msk [vmem:[#allocation3 + $0xc8] sm:$0xff] %vm1106, %v1398
        %1438 = vst.msk [vmem:[#allocation3 + $0xe0] sm:$0xff] %vm1106, %v1400
        %1439 = vst.msk [vmem:[#allocation3 + $0xf8] sm:$0xff] %vm1106, %v1402
        %1440 = vst.msk [vmem:[#allocation3 + $0x110] sm:$0xff] %vm1106, %v1404
        %1441 = vst.msk [vmem:[#allocation3 + $0x128] sm:$0xff] %vm1106, %v1406
        %1442 = vst.msk [vmem:[#allocation3 + $0x140] sm:$0xff] %vm1106, %v1408
        %1443 = vst.msk [vmem:[#allocation3 + $0x158] sm:$0xff] %vm1106, %v1410
        %1444 = vst.msk [vmem:[#allocation3 + $0x170] sm:$0xff] %vm1106, %v1412
        %v1445 = vld [vmem:[%s1348 + $0x1] sm:$0xff]
        %v1446 = vld [vmem:[%s1348 + $0x9] sm:$0xff]
        %v1447 = vld [vmem:[%s1348 + $0x19] sm:$0xff]
        %v1448 = vld [vmem:[%s1348 + $0x21] sm:$0xff]
        %v1449 = vld [vmem:[%s1348 + $0x31] sm:$0xff]
        %v1450 = vld [vmem:[%s1348 + $0x39] sm:$0xff]
        %v1451 = vld [vmem:[%s1348 + $0x49] sm:$0xff]
        %v1452 = vld [vmem:[%s1348 + $0x51] sm:$0xff]
        %v1453 = vld [vmem:[%s1348 + $0x61] sm:$0xff]
        %v1454 = vld [vmem:[%s1348 + $0x69] sm:$0xff]
        %v1455 = vld [vmem:[%s1348 + $0x79] sm:$0xff]
        %v1456 = vld [vmem:[%s1348 + $0x81] sm:$0xff]
        %v1457 = vld [vmem:[%s1348 + $0x91] sm:$0xff]
        %v1458 = vld [vmem:[%s1348 + $0x99] sm:$0xff]
        %v1459 = vld [vmem:[%s1348 + $0xa9] sm:$0xff]
        %v1460 = vld [vmem:[%s1348 + $0xb1] sm:$0xff]
        %1477 = vrot.lane.b32.xlu0 %v1445, 96
        %v1478 = vpop.permute.xlu0 %1477
        %1479 = vrot.lane.b32.xlu0 %v1446, 96
        %v1480 = vpop.permute.xlu0 %1479
        %1481 = vrot.lane.b32.xlu0 %v1447, 96
        %v1482 = vpop.permute.xlu0 %1481
        %1483 = vrot.lane.b32.xlu0 %v1448, 96
        %v1484 = vpop.permute.xlu0 %1483
        %1485 = vrot.lane.b32.xlu0 %v1449, 96
        %v1486 = vpop.permute.xlu0 %1485
        %1487 = vrot.lane.b32.xlu0 %v1450, 96
        %v1488 = vpop.permute.xlu0 %1487
        %1489 = vrot.lane.b32.xlu0 %v1451, 96
        %v1490 = vpop.permute.xlu0 %1489
        %1491 = vrot.lane.b32.xlu0 %v1452, 96
        %v1492 = vpop.permute.xlu0 %1491
        %1493 = vrot.lane.b32.xlu0 %v1453, 96
        %v1494 = vpop.permute.xlu0 %1493
        %1495 = vrot.lane.b32.xlu0 %v1454, 96
        %v1496 = vpop.permute.xlu0 %1495
        %1497 = vrot.lane.b32.xlu0 %v1455, 96
        %v1498 = vpop.permute.xlu0 %1497
        %1499 = vrot.lane.b32.xlu0 %v1456, 96
        %v1500 = vpop.permute.xlu0 %1499
        %1501 = vrot.lane.b32.xlu0 %v1457, 96
        %v1502 = vpop.permute.xlu0 %1501
        %1503 = vrot.lane.b32.xlu0 %v1458, 96
        %v1504 = vpop.permute.xlu0 %1503
        %1505 = vrot.lane.b32.xlu0 %v1459, 96
        %v1506 = vpop.permute.xlu0 %1505
        %1507 = vrot.lane.b32.xlu0 %v1460, 96
        %v1508 = vpop.permute.xlu0 %1507
        %1525 = vst.msk [vmem:[#allocation3 + $0x8] sm:$0xff] %vm1203, %v1478
        %1526 = vst.msk [vmem:[#allocation3 + $0x20] sm:$0xff] %vm1203, %v1480
        %1527 = vst.msk [vmem:[#allocation3 + $0x38] sm:$0xff] %vm1203, %v1482
        %1528 = vst.msk [vmem:[#allocation3 + $0x50] sm:$0xff] %vm1203, %v1484
        %1529 = vst.msk [vmem:[#allocation3 + $0x68] sm:$0xff] %vm1203, %v1486
        %1530 = vst.msk [vmem:[#allocation3 + $0x80] sm:$0xff] %vm1203, %v1488
        %1531 = vst.msk [vmem:[#allocation3 + $0x98] sm:$0xff] %vm1203, %v1490
        %1532 = vst.msk [vmem:[#allocation3 + $0xb0] sm:$0xff] %vm1203, %v1492
        %1533 = vst.msk [vmem:[#allocation3 + $0xc8] sm:$0xff] %vm1203, %v1494
        %1534 = vst.msk [vmem:[#allocation3 + $0xe0] sm:$0xff] %vm1203, %v1496
        %1535 = vst.msk [vmem:[#allocation3 + $0xf8] sm:$0xff] %vm1203, %v1498
        %1536 = vst.msk [vmem:[#allocation3 + $0x110] sm:$0xff] %vm1203, %v1500
        %1537 = vst.msk [vmem:[#allocation3 + $0x128] sm:$0xff] %vm1203, %v1502
        %1538 = vst.msk [vmem:[#allocation3 + $0x140] sm:$0xff] %vm1203, %v1504
        %1539 = vst.msk [vmem:[#allocation3 + $0x158] sm:$0xff] %vm1203, %v1506
        %1540 = vst.msk [vmem:[#allocation3 + $0x170] sm:$0xff] %vm1203, %v1508
        %v1541 = vld [vmem:[%s1348 + $0x2] sm:$0xff]
        %v1542 = vld [vmem:[%s1348 + $0xa] sm:$0xff]
        %v1543 = vld [vmem:[%s1348 + $0x1a] sm:$0xff]
        %v1544 = vld [vmem:[%s1348 + $0x22] sm:$0xff]
        %v1545 = vld [vmem:[%s1348 + $0x32] sm:$0xff]
        %v1546 = vld [vmem:[%s1348 + $0x3a] sm:$0xff]
        %v1547 = vld [vmem:[%s1348 + $0x4a] sm:$0xff]
        %v1548 = vld [vmem:[%s1348 + $0x52] sm:$0xff]
        %v1549 = vld [vmem:[%s1348 + $0x62] sm:$0xff]
        %v1550 = vld [vmem:[%s1348 + $0x6a] sm:$0xff]
        %v1551 = vld [vmem:[%s1348 + $0x7a] sm:$0xff]
        %v1552 = vld [vmem:[%s1348 + $0x82] sm:$0xff]
        %v1553 = vld [vmem:[%s1348 + $0x92] sm:$0xff]
        %v1554 = vld [vmem:[%s1348 + $0x9a] sm:$0xff]
        %v1555 = vld [vmem:[%s1348 + $0xaa] sm:$0xff]
        %v1556 = vld [vmem:[%s1348 + $0xb2] sm:$0xff]
        %1557 = vst.msk [vmem:[#allocation3 + $0x10] sm:$0xff] %vm874, %v1541
        %1558 = vst.msk [vmem:[#allocation3 + $0x28] sm:$0xff] %vm874, %v1542
        %1559 = vst.msk [vmem:[#allocation3 + $0x40] sm:$0xff] %vm874, %v1543
        %1560 = vst.msk [vmem:[#allocation3 + $0x58] sm:$0xff] %vm874, %v1544
        %1561 = vst.msk [vmem:[#allocation3 + $0x70] sm:$0xff] %vm874, %v1545
        %1562 = vst.msk [vmem:[#allocation3 + $0x88] sm:$0xff] %vm874, %v1546
        %1563 = vst.msk [vmem:[#allocation3 + $0xa0] sm:$0xff] %vm874, %v1547
        %1564 = vst.msk [vmem:[#allocation3 + $0xb8] sm:$0xff] %vm874, %v1548
        %1565 = vst.msk [vmem:[#allocation3 + $0xd0] sm:$0xff] %vm874, %v1549
        %1566 = vst.msk [vmem:[#allocation3 + $0xe8] sm:$0xff] %vm874, %v1550
        %1567 = vst.msk [vmem:[#allocation3 + $0x100] sm:$0xff] %vm874, %v1551
        %1568 = vst.msk [vmem:[#allocation3 + $0x118] sm:$0xff] %vm874, %v1552
        %1569 = vst.msk [vmem:[#allocation3 + $0x130] sm:$0xff] %vm874, %v1553
        %1570 = vst.msk [vmem:[#allocation3 + $0x148] sm:$0xff] %vm874, %v1554
        %1571 = vst.msk [vmem:[#allocation3 + $0x160] sm:$0xff] %vm874, %v1555
        %1572 = vst.msk [vmem:[#allocation3 + $0x178] sm:$0xff] %vm874, %v1556
        %v1573 = vld [vmem:[#allocation3] sm:$0xff]
        %v1574 = vld [vmem:[#allocation3 + $0x8] sm:$0xff]
        %v1575 = vld [vmem:[#allocation3 + $0x10] sm:$0xff]
        %v1576 = vld [vmem:[#allocation3 + $0x18] sm:$0xff]
        %v1577 = vld [vmem:[#allocation3 + $0x20] sm:$0xff]
        %v1578 = vld [vmem:[#allocation3 + $0x28] sm:$0xff]
        %v1579 = vld [vmem:[#allocation3 + $0x30] sm:$0xff]
        %v1580 = vld [vmem:[#allocation3 + $0x38] sm:$0xff]
        %v1581 = vld [vmem:[#allocation3 + $0x40] sm:$0xff]
        %v1582 = vld [vmem:[#allocation3 + $0x48] sm:$0xff]
        %v1583 = vld [vmem:[#allocation3 + $0x50] sm:$0xff]
        %v1584 = vld [vmem:[#allocation3 + $0x58] sm:$0xff]
        %v1585 = vld [vmem:[#allocation3 + $0x60] sm:$0xff]
        %v1586 = vld [vmem:[#allocation3 + $0x68] sm:$0xff]
        %v1587 = vld [vmem:[#allocation3 + $0x70] sm:$0xff]
        %v1588 = vld [vmem:[#allocation3 + $0x78] sm:$0xff]
        %v1589 = vld [vmem:[#allocation3 + $0x80] sm:$0xff]
        %v1590 = vld [vmem:[#allocation3 + $0x88] sm:$0xff]
        %v1591 = vld [vmem:[#allocation3 + $0x90] sm:$0xff]
        %v1592 = vld [vmem:[#allocation3 + $0x98] sm:$0xff]
        %v1593 = vld [vmem:[#allocation3 + $0xa0] sm:$0xff]
        %v1594 = vld [vmem:[#allocation3 + $0xa8] sm:$0xff]
        %v1595 = vld [vmem:[#allocation3 + $0xb0] sm:$0xff]
        %v1596 = vld [vmem:[#allocation3 + $0xb8] sm:$0xff]
        %v1597 = vld [vmem:[#allocation3 + $0xc0] sm:$0xff]
        %v1598 = vld [vmem:[#allocation3 + $0xc8] sm:$0xff]
        %v1599 = vld [vmem:[#allocation3 + $0xd0] sm:$0xff]
        %v1600 = vld [vmem:[#allocation3 + $0xd8] sm:$0xff]
        %v1601 = vld [vmem:[#allocation3 + $0xe0] sm:$0xff]
        %v1602 = vld [vmem:[#allocation3 + $0xe8] sm:$0xff]
        %v1603 = vld [vmem:[#allocation3 + $0xf0] sm:$0xff]
        %v1604 = vld [vmem:[#allocation3 + $0xf8] sm:$0xff]
        %v1605 = vld [vmem:[#allocation3 + $0x100] sm:$0xff]
        %v1606 = vld [vmem:[#allocation3 + $0x108] sm:$0xff]
        %v1607 = vld [vmem:[#allocation3 + $0x110] sm:$0xff]
        %v1608 = vld [vmem:[#allocation3 + $0x118] sm:$0xff]
        %v1609 = vld [vmem:[#allocation3 + $0x120] sm:$0xff]
        %v1610 = vld [vmem:[#allocation3 + $0x128] sm:$0xff]
        %v1611 = vld [vmem:[#allocation3 + $0x130] sm:$0xff]
        %v1612 = vld [vmem:[#allocation3 + $0x138] sm:$0xff]
        %v1613 = vld [vmem:[#allocation3 + $0x140] sm:$0xff]
        %v1614 = vld [vmem:[#allocation3 + $0x148] sm:$0xff]
        %v1615 = vld [vmem:[#allocation3 + $0x150] sm:$0xff]
        %v1616 = vld [vmem:[#allocation3 + $0x158] sm:$0xff]
        %v1617 = vld [vmem:[#allocation3 + $0x160] sm:$0xff]
        %v1618 = vld [vmem:[#allocation3 + $0x168] sm:$0xff]
        %v1619 = vld [vmem:[#allocation3 + $0x170] sm:$0xff]
        %v1620 = vld [vmem:[#allocation3 + $0x178] sm:$0xff]
        %v1621 = vld [vmem:[%s4] sm:$0xff]
        %v1622 = vld [vmem:[%s4 + $0x8] sm:$0xff]
        %v1623 = vld [vmem:[%s4 + $0x10] sm:$0xff]
        %v1624 = vld [vmem:[%s4 + $0x18] sm:$0xff]
        %v1625 = vld [vmem:[%s4 + $0x20] sm:$0xff]
        %v1626 = vld [vmem:[%s4 + $0x28] sm:$0xff]
        %v1627 = vld [vmem:[%s4 + $0x30] sm:$0xff]
        %v1628 = vld [vmem:[%s4 + $0x38] sm:$0xff]
        %v1629 = vld [vmem:[%s4 + $0x40] sm:$0xff]
        %v1630 = vld [vmem:[%s4 + $0x48] sm:$0xff]
        %v1631 = vld [vmem:[%s4 + $0x50] sm:$0xff]
        %v1632 = vld [vmem:[%s4 + $0x58] sm:$0xff]
        %v1633 = vld [vmem:[%s4 + $0x60] sm:$0xff]
        %v1634 = vld [vmem:[%s4 + $0x68] sm:$0xff]
        %v1635 = vld [vmem:[%s4 + $0x70] sm:$0xff]
        %v1636 = vld [vmem:[%s4 + $0x78] sm:$0xff]
        %v1637 = vld [vmem:[%s4 + $0x80] sm:$0xff]
        %v1638 = vld [vmem:[%s4 + $0x88] sm:$0xff]
        %v1639 = vld [vmem:[%s4 + $0x90] sm:$0xff]
        %v1640 = vld [vmem:[%s4 + $0x98] sm:$0xff]
        %v1641 = vld [vmem:[%s4 + $0xa0] sm:$0xff]
        %v1642 = vld [vmem:[%s4 + $0xa8] sm:$0xff]
        %v1643 = vld [vmem:[%s4 + $0xb0] sm:$0xff]
        %v1644 = vld [vmem:[%s4 + $0xb8] sm:$0xff]
        %v1645 = vld [vmem:[%s4 + $0xc0] sm:$0xff]
        %v1646 = vld [vmem:[%s4 + $0xc8] sm:$0xff]
        %v1647 = vld [vmem:[%s4 + $0xd0] sm:$0xff]
        %v1648 = vld [vmem:[%s4 + $0xd8] sm:$0xff]
        %v1649 = vld [vmem:[%s4 + $0xe0] sm:$0xff]
        %v1650 = vld [vmem:[%s4 + $0xe8] sm:$0xff]
        %v1651 = vld [vmem:[%s4 + $0xf0] sm:$0xff]
        %v1652 = vld [vmem:[%s4 + $0xf8] sm:$0xff]
        %v1653 = vld [vmem:[%s4 + $0x100] sm:$0xff]
        %v1654 = vld [vmem:[%s4 + $0x108] sm:$0xff]
        %v1655 = vld [vmem:[%s4 + $0x110] sm:$0xff]
        %v1656 = vld [vmem:[%s4 + $0x118] sm:$0xff]
        %v1657 = vld [vmem:[%s7] sm:$0x1]
        %v1659 = vlaneseq
        %v1660 = vshrl.u32 %v1659, 7
        %v1661 = vsub.s32 0, %v1660
        %v1662 = vrot.slane %v1657, %v1661
        %v1665 = vsel %vm874, %v1575, 0
        %v1668 = vsel %vm874, %v1578, 0
        %v1671 = vsel %vm874, %v1581, 0
        %v1674 = vsel %vm874, %v1584, 0
        %v1677 = vsel %vm874, %v1587, 0
        %v1680 = vsel %vm874, %v1590, 0
        %v1683 = vsel %vm874, %v1593, 0
        %v1686 = vsel %vm874, %v1596, 0
        %v1689 = vsel %vm874, %v1599, 0
        %v1692 = vsel %vm874, %v1602, 0
        %v1695 = vsel %vm874, %v1605, 0
        %v1698 = vsel %vm874, %v1608, 0
        %v1701 = vsel %vm874, %v1611, 0
        %v1704 = vsel %vm874, %v1614, 0
        %v1707 = vsel %vm874, %v1617, 0
        %v1710 = vsel %vm874, %v1620, 0
        %1712 = vmatprep.subr.mxu0 0.0
        %1713 = vmatpush1.msra.mxu0 %v1621
        %1714 = vmatprep.subr.mxu0 0.0
        %1715 = vmatpush1.msra.mxu0 %v1622
        %1716 = vmatprep.subr.mxu0 0.0
        %1717 = vmatpush1.msra.mxu0 %v1623
        %1718 = vmatprep.subr.mxu0 0.0
        %1719 = vmatpush1.msra.mxu0 %v1624
        %1720 = vmatprep.subr.mxu0 0.0
        %1721 = vmatpush1.msra.mxu0 %v1625
        %1722 = vmatprep.subr.mxu0 0.0
        %1723 = vmatpush1.msra.mxu0 %v1626
        %1724 = vmatprep.subr.mxu0 0.0
        %1725 = vmatpush1.msra.mxu0 %v1627
        %1726 = vmatprep.subr.mxu0 0.0
        %1727 = vmatpush1.msra.mxu0 %v1628
        %1728 = vmatprep.subr.mxu0 0.0
        %1729 = vmatpush1.msra.mxu0 %v1629
        %1730 = vmatprep.subr.mxu0 0.0
        %1731 = vmatpush1.msra.mxu0 %v1630
        %1732 = vmatprep.subr.mxu0 0.0
        %1733 = vmatpush1.msra.mxu0 %v1631
        %1734 = vmatprep.subr.mxu0 0.0
        %1735 = vmatpush1.msra.mxu0 %v1632
        %1736 = vmatprep.subr.mxu0 0.0
        %1737 = vmatpush1.msra.mxu0 %v1633
        %1738 = vmatprep.subr.mxu0 0.0
        %1739 = vmatpush1.msra.mxu0 %v1634
        %1740 = vmatprep.subr.mxu0 0.0
        %1741 = vmatpush1.msra.mxu0 %v1635
        %1742 = vmatprep.subr.mxu0 0.0
        %1743 = vmatpush1.msra.mxu0 %v1636
        %1744 = vmatprep.subr.mxu0 0.0
        %1745 = vmatpush1.msra.mxu0 %v1637
        %1746 = vmatprep.subr.mxu0 0.0
        %1747 = vmatpush1.msra.mxu0 %v1638
        %1748 = vmatprep.subr.mxu0 0.0
        %1749 = vmatpush1.msra.mxu0 %v1639
        %1750 = vmatprep.subr.mxu0 0.0
        %1751 = vmatpush1.msra.mxu0 %v1640
        %1752 = vmatprep.subr.mxu0 0.0
        %1753 = vmatpush1.msra.mxu0 %v1641
        %1754 = vmatprep.subr.mxu0 0.0
        %1755 = vmatpush1.msra.mxu0 %v1642
        %1756 = vmatprep.subr.mxu0 0.0
        %1757 = vmatpush1.msra.mxu0 %v1643
        %1758 = vmatprep.subr.mxu0 0.0
        %1759 = vmatpush1.msra.mxu0 %v1644
        %1760 = vmatprep.subr.mxu0 0.0
        %1761 = vmatpush1.msra.mxu0 %v1645
        %1762 = vmatprep.subr.mxu0 0.0
        %1763 = vmatpush1.msra.mxu0 %v1646
        %1764 = vmatprep.subr.mxu0 0.0
        %1765 = vmatpush1.msra.mxu0 %v1647
        %1766 = vmatprep.subr.mxu0 0.0
        %1767 = vmatpush1.msra.mxu0 %v1648
        %1768 = vmatprep.subr.mxu0 0.0
        %1769 = vmatpush1.msra.mxu0 %v1649
        %1770 = vmatprep.subr.mxu0 0.0
        %1771 = vmatpush1.msra.mxu0 %v1650
        %1772 = vmatprep.subr.mxu0 0.0
        %1773 = vmatpush1.msra.mxu0 %v1651
        %1774 = vmatprep.subr.mxu0 0.0
        %1775 = vmatpush1.msra.mxu0 %v1652
        %1776 = vmatprep.mubr.f32.mxu0 %v1574
        %1777 = vmatmul.mubr.f32.gmra.mrb[0].mxu0 %v1573
        %v1778 = vpop.f32.mrb[0].mxu0
        %v1779 = vadd.f32 %v1662, %v1778
        %v1780 = vpop.f32.mrb[0].mxu0
        %1781 = vmatprep.mubr.f32.mxu0 %v1577
        %1782 = vmatmul.mubr.f32.gmra.mrb[0].mxu0 %v1576
        %v1783 = vpop.f32.mrb[0].mxu0
        %v1784 = vadd.f32 %v1662, %v1783
        %v1785 = vpop.f32.mrb[0].mxu0
        %1786 = vmatprep.mubr.f32.mxu0 %v1580
        %1787 = vmatmul.mubr.f32.gmra.mrb[0].mxu0 %v1579
        %v1788 = vpop.f32.mrb[0].mxu0
        %v1789 = vadd.f32 %v1662, %v1788
        %v1790 = vpop.f32.mrb[0].mxu0
        %1791 = vmatprep.mubr.f32.mxu0 %v1583
        %1792 = vmatmul.mubr.f32.gmra.mrb[0].mxu0 %v1582
        %v1793 = vpop.f32.mrb[0].mxu0
        %v1794 = vadd.f32 %v1662, %v1793
        %v1795 = vpop.f32.mrb[0].mxu0
        %1796 = vmatprep.mubr.f32.mxu0 %v1586
        %1797 = vmatmul.mubr.f32.gmra.mrb[0].mxu0 %v1585
        %v1798 = vpop.f32.mrb[0].mxu0
        %v1799 = vadd.f32 %v1662, %v1798
        %v1800 = vpop.f32.mrb[0].mxu0
        %1801 = vmatprep.mubr.f32.mxu0 %v1589
        %1802 = vmatmul.mubr.f32.gmra.mrb[0].mxu0 %v1588
        %v1803 = vpop.f32.mrb[0].mxu0
        %v1804 = vadd.f32 %v1662, %v1803
        %v1805 = vpop.f32.mrb[0].mxu0
        %1806 = vmatprep.mubr.f32.mxu0 %v1592
        %1807 = vmatmul.mubr.f32.gmra.mrb[0].mxu0 %v1591
        %v1808 = vpop.f32.mrb[0].mxu0
        %v1809 = vadd.f32 %v1662, %v1808
        %v1810 = vpop.f32.mrb[0].mxu0
        %1811 = vmatprep.mubr.f32.mxu0 %v1595
        %1812 = vmatmul.mubr.f32.gmra.mrb[0].mxu0 %v1594
        %v1813 = vpop.f32.mrb[0].mxu0
        %v1814 = vadd.f32 %v1662, %v1813
        %v1815 = vpop.f32.mrb[0].mxu0
        %1816 = vmatprep.mubr.f32.mxu0 %v1598
        %1817 = vmatmul.mubr.f32.gmra.mrb[0].mxu0 %v1597
        %v1818 = vpop.f32.mrb[0].mxu0
        %v1819 = vadd.f32 %v1662, %v1818
        %v1820 = vpop.f32.mrb[0].mxu0
        %1821 = vmatprep.mubr.f32.mxu0 %v1601
        %1822 = vmatmul.mubr.f32.gmra.mrb[0].mxu0 %v1600
        %v1823 = vpop.f32.mrb[0].mxu0
        %v1824 = vadd.f32 %v1662, %v1823
        %v1825 = vpop.f32.mrb[0].mxu0
        %1826 = vmatprep.mubr.f32.mxu0 %v1604
        %1827 = vmatmul.mubr.f32.gmra.mrb[0].mxu0 %v1603
        %v1828 = vpop.f32.mrb[0].mxu0
        %v1829 = vadd.f32 %v1662, %v1828
        %v1830 = vpop.f32.mrb[0].mxu0
        %1831 = vmatprep.mubr.f32.mxu0 %v1607
        %1832 = vmatmul.mubr.f32.gmra.mrb[0].mxu0 %v1606
        %v1833 = vpop.f32.mrb[0].mxu0
        %v1834 = vadd.f32 %v1662, %v1833
        %v1835 = vpop.f32.mrb[0].mxu0
        %1836 = vmatprep.mubr.f32.mxu0 %v1610
        %1837 = vmatmul.mubr.f32.gmra.mrb[0].mxu0 %v1609
        %v1838 = vpop.f32.mrb[0].mxu0
        %v1839 = vadd.f32 %v1662, %v1838
        %v1840 = vpop.f32.mrb[0].mxu0
        %1841 = vmatprep.mubr.f32.mxu0 %v1613
        %1842 = vmatmul.mubr.f32.gmra.mrb[0].mxu0 %v1612
        %v1843 = vpop.f32.mrb[0].mxu0
        %v1844 = vadd.f32 %v1662, %v1843
        %v1845 = vpop.f32.mrb[0].mxu0
        %1846 = vmatprep.mubr.f32.mxu0 %v1616
        %1847 = vmatmul.mubr.f32.gmra.mrb[0].mxu0 %v1615
        %v1848 = vpop.f32.mrb[0].mxu0
        %v1849 = vadd.f32 %v1662, %v1848
        %v1850 = vpop.f32.mrb[0].mxu0
        %1851 = vmatprep.mubr.f32.mxu0 %v1619
        %1852 = vmatmul.mubr.f32.gmra.mrb[0].mxu0 %v1618
        %v1853 = vpop.f32.mrb[0].mxu0
        %v1854 = vadd.f32 %v1662, %v1853
        %v1855 = vpop.f32.mrb[0].mxu0
        %1856 = vdwg.mxu0
        %1857 = vmatprep.subr.mxu0 0.0
        %1858 = vmatpush1.msra.mxu0 %v1653
        %1859 = vmatprep.subr.mxu0 0.0
        %1860 = vmatpush1.msra.mxu0 %v1654
        %1861 = vmatprep.subr.mxu0 0.0
        %1862 = vmatpush1.msra.mxu0 %v1655
        %1863 = vmatprep.subr.mxu0 0.0
        %1864 = vmatpush1.msra.mxu0 %v1656
        %1865 = vmatprep.subr.mxu0 0.0
        %1866 = vmatpush1.msra.mxu0 0.0
        %1867 = vmatprep.subr.mxu0 0.0
        %1868 = vmatpush1.msra.mxu0 0.0
        %1869 = vmatprep.subr.mxu0 0.0
        %1870 = vmatpush1.msra.mxu0 0.0
        %1871 = vmatprep.subr.mxu0 0.0
        %1872 = vmatpush1.msra.mxu0 0.0
        %1873 = vmatprep.subr.mxu0 0.0
        %1874 = vmatpush1.msra.mxu0 0.0
        %1875 = vmatprep.subr.mxu0 0.0
        %1876 = vmatpush1.msra.mxu0 0.0
        %1877 = vmatprep.subr.mxu0 0.0
        %1878 = vmatpush1.msra.mxu0 0.0
        %1879 = vmatprep.subr.mxu0 0.0
        %1880 = vmatpush1.msra.mxu0 0.0
        %1881 = vmatprep.subr.mxu0 0.0
        %1882 = vmatpush1.msra.mxu0 0.0
        %1883 = vmatprep.subr.mxu0 0.0
        %1884 = vmatpush1.msra.mxu0 0.0
        %1885 = vmatprep.subr.mxu0 0.0
        %1886 = vmatpush1.msra.mxu0 0.0
        %1887 = vmatprep.subr.mxu0 0.0
        %1888 = vmatpush1.msra.mxu0 0.0
        %1889 = vmatprep.subr.mxu0 0.0
        %1890 = vmatpush1.msra.mxu0 0.0
        %1891 = vmatprep.subr.mxu0 0.0
        %1892 = vmatpush1.msra.mxu0 0.0
        %1893 = vmatprep.subr.mxu0 0.0
        %1894 = vmatpush1.msra.mxu0 0.0
        %1895 = vmatprep.subr.mxu0 0.0
        %1896 = vmatpush1.msra.mxu0 0.0
        %1897 = vmatprep.subr.mxu0 0.0
        %1898 = vmatpush1.msra.mxu0 0.0
        %1899 = vmatprep.subr.mxu0 0.0
        %1900 = vmatpush1.msra.mxu0 0.0
        %1901 = vmatprep.subr.mxu0 0.0
        %1902 = vmatpush1.msra.mxu0 0.0
        %1903 = vmatprep.subr.mxu0 0.0
        %1904 = vmatpush1.msra.mxu0 0.0
        %1905 = vmatprep.subr.mxu0 0.0
        %1906 = vmatpush1.msra.mxu0 0.0
        %1907 = vmatprep.subr.mxu0 0.0
        %1908 = vmatpush1.msra.mxu0 0.0
        %1909 = vmatprep.subr.mxu0 0.0
        %1910 = vmatpush1.msra.mxu0 0.0
        %1911 = vmatprep.subr.mxu0 0.0
        %1912 = vmatpush1.msra.mxu0 0.0
        %1913 = vmatprep.subr.mxu0 0.0
        %1914 = vmatpush1.msra.mxu0 0.0
        %1915 = vmatprep.subr.mxu0 0.0
        %1916 = vmatpush1.msra.mxu0 0.0
        %1917 = vmatprep.subr.mxu0 0.0
        %1918 = vmatpush1.msra.mxu0 0.0
        %1919 = vmatprep.subr.mxu0 0.0
        %1920 = vmatpush1.msra.mxu0 0.0
        %1921 = vmatprep.mubr.f32.mxu0 0.0
        %1922 = vmatmul.mubr.f32.gmra.mrb[0].mxu0 %v1665
        %v1923 = vpop.f32.mrb[0].mxu0
        %v1924 = vadd.f32 %v1779, %v1923
        %v1925 = vpop.f32.mrb[0].mxu0
        %1926 = vmatprep.mubr.f32.mxu0 0.0
        %1927 = vmatmul.mubr.f32.gmra.mrb[0].mxu0 %v1668
        %v1928 = vpop.f32.mrb[0].mxu0
        %v1929 = vadd.f32 %v1784, %v1928
        %v1930 = vpop.f32.mrb[0].mxu0
        %1931 = vmatprep.mubr.f32.mxu0 0.0
        %1932 = vmatmul.mubr.f32.gmra.mrb[0].mxu0 %v1671
        %v1933 = vpop.f32.mrb[0].mxu0
        %v1934 = vadd.f32 %v1789, %v1933
        %v1935 = vpop.f32.mrb[0].mxu0
        %1936 = vmatprep.mubr.f32.mxu0 0.0
        %1937 = vmatmul.mubr.f32.gmra.mrb[0].mxu0 %v1674
        %v1938 = vpop.f32.mrb[0].mxu0
        %v1939 = vadd.f32 %v1794, %v1938
        %v1940 = vpop.f32.mrb[0].mxu0
        %1941 = vmatprep.mubr.f32.mxu0 0.0
        %1942 = vmatmul.mubr.f32.gmra.mrb[0].mxu0 %v1677
        %v1943 = vpop.f32.mrb[0].mxu0
        %v1944 = vadd.f32 %v1799, %v1943
        %v1945 = vpop.f32.mrb[0].mxu0
        %1946 = vmatprep.mubr.f32.mxu0 0.0
        %1947 = vmatmul.mubr.f32.gmra.mrb[0].mxu0 %v1680
        %v1948 = vpop.f32.mrb[0].mxu0
        %v1949 = vadd.f32 %v1804, %v1948
        %v1950 = vpop.f32.mrb[0].mxu0
        %1951 = vmatprep.mubr.f32.mxu0 0.0
        %1952 = vmatmul.mubr.f32.gmra.mrb[0].mxu0 %v1683
        %v1953 = vpop.f32.mrb[0].mxu0
        %v1954 = vadd.f32 %v1809, %v1953
        %v1955 = vpop.f32.mrb[0].mxu0
        %1956 = vmatprep.mubr.f32.mxu0 0.0
        %1957 = vmatmul.mubr.f32.gmra.mrb[0].mxu0 %v1686
        %v1958 = vpop.f32.mrb[0].mxu0
        %v1959 = vadd.f32 %v1814, %v1958
        %v1960 = vpop.f32.mrb[0].mxu0
        %1961 = vmatprep.mubr.f32.mxu0 0.0
        %1962 = vmatmul.mubr.f32.gmra.mrb[0].mxu0 %v1689
        %v1963 = vpop.f32.mrb[0].mxu0
        %v1964 = vadd.f32 %v1819, %v1963
        %v1965 = vpop.f32.mrb[0].mxu0
        %1966 = vmatprep.mubr.f32.mxu0 0.0
        %1967 = vmatmul.mubr.f32.gmra.mrb[0].mxu0 %v1692
        %v1968 = vpop.f32.mrb[0].mxu0
        %v1969 = vadd.f32 %v1824, %v1968
        %v1970 = vpop.f32.mrb[0].mxu0
        %1971 = vmatprep.mubr.f32.mxu0 0.0
        %1972 = vmatmul.mubr.f32.gmra.mrb[0].mxu0 %v1695
        %v1973 = vpop.f32.mrb[0].mxu0
        %v1974 = vadd.f32 %v1829, %v1973
        %v1975 = vpop.f32.mrb[0].mxu0
        %1976 = vmatprep.mubr.f32.mxu0 0.0
        %1977 = vmatmul.mubr.f32.gmra.mrb[0].mxu0 %v1698
        %v1978 = vpop.f32.mrb[0].mxu0
        %v1979 = vadd.f32 %v1834, %v1978
        %v1980 = vpop.f32.mrb[0].mxu0
        %1981 = vmatprep.mubr.f32.mxu0 0.0
        %1982 = vmatmul.mubr.f32.gmra.mrb[0].mxu0 %v1701
        %v1983 = vpop.f32.mrb[0].mxu0
        %v1984 = vadd.f32 %v1839, %v1983
        %v1985 = vpop.f32.mrb[0].mxu0
        %1986 = vmatprep.mubr.f32.mxu0 0.0
        %1987 = vmatmul.mubr.f32.gmra.mrb[0].mxu0 %v1704
        %v1988 = vpop.f32.mrb[0].mxu0
        %v1989 = vadd.f32 %v1844, %v1988
        %v1990 = vpop.f32.mrb[0].mxu0
        %1991 = vmatprep.mubr.f32.mxu0 0.0
        %1992 = vmatmul.mubr.f32.gmra.mrb[0].mxu0 %v1707
        %v1993 = vpop.f32.mrb[0].mxu0
        %v1994 = vadd.f32 %v1849, %v1993
        %v1995 = vpop.f32.mrb[0].mxu0
        %1996 = vmatprep.mubr.f32.mxu0 0.0
        %1997 = vmatmul.mubr.f32.gmra.mrb[0].mxu0 %v1710
        %v1998 = vpop.f32.mrb[0].mxu0
        %v1999 = vadd.f32 %v1854, %v1998
        %v2000 = vpop.f32.mrb[0].mxu0
        %2001 = vdwg.mxu0
        %v2002 = vmax.f32 %v1924, 0.0
        %v2003 = vmax.f32 %v1929, 0.0
        %v2004 = vmax.f32 %v1934, 0.0
        %v2005 = vmax.f32 %v1939, 0.0
        %v2006 = vmax.f32 %v1944, 0.0
        %v2007 = vmax.f32 %v1949, 0.0
        %v2008 = vmax.f32 %v1954, 0.0
        %v2009 = vmax.f32 %v1959, 0.0
        %v2010 = vmax.f32 %v1964, 0.0
        %v2011 = vmax.f32 %v1969, 0.0
        %v2012 = vmax.f32 %v1974, 0.0
        %v2013 = vmax.f32 %v1979, 0.0
        %v2014 = vmax.f32 %v1984, 0.0
        %v2015 = vmax.f32 %v1989, 0.0
        %v2016 = vmax.f32 %v1994, 0.0
        %v2017 = vmax.f32 %v1999, 0.0
        %v2018 = vld [vmem:[%s5] sm:$0xff]
        %v2019 = vld [vmem:[%s5 + $0x8] sm:$0xff]
        %v2020 = vld [vmem:[%s5 + $0x10] sm:$0xff]
        %v2021 = vld [vmem:[%s5 + $0x18] sm:$0xff]
        %v2022 = vld [vmem:[%s8] sm:$0x1]
        %v2024 = vlaneseq
        %v2025 = vshrl.u32 %v2024, 7
        %v2026 = vsub.s32 0, %v2025
        %v2027 = vrot.slane %v2022, %v2026
        %v2030 = vsel %vm874, %v2002, 0
        %v2033 = vsel %vm874, %v2003, 0
        %v2036 = vsel %vm874, %v2004, 0
        %v2039 = vsel %vm874, %v2005, 0
        %v2042 = vsel %vm874, %v2006, 0
        %v2045 = vsel %vm874, %v2007, 0
        %v2048 = vsel %vm874, %v2008, 0
        %v2051 = vsel %vm874, %v2009, 0
        %v2054 = vsel %vm874, %v2010, 0
        %v2057 = vsel %vm874, %v2011, 0
        %v2060 = vsel %vm874, %v2012, 0
        %v2063 = vsel %vm874, %v2013, 0
        %v2066 = vsel %vm874, %v2014, 0
        %v2069 = vsel %vm874, %v2015, 0
        %v2072 = vsel %vm874, %v2016, 0
        %v2075 = vsel %vm874, %v2017, 0
        %2077 = vmatprep.subr.mxu0 0.0
        %2078 = vmatpush1.msra.mxu0 %v2018
        %2079 = vmatprep.subr.mxu0 0.0
        %2080 = vmatpush1.msra.mxu0 %v2019
        %2081 = vmatprep.subr.mxu0 0.0
        %2082 = vmatpush1.msra.mxu0 %v2020
        %2083 = vmatprep.subr.mxu0 0.0
        %2084 = vmatpush1.msra.mxu0 %v2021
        %2085 = vmatprep.subr.mxu0 0.0
        %2086 = vmatpush1.msra.mxu0 0.0
        %2087 = vmatprep.subr.mxu0 0.0
        %2088 = vmatpush1.msra.mxu0 0.0
        %2089 = vmatprep.subr.mxu0 0.0
        %2090 = vmatpush1.msra.mxu0 0.0
        %2091 = vmatprep.subr.mxu0 0.0
        %2092 = vmatpush1.msra.mxu0 0.0
        %2093 = vmatprep.subr.mxu0 0.0
        %2094 = vmatpush1.msra.mxu0 0.0
        %2095 = vmatprep.subr.mxu0 0.0
        %2096 = vmatpush1.msra.mxu0 0.0
        %2097 = vmatprep.subr.mxu0 0.0
        %2098 = vmatpush1.msra.mxu0 0.0
        %2099 = vmatprep.subr.mxu0 0.0
        %2100 = vmatpush1.msra.mxu0 0.0
        %2101 = vmatprep.subr.mxu0 0.0
        %2102 = vmatpush1.msra.mxu0 0.0
        %2103 = vmatprep.subr.mxu0 0.0
        %2104 = vmatpush1.msra.mxu0 0.0
        %2105 = vmatprep.subr.mxu0 0.0
        %2106 = vmatpush1.msra.mxu0 0.0
        %2107 = vmatprep.subr.mxu0 0.0
        %2108 = vmatpush1.msra.mxu0 0.0
        %2109 = vmatprep.subr.mxu0 0.0
        %2110 = vmatpush1.msra.mxu0 0.0
        %2111 = vmatprep.subr.mxu0 0.0
        %2112 = vmatpush1.msra.mxu0 0.0
        %2113 = vmatprep.subr.mxu0 0.0
        %2114 = vmatpush1.msra.mxu0 0.0
        %2115 = vmatprep.subr.mxu0 0.0
        %2116 = vmatpush1.msra.mxu0 0.0
        %2117 = vmatprep.subr.mxu0 0.0
        %2118 = vmatpush1.msra.mxu0 0.0
        %2119 = vmatprep.subr.mxu0 0.0
        %2120 = vmatpush1.msra.mxu0 0.0
        %2121 = vmatprep.subr.mxu0 0.0
        %2122 = vmatpush1.msra.mxu0 0.0
        %2123 = vmatprep.subr.mxu0 0.0
        %2124 = vmatpush1.msra.mxu0 0.0
        %2125 = vmatprep.subr.mxu0 0.0
        %2126 = vmatpush1.msra.mxu0 0.0
        %2127 = vmatprep.subr.mxu0 0.0
        %2128 = vmatpush1.msra.mxu0 0.0
        %2129 = vmatprep.subr.mxu0 0.0
        %2130 = vmatpush1.msra.mxu0 0.0
        %2131 = vmatprep.subr.mxu0 0.0
        %2132 = vmatpush1.msra.mxu0 0.0
        %2133 = vmatprep.subr.mxu0 0.0
        %2134 = vmatpush1.msra.mxu0 0.0
        %2135 = vmatprep.subr.mxu0 0.0
        %2136 = vmatpush1.msra.mxu0 0.0
        %2137 = vmatprep.subr.mxu0 0.0
        %2138 = vmatpush1.msra.mxu0 0.0
        %2139 = vmatprep.subr.mxu0 0.0
        %2140 = vmatpush1.msra.mxu0 0.0
        %2141 = vmatprep.mubr.f32.mxu0 0.0
        %2142 = vmatmul.mubr.f32.gmra.mrb[0].mxu0 %v2030
        %v2143 = vpop.f32.mrb[0].mxu0
        %v2144 = vadd.f32 %v2027, %v2143
        %v2145 = vpop.f32.mrb[0].mxu0
        %2146 = vmatprep.mubr.f32.mxu0 0.0
        %2147 = vmatmul.mubr.f32.gmra.mrb[0].mxu0 %v2033
        %v2148 = vpop.f32.mrb[0].mxu0
        %v2149 = vadd.f32 %v2027, %v2148
        %v2150 = vpop.f32.mrb[0].mxu0
        %2151 = vmatprep.mubr.f32.mxu0 0.0
        %2152 = vmatmul.mubr.f32.gmra.mrb[0].mxu0 %v2036
        %v2153 = vpop.f32.mrb[0].mxu0
        %v2154 = vadd.f32 %v2027, %v2153
        %v2155 = vpop.f32.mrb[0].mxu0
        %2156 = vmatprep.mubr.f32.mxu0 0.0
        %2157 = vmatmul.mubr.f32.gmra.mrb[0].mxu0 %v2039
        %v2158 = vpop.f32.mrb[0].mxu0
        %v2159 = vadd.f32 %v2027, %v2158
        %v2160 = vpop.f32.mrb[0].mxu0
        %2161 = vmatprep.mubr.f32.mxu0 0.0
        %2162 = vmatmul.mubr.f32.gmra.mrb[0].mxu0 %v2042
        %v2163 = vpop.f32.mrb[0].mxu0
        %v2164 = vadd.f32 %v2027, %v2163
        %v2165 = vpop.f32.mrb[0].mxu0
        %2166 = vmatprep.mubr.f32.mxu0 0.0
        %2167 = vmatmul.mubr.f32.gmra.mrb[0].mxu0 %v2045
        %v2168 = vpop.f32.mrb[0].mxu0
        %v2169 = vadd.f32 %v2027, %v2168
        %v2170 = vpop.f32.mrb[0].mxu0
        %2171 = vmatprep.mubr.f32.mxu0 0.0
        %2172 = vmatmul.mubr.f32.gmra.mrb[0].mxu0 %v2048
        %v2173 = vpop.f32.mrb[0].mxu0
        %v2174 = vadd.f32 %v2027, %v2173
        %v2175 = vpop.f32.mrb[0].mxu0
        %2176 = vmatprep.mubr.f32.mxu0 0.0
        %2177 = vmatmul.mubr.f32.gmra.mrb[0].mxu0 %v2051
        %v2178 = vpop.f32.mrb[0].mxu0
        %v2179 = vadd.f32 %v2027, %v2178
        %v2180 = vpop.f32.mrb[0].mxu0
        %2181 = vmatprep.mubr.f32.mxu0 0.0
        %2182 = vmatmul.mubr.f32.gmra.mrb[0].mxu0 %v2054
        %v2183 = vpop.f32.mrb[0].mxu0
        %v2184 = vadd.f32 %v2027, %v2183
        %v2185 = vpop.f32.mrb[0].mxu0
        %2186 = vmatprep.mubr.f32.mxu0 0.0
        %2187 = vmatmul.mubr.f32.gmra.mrb[0].mxu0 %v2057
        %v2188 = vpop.f32.mrb[0].mxu0
        %v2189 = vadd.f32 %v2027, %v2188
        %v2190 = vpop.f32.mrb[0].mxu0
        %2191 = vmatprep.mubr.f32.mxu0 0.0
        %2192 = vmatmul.mubr.f32.gmra.mrb[0].mxu0 %v2060
        %v2193 = vpop.f32.mrb[0].mxu0
        %v2194 = vadd.f32 %v2027, %v2193
        %v2195 = vpop.f32.mrb[0].mxu0
        %2196 = vmatprep.mubr.f32.mxu0 0.0
        %2197 = vmatmul.mubr.f32.gmra.mrb[0].mxu0 %v2063
        %v2198 = vpop.f32.mrb[0].mxu0
        %v2199 = vadd.f32 %v2027, %v2198
        %v2200 = vpop.f32.mrb[0].mxu0
        %2201 = vmatprep.mubr.f32.mxu0 0.0
        %2202 = vmatmul.mubr.f32.gmra.mrb[0].mxu0 %v2066
        %v2203 = vpop.f32.mrb[0].mxu0
        %v2204 = vadd.f32 %v2027, %v2203
        %v2205 = vpop.f32.mrb[0].mxu0
        %2206 = vmatprep.mubr.f32.mxu0 0.0
        %2207 = vmatmul.mubr.f32.gmra.mrb[0].mxu0 %v2069
        %v2208 = vpop.f32.mrb[0].mxu0
        %v2209 = vadd.f32 %v2027, %v2208
        %v2210 = vpop.f32.mrb[0].mxu0
        %2211 = vmatprep.mubr.f32.mxu0 0.0
        %2212 = vmatmul.mubr.f32.gmra.mrb[0].mxu0 %v2072
        %v2213 = vpop.f32.mrb[0].mxu0
        %v2214 = vadd.f32 %v2027, %v2213
        %v2215 = vpop.f32.mrb[0].mxu0
        %2216 = vmatprep.mubr.f32.mxu0 0.0
        %2217 = vmatmul.mubr.f32.gmra.mrb[0].mxu0 %v2075
        %v2218 = vpop.f32.mrb[0].mxu0
        %v2219 = vadd.f32 %v2027, %v2218
        %v2220 = vpop.f32.mrb[0].mxu0
        %2221 = vdwg.mxu0
        %v2222 = vadd.f32 %v2144, %v502
        %v2223 = vadd.f32 %v2149, %v503
        %v2224 = vadd.f32 %v2154, %v504
        %v2225 = vadd.f32 %v2159, %v505
        %v2226 = vadd.f32 %v2164, %v506
        %v2227 = vadd.f32 %v2169, %v507
        %v2228 = vadd.f32 %v2174, %v508
        %v2229 = vadd.f32 %v2179, %v509
        %v2230 = vadd.f32 %v2184, %v510
        %v2231 = vadd.f32 %v2189, %v511
        %v2232 = vadd.f32 %v2194, %v512
        %v2233 = vadd.f32 %v2199, %v513
        %v2234 = vadd.f32 %v2204, %v514
        %v2235 = vadd.f32 %v2209, %v515
        %v2236 = vadd.f32 %v2214, %v516
        %v2237 = vadd.f32 %v2219, %v517
        %v2238 = vmax.f32 %v2222, 0.0
        %v2239 = vmax.f32 %v2223, 0.0
        %v2240 = vmax.f32 %v2224, 0.0
        %v2241 = vmax.f32 %v2225, 0.0
        %v2242 = vmax.f32 %v2226, 0.0
        %v2243 = vmax.f32 %v2227, 0.0
        %v2244 = vmax.f32 %v2228, 0.0
        %v2245 = vmax.f32 %v2229, 0.0
        %v2246 = vmax.f32 %v2230, 0.0
        %v2247 = vmax.f32 %v2231, 0.0
        %v2248 = vmax.f32 %v2232, 0.0
        %v2249 = vmax.f32 %v2233, 0.0
        %v2250 = vmax.f32 %v2234, 0.0
        %v2251 = vmax.f32 %v2235, 0.0
        %v2252 = vmax.f32 %v2236, 0.0
        %v2253 = vmax.f32 %v2237, 0.0
        %2254 = vst [vmem:[%s464] sm:$0xff] %v2238
        %2255 = vst [vmem:[%s464 + $0x8] sm:$0xff] %v2239
        %2256 = vst [vmem:[%s464 + $0x10] sm:$0xff] %v2240
        %2257 = vst [vmem:[%s464 + $0x18] sm:$0xff] %v2241
        %2258 = vst [vmem:[%s464 + $0x20] sm:$0xff] %v2242
        %2259 = vst [vmem:[%s464 + $0x28] sm:$0xff] %v2243
        %2260 = vst [vmem:[%s464 + $0x30] sm:$0xff] %v2244
        %2261 = vst [vmem:[%s464 + $0x38] sm:$0xff] %v2245
        %2262 = vst [vmem:[%s464 + $0x40] sm:$0xff] %v2246
        %2263 = vst [vmem:[%s464 + $0x48] sm:$0xff] %v2247
        %2264 = vst [vmem:[%s464 + $0x50] sm:$0xff] %v2248
        %2265 = vst [vmem:[%s464 + $0x58] sm:$0xff] %v2249
        %2266 = vst [vmem:[%s464 + $0x60] sm:$0xff] %v2250
        %2267 = vst [vmem:[%s464 + $0x68] sm:$0xff] %v2251
        %2268 = vst [vmem:[%s464 + $0x70] sm:$0xff] %v2252
        %2269 = vst [vmem:[%s464 + $0x78] sm:$0xff] %v2253
        %s2270 = sand.u32 %s277, 1
        %s2271 = scalar_lea.sflag [#allocation6], %s2270
        %s2272 = sand.u32 %s277, 1
        %s2273 = smul.addr %s2272, 128
        %s2274 = scalar_lea.vmem [#allocation9], %s2273
        // Predicated region
        $region65: #{tpu_custom_call.1} parent=55 // pred_check
          %p2275 = pneg %p287
        $region66: #{tpu_custom_call.1} parent=55 // pred_check_branch
          %2277 = sbr.rel (%p2275) target = $region68
        $region67: #{tpu_custom_call.1} parent=55 // pred_region
          %s2278 = smul.u32 8, %s34
          %s2280 = ssub.s32 2048, 2048
          %2281 = vsyncadd %s2271, %s2280
          %s2282 = smul.addr %s2278, 2
          %s2283 = smul.addr %s33, 32
          %s2284 = sadd.s32 %s2282, %s2283
          %s2285 = smul.addr %s2284, 128
          %s2286 = scalar_lea.hbm %s9, %s2285
          %s2287 = sshll.u32 %s2274, 4
          %s2288 = int_to_ptr.vmem [resolvable:$true] %s2287
          %2293 = dma.vmem_to_hbm [thread:$0]  %s2288, 2048, %s2286, %s2271, 128, 128, 8
        $region68: #{tpu_custom_call.1} parent=55 // pred_fallthru
          _
      $region56: #{tpu_custom_call.1} parent=5 // pred_fallthru
        _
      %p2294 = scmp.le.s32.totalorder 2, %s24
      // Predicated region
      $region69: #{tpu_custom_call.1} parent=5 // pred_check
        %p2295 = pneg %p2294
      $region70: #{tpu_custom_call.1} parent=5 // pred_check_branch
        %2297 = sbr.rel (%p2295) target = $region72
      $region71: #{tpu_custom_call.1} parent=5 // pred_region
        %s2298 = ssub.s32 %s24, 2
        // Predicated region
        $region73: #{tpu_custom_call.1} parent=71 // pred_check
          %p2299 = pneg %p293
        $region74: #{tpu_custom_call.1} parent=71 // pred_check_branch
          %2301 = sbr.rel (%p2299) target = $region76
        $region75: #{tpu_custom_call.1} parent=71 // pred_region
          %s2302 = sand.u32 %s278, 1
          %s2303 = scalar_lea.sflag [#allocation6], %s2302
          %s2304 = sand.u32 %s278, 1
          %s2305 = smul.addr %s2304, 128
          %s2306 = scalar_lea.vmem [#allocation9], %s2305
          %2307 = dma.done %s2303, 2048
        $region76: #{tpu_custom_call.1} parent=71 // pred_fallthru
          _
      $region72: #{tpu_custom_call.1} parent=5 // pred_fallthru
        _
    $region6: #{tpu_custom_call.1} parent=1 // loop_footer
      %s28 = sadd.s32 1, %s24
    $region7: #{tpu_custom_call.1} parent=1 // loop_footer_branch
      %23 = sbr.rel target = $region3
    $region8: #{tpu_custom_call.1} parent=1 // loop_exit
      _
    %2308 = vsyncpa [#allocation5], 1
    %s2309 = scalar_lea.sflag [#allocation5], 1
    %2310 = vsyncpa %s2309, 1
    %2311 = vsyncpa [#allocation8], 1
    %s2312 = scalar_lea.sflag [#allocation8], 1
    %2313 = vsyncpa %s2312, 1
    %2314 = vsyncpa [#allocation6], 1
    %s2315 = scalar_lea.sflag [#allocation6], 1
    %2316 = vsyncpa %s2315, 1

</llo_original>
